<compile_context>
chip_gen: v6e
topology: v6e:2x2x1
jax: 0.10.0
libtpu: 0.0.40
codegen_flags: <defaults>
</compile_context>

<pallas_src>
import jax
import jax.numpy as jnp
from jax.experimental import pallas as pl
from jax.experimental.pallas import tpu as pltpu


# ------------------------------- Pallas kernels ------------------------------

def linear_relu_kernel(x_ref, w_ref, b_ref, o_ref):
    # Linear + ReLU on one lane-dense N-tile (bf16 operands, f32 accumulate).
    y = jnp.dot(x_ref[...], w_ref[...], preferred_element_type=jnp.float32)
    o_ref[...] = jnp.maximum(y + b_ref[...], 0.0).astype(o_ref.dtype)


def conv1_row_kernel(xp_ref, w_ref, b_ref, y_ref, s_ref):
    # One output row (14 pixels) of ConvTranspose2d(128->64,4,2,1), expressed as
    # 16 small GEMMs over the zero-dilated/padded NHWC image resident in VMEM.
    # Also emits per-tile BN partial sums (sum, sum-of-squares) for pass-2 BN.
    oy = pl.program_id(1)
    acc = jnp.zeros((14, 64), jnp.float32)
    for ky in range(4):
        row = xp_ref[0, oy + ky]                          # (17, 128) bf16
        for kx in range(4):
            acc = acc + jnp.dot(row[kx:kx + 14, :], w_ref[ky * 4 + kx],
                                preferred_element_type=jnp.float32)
    acc = acc + b_ref[...]                                # + bias (1, 64)
    y_ref[0, 0] = acc
    ssum = jnp.sum(acc, axis=0, keepdims=True)            # (1, 64)
    ssq = jnp.sum(acc * acc, axis=0, keepdims=True)       # (1, 64)
    s_ref[0, 0] = jnp.concatenate([ssum, ssq], axis=0)    # (2, 64)


def bn_relu_kernel(y_ref, sc_ref, sh_ref, o_ref):
    # BatchNorm2d (train-mode batch stats folded to scale/shift) + ReLU, bf16 out.
    y = y_ref[0]                                          # (14, 14, 64) f32
    o_ref[0] = jnp.maximum(y * sc_ref[...] + sh_ref[...], 0.0).astype(o_ref.dtype)


def conv2_row_tanh_kernel(xp_ref, w_ref, b_ref, o_ref):
    # One output row (28 pixels) of ConvTranspose2d(64->1,4,2,1) + Tanh.
    # Cout is zero-padded to 128 so every store is lane-dense.
    oy = pl.program_id(1)
    acc = jnp.zeros((28, 128), jnp.float32)
    for ky in range(4):
        row = xp_ref[0, oy + ky]                          # (31, 64) bf16
        for kx in range(4):
            acc = acc + jnp.dot(row[kx:kx + 28, :], w_ref[ky * 4 + kx],
                                preferred_element_type=jnp.float32)
    o_ref[0, 0] = jnp.tanh(acc + b_ref[...])


# --------------------------- pallas_call wrappers ----------------------------

def pallas_linear_relu(x, w, b, tn=896):
    B, K = x.shape
    N = w.shape[1]
    assert N % tn == 0
    return pl.pallas_call(
        linear_relu_kernel,
        out_shape=jax.ShapeDtypeStruct((B, N), jnp.bfloat16),
        grid=(N // tn,),
        in_specs=[pl.BlockSpec((B, K), lambda j: (0, 0)),     # z stays resident
                  pl.BlockSpec((K, tn), lambda j: (0, j)),    # weight N-tile
                  pl.BlockSpec((1, tn), lambda j: (0, j))],   # bias N-tile
        out_specs=pl.BlockSpec((B, tn), lambda j: (0, j)),
        compiler_params=pltpu.CompilerParams(dimension_semantics=("parallel",)),
    )(x, w, b)


def pallas_conv1(xp, wk, b):
    B, Hp, Wp, Cin = xp.shape                 # (B, 17, 17, 128)
    Cout = wk.shape[-1]                       # 64
    return pl.pallas_call(
        conv1_row_kernel,
        out_shape=(jax.ShapeDtypeStruct((B, 14, 14, Cout), jnp.float32),
                   jax.ShapeDtypeStruct((B, 14, 2, Cout), jnp.float32)),
        grid=(B, 14),
        in_specs=[pl.BlockSpec((1, Hp, Wp, Cin), lambda bi, r: (bi, 0, 0, 0)),
                  pl.BlockSpec((16, Cin, Cout), lambda bi, r: (0, 0, 0)),
                  pl.BlockSpec((1, Cout), lambda bi, r: (0, 0))],
        out_specs=(pl.BlockSpec((1, 1, 14, Cout), lambda bi, r: (bi, r, 0, 0)),
                   pl.BlockSpec((1, 1, 2, Cout), lambda bi, r: (bi, r, 0, 0))),
        compiler_params=pltpu.CompilerParams(
            dimension_semantics=("parallel", "arbitrary")),
    )(xp, wk, b)


def pallas_bn_relu(y, scale, shift):
    B = y.shape[0]
    return pl.pallas_call(
        bn_relu_kernel,
        out_shape=jax.ShapeDtypeStruct(y.shape, jnp.bfloat16),
        grid=(B,),
        in_specs=[pl.BlockSpec((1, 14, 14, 64), lambda bi: (bi, 0, 0, 0)),
                  pl.BlockSpec((1, 64), lambda bi: (0, 0)),
                  pl.BlockSpec((1, 64), lambda bi: (0, 0))],
        out_specs=pl.BlockSpec((1, 14, 14, 64), lambda bi: (bi, 0, 0, 0)),
        compiler_params=pltpu.CompilerParams(dimension_semantics=("parallel",)),
    )(y, scale, shift)


def pallas_conv2_tanh(xp, wk, b):
    B, Hp, Wp, Cin = xp.shape                 # (B, 31, 31, 64)
    Cout = wk.shape[-1]                       # 128 (zero-padded from 1)
    return pl.pallas_call(
        conv2_row_tanh_kernel,
        out_shape=jax.ShapeDtypeStruct((B, 28, 28, Cout), jnp.float32),
        grid=(B, 28),
        in_specs=[pl.BlockSpec((1, Hp, Wp, Cin), lambda bi, r: (bi, 0, 0, 0)),
                  pl.BlockSpec((16, Cin, Cout), lambda bi, r: (0, 0, 0)),
                  pl.BlockSpec((1, Cout), lambda bi, r: (0, 0))],
        out_specs=pl.BlockSpec((1, 1, 28, Cout), lambda bi, r: (bi, r, 0, 0)),
        compiler_params=pltpu.CompilerParams(
            dimension_semantics=("parallel", "arbitrary")),
    )(xp, wk, b)


# ------------------------- JAX glue / parameter prep -------------------------

def dilate_and_pad(x, K=4, stride=2, pad=1):
    """ConvTranspose2d(stride,pad,K) == valid cross-correlation of the flipped
    kernel over the zero-dilated input padded by (K-1-pad) on each side."""
    B, H, W, C = x.shape
    xd = jnp.zeros((B, stride * (H - 1) + 1, stride * (W - 1) + 1, C), x.dtype)
    xd = xd.at[:, ::stride, ::stride, :].set(x)
    p = K - 1 - pad
    return jnp.pad(xd, ((0, 0), (p, p), (p, p), (0, 0)))


def _ct_weight_to_taps(w_pt):
    # (Cin, Cout, KH, KW) -> (KH*KW, Cin, Cout) with spatially flipped kernel.
    K = w_pt.shape[-1]
    wc = jnp.transpose(jnp.flip(w_pt, axis=(2, 3)), (2, 3, 0, 1))  # (KH,KW,Cin,Cout)
    return wc.reshape(K * K, w_pt.shape[0], w_pt.shape[1])


def prepare_params(params):
    """One-time (outside jit) parameter massaging: bf16 GEMM weights, NHWC column
    permutation for the fc layer, tap-major conv weights, lane-padded final layer."""
    # Reorder fc output columns from (c,h,w)-flat to (h,w,c)-flat so the Linear
    # output is directly NHWC (no activation transpose at runtime).
    perm = (jnp.arange(128)[None, None, :] * 49
            + jnp.arange(7)[:, None, None] * 7
            + jnp.arange(7)[None, :, None]).reshape(-1)
    fc_w = params["fc_w"].T[:, perm].astype(jnp.bfloat16)              # (z, 6272)
    fc_b = params["fc_b"][perm].reshape(1, -1).astype(jnp.float32)     # (1, 6272)

    ct1_w = _ct_weight_to_taps(params["ct1_w"]).astype(jnp.bfloat16)   # (16,128,64)
    ct1_b = params["ct1_b"].reshape(1, -1).astype(jnp.float32)         # (1, 64)

    ct2_w = _ct_weight_to_taps(params["ct2_w"])                        # (16, 64, 1)
    ct2_w = jnp.pad(ct2_w, ((0, 0), (0, 0), (0, 127))).astype(jnp.bfloat16)
    ct2_b = jnp.pad(params["ct2_b"], (0, 127)).reshape(1, -1).astype(jnp.float32)

    return {"fc_w": fc_w, "fc_b": fc_b,
            "ct1_w": ct1_w, "ct1_b": ct1_b,
            "bn_g": params["bn_g"].astype(jnp.float32),
            "bn_b": params["bn_b"].astype(jnp.float32),
            "ct2_w": ct2_w, "ct2_b": ct2_b}


def init_params(key, z_dim):
    ks = jax.random.split(key, 6)
    return {
        "fc_w": jax.random.normal(ks[0], (128 * 7 * 7, z_dim), jnp.float32) * 0.05,
        "fc_b": jax.random.normal(ks[1], (128 * 7 * 7,), jnp.float32) * 0.05,
        "ct1_w": jax.random.normal(ks[2], (128, 64, 4, 4), jnp.float32) * 0.05,
        "ct1_b": jax.random.normal(ks[3], (64,), jnp.float32) * 0.05,
        "bn_g": jnp.ones((64,), jnp.float32),
        "bn_b": jnp.zeros((64,), jnp.float32),
        "ct2_w": jax.random.normal(ks[4], (64, 1, 4, 4), jnp.float32) * 0.05,
        "ct2_b": jax.random.normal(ks[5], (1,), jnp.float32) * 0.05,
    }


# ------------------------------- full forward --------------------------------

@jax.jit
def generator_forward(z, prep):
    B = z.shape[0]

    # Linear + ReLU (Pallas, N-tiled grid, bf16 GEMM).  Output is NHWC-flat.
    h = pallas_linear_relu(z.astype(jnp.bfloat16), prep["fc_w"], prep["fc_b"])
    x = h.reshape(B, 7, 7, 128)                       # NHWC, no transpose needed

    # ConvTranspose2d(128->64,4,2,1): dilate+pad glue, then in-kernel 16-tap GEMMs.
    xp1 = dilate_and_pad(x)                           # (B, 17, 17, 128) bf16
    y1, part = pallas_conv1(xp1, prep["ct1_w"], prep["ct1_b"])

    # BatchNorm2d(64): train-mode batch statistics (biased var, eps=1e-5), folded
    # into per-channel scale/shift from the kernel's partial (sum, sum-of-squares).
    # TODO(synk): running_mean/running_var buffer updates (training side effect)
    # are not modeled; only the forward normalization.
    n = B * 14 * 14
    tot = jnp.sum(part, axis=(0, 1))                  # (2, 64)
    mean = tot[0] / n
    var = jnp.maximum(tot[1] / n - mean * mean, 0.0)
    inv = jax.lax.rsqrt(var + 1e-5)
    scale = (prep["bn_g"] * inv).reshape(1, 64)
    shift = (prep["bn_b"] - mean * prep["bn_g"] * inv).reshape(1, 64)

    x2 = pallas_bn_relu(y1, scale, shift)             # (B, 14, 14, 64) bf16

    # ConvTranspose2d(64->1,4,2,1) + Tanh (Cout lane-padded to 128 in the kernel).
    xp2 = dilate_and_pad(x2)                          # (B, 31, 31, 64) bf16
    y2 = pallas_conv2_tanh(xp2, prep["ct2_w"], prep["ct2_b"])   # (B,28,28,128) f32

    # Channel 0 is the real output; NHWC with C=1 reshapes directly to NCHW.
    return y2[..., 0].reshape(B, 1, 28, 28)


if __name__ == "__main__":
    key = jax.random.PRNGKey(0)
    k_param, k_z = jax.random.split(key)

    z_dim = 64
    batch = 2
    params = init_params(k_param, z_dim)
    prep = prepare_params(params)
    z = jax.random.normal(k_z, (batch, z_dim), jnp.float32)

    out = generator_forward(z, prep)
    out = jax.block_until_ready(out)

    assert out.shape == (batch, 1, 28, 28), out.shape
    assert bool(jnp.all(jnp.isfinite(out)))
    assert bool(jnp.all(jnp.abs(out) <= 1.0 + 1e-6))  # tanh range
    print("KERNEL_OK")
</pallas_src>

<mosaic_0001>
module attributes {stable_mosaic.version = 11 : i64} {
  func.func @linear_relu_kernel(%arg0: i32, %arg1: memref<2x64xbf16, #tpu.memory_space<vmem>>, %arg2: memref<64x896xbf16, #tpu.memory_space<vmem>>, %arg3: memref<1x896xf32, #tpu.memory_space<vmem>>, %arg4: memref<2x896xbf16, #tpu.memory_space<vmem>>) attributes {dimension_semantics = [#tpu.dimension_semantics<parallel>], iteration_bounds = array<i64: 7>, scalar_prefetch = 0 : i64, scratch_operands = 0 : i64, tpu.core_type = #tpu.core_type<tc>, window_params = [{pipeline_mode = #tpu.pipeline_mode<synchronous>, transform_indices = @transform_0, window_bounds = array<i64: 2, 64>}, {transform_indices = @transform_1, window_bounds = array<i64: 64, 896>}, {transform_indices = @transform_2, window_bounds = array<i64: 1, 896>}, {transform_indices = @transform_3, window_bounds = array<i64: 2, 896>}]} {
    %c0 = arith.constant 0 : index
    %c0_0 = arith.constant 0 : index
    %0 = vector.load %arg1[%c0, %c0_0] : memref<2x64xbf16, #tpu.memory_space<vmem>>, vector<2x64xbf16>
    %c0_1 = arith.constant 0 : index
    %c0_2 = arith.constant 0 : index
    %1 = vector.load %arg2[%c0_1, %c0_2] : memref<64x896xbf16, #tpu.memory_space<vmem>>, vector<64x896xbf16>
    %cst = arith.constant dense<0.000000e+00> : vector<2x896xf32>
    %2 = tpu.matmul %0, %1, %cst {dimension_numbers = #tpu.dot_dimension_numbers<[1], [0], [0], [1], [0, 0, 1, 1], [], []>} : vector<2x64xbf16>, vector<64x896xbf16>, vector<2x896xf32> -> vector<2x896xf32>
    %c0_3 = arith.constant 0 : index
    %c0_4 = arith.constant 0 : index
    %3 = vector.load %arg3[%c0_3, %c0_4] : memref<1x896xf32, #tpu.memory_space<vmem>>, vector<1x896xf32>
    %4 = vector.broadcast %3 : vector<1x896xf32> to vector<2x896xf32>
    %5 = arith.addf %2, %4 : vector<2x896xf32>
    %cst_5 = arith.constant 0.000000e+00 : f32
    %6 = vector.broadcast %cst_5 : f32 to vector<2x896xf32>
    %7 = arith.maximumf %5, %6 : vector<2x896xf32>
    %8 = arith.truncf %7 : vector<2x896xf32> to vector<2x896xbf16>
    %c0_6 = arith.constant 0 : index
    %c0_7 = arith.constant 0 : index
    %9 = vector.load %arg4[%c0_6, %c0_7] : memref<2x896xbf16, #tpu.memory_space<vmem>>, vector<2x896xbf16>
    tpu.vector_store %arg4[%c0_6, %c0_7], %8 {strides = array<i32>} : memref<2x896xbf16, #tpu.memory_space<vmem>>, vector<2x896xbf16>,
    return
  }
  func.func @transform_0(%arg0: i32) -> (i32, i32) {
    %c0_i32 = arith.constant 0 : i32
    %c0_i32_0 = arith.constant 0 : i32
    %c0_i32_1 = arith.constant 0 : i32
    return %c0_i32, %c0_i32_0 : i32, i32
  }
  func.func @transform_1(%arg0: i32) -> (i32, i32) {
    %c0_i32 = arith.constant 0 : i32
    %c0_i32_0 = arith.constant 0 : i32
    return %c0_i32, %arg0 : i32, i32
  }
  func.func @transform_2(%arg0: i32) -> (i32, i32) {
    %c0_i32 = arith.constant 0 : i32
    %c0_i32_0 = arith.constant 0 : i32
    return %c0_i32, %arg0 : i32, i32
  }
  func.func @transform_3(%arg0: i32) -> (i32, i32) {
    %c0_i32 = arith.constant 0 : i32
    %c0_i32_0 = arith.constant 0 : i32
    return %c0_i32, %arg0 : i32, i32
  }
}

module attributes {stable_mosaic.version = 11 : i64} {
  func.func @conv1_row_kernel(%arg0: i32, %arg1: i32, %arg2: memref<1x17x17x128xbf16, #tpu.memory_space<vmem>>, %arg3: memref<16x128x64xbf16, #tpu.memory_space<vmem>>, %arg4: memref<1x64xf32, #tpu.memory_space<vmem>>, %arg5: memref<1x1x14x64xf32, #tpu.memory_space<vmem>>, %arg6: memref<1x1x2x64xf32, #tpu.memory_space<vmem>>) attributes {dimension_semantics = [#tpu.dimension_semantics<parallel>, #tpu.dimension_semantics<arbitrary>], iteration_bounds = array<i64: 2, 14>, scalar_prefetch = 0 : i64, scratch_operands = 0 : i64, tpu.core_type = #tpu.core_type<tc>, window_params = [{transform_indices = @transform_0, window_bounds = array<i64: 1, 17, 17, 128>}, {pipeline_mode = #tpu.pipeline_mode<synchronous>, transform_indices = @transform_1, window_bounds = array<i64: 16, 128, 64>}, {pipeline_mode = #tpu.pipeline_mode<synchronous>, transform_indices = @transform_2, window_bounds = array<i64: 1, 64>}, {transform_indices = @transform_3, window_bounds = array<i64: 1, 1, 14, 64>}, {transform_indices = @transform_4, window_bounds = array<i64: 1, 1, 2, 64>}]} {
    %cst = arith.constant 0.000000e+00 : f32
    %0 = vector.broadcast %cst : f32 to vector<14x64xf32>
    %c0_i32 = arith.constant 0 : i32
    %1 = arith.addi %arg1, %c0_i32 : i32
    %c0 = arith.constant 0 : index
    %2 = arith.index_cast %1 : i32 to index
    %c0_0 = arith.constant 0 : index
    %c0_1 = arith.constant 0 : index
    %3 = vector.load %arg2[%c0, %2, %c0_0, %c0_1] : memref<1x17x17x128xbf16, #tpu.memory_space<vmem>>, vector<1x1x17x128xbf16>
    %4 = vector.shape_cast %3 : vector<1x1x17x128xbf16> to vector<17x128xbf16>
    %5 = vector.extract_strided_slice %4 {offsets = [0, 0], sizes = [14, 128], strides = [1, 1]} : vector<17x128xbf16> to vector<14x128xbf16>
    %c0_2 = arith.constant 0 : index
    %c0_3 = arith.constant 0 : index
    %c0_4 = arith.constant 0 : index
    %6 = vector.load %arg3[%c0_2, %c0_3, %c0_4] : memref<16x128x64xbf16, #tpu.memory_space<vmem>>, vector<1x128x64xbf16>
    %7 = vector.shape_cast %6 : vector<1x128x64xbf16> to vector<128x64xbf16>
    %cst_5 = arith.constant dense<0.000000e+00> : vector<14x64xf32>
    %8 = tpu.matmul %5, %7, %cst_5 {dimension_numbers = #tpu.dot_dimension_numbers<[1], [0], [0], [1], [0, 0, 1, 1], [], []>} : vector<14x128xbf16>, vector<128x64xbf16>, vector<14x64xf32> -> vector<14x64xf32>
    %9 = arith.addf %0, %8 : vector<14x64xf32>
    %10 = vector.extract_strided_slice %4 {offsets = [1, 0], sizes = [14, 128], strides = [1, 1]} : vector<17x128xbf16> to vector<14x128xbf16>
    %c1 = arith.constant 1 : index
    %c0_6 = arith.constant 0 : index
    %c0_7 = arith.constant 0 : index
    %11 = vector.load %arg3[%c1, %c0_6, %c0_7] : memref<16x128x64xbf16, #tpu.memory_space<vmem>>, vector<1x128x64xbf16>
    %12 = vector.shape_cast %11 : vector<1x128x64xbf16> to vector<128x64xbf16>
    %cst_8 = arith.constant dense<0.000000e+00> : vector<14x64xf32>
    %13 = tpu.matmul %10, %12, %cst_8 {dimension_numbers = #tpu.dot_dimension_numbers<[1], [0], [0], [1], [0, 0, 1, 1], [], []>} : vector<14x128xbf16>, vector<128x64xbf16>, vector<14x64xf32> -> vector<14x64xf32>
    %14 = arith.addf %9, %13 : vector<14x64xf32>
    %15 = vector.extract_strided_slice %4 {offsets = [2, 0], sizes = [14, 128], strides = [1, 1]} : vector<17x128xbf16> to vector<14x128xbf16>
    %c2 = arith.constant 2 : index
    %c0_9 = arith.constant 0 : index
    %c0_10 = arith.constant 0 : index
    %16 = vector.load %arg3[%c2, %c0_9, %c0_10] : memref<16x128x64xbf16, #tpu.memory_space<vmem>>, vector<1x128x64xbf16>
    %17 = vector.shape_cast %16 : vector<1x128x64xbf16> to vector<128x64xbf16>
    %cst_11 = arith.constant dense<0.000000e+00> : vector<14x64xf32>
    %18 = tpu.matmul %15, %17, %cst_11 {dimension_numbers = #tpu.dot_dimension_numbers<[1], [0], [0], [1], [0, 0, 1, 1], [], []>} : vector<14x128xbf16>, vector<128x64xbf16>, vector<14x64xf32> -> vector<14x64xf32>
    %19 = arith.addf %14, %18 : vector<14x64xf32>
    %20 = vector.extract_strided_slice %4 {offsets = [3, 0], sizes = [14, 128], strides = [1, 1]} : vector<17x128xbf16> to vector<14x128xbf16>
    %c3 = arith.constant 3 : index
    %c0_12 = arith.constant 0 : index
    %c0_13 = arith.constant 0 : index
    %21 = vector.load %arg3[%c3, %c0_12, %c0_13] : memref<16x128x64xbf16, #tpu.memory_space<vmem>>, vector<1x128x64xbf16>
    %22 = vector.shape_cast %21 : vector<1x128x64xbf16> to vector<128x64xbf16>
    %cst_14 = arith.constant dense<0.000000e+00> : vector<14x64xf32>
    %23 = tpu.matmul %20, %22, %cst_14 {dimension_numbers = #tpu.dot_dimension_numbers<[1], [0], [0], [1], [0, 0, 1, 1], [], []>} : vector<14x128xbf16>, vector<128x64xbf16>, vector<14x64xf32> -> vector<14x64xf32>
    %24 = arith.addf %19, %23 : vector<14x64xf32>
    %c1_i32 = arith.constant 1 : i32
    %25 = arith.addi %arg1, %c1_i32 : i32
    %c0_15 = arith.constant 0 : index
    %26 = arith.index_cast %25 : i32 to index
    %c0_16 = arith.constant 0 : index
    %c0_17 = arith.constant 0 : index
    %27 = vector.load %arg2[%c0_15, %26, %c0_16, %c0_17] : memref<1x17x17x128xbf16, #tpu.memory_space<vmem>>, vector<1x1x17x128xbf16>
    %28 = vector.shape_cast %27 : vector<1x1x17x128xbf16> to vector<17x128xbf16>
    %29 = vector.extract_strided_slice %28 {offsets = [0, 0], sizes = [14, 128], strides = [1, 1]} : vector<17x128xbf16> to vector<14x128xbf16>
    %c4 = arith.constant 4 : index
    %c0_18 = arith.constant 0 : index
    %c0_19 = arith.constant 0 : index
    %30 = vector.load %arg3[%c4, %c0_18, %c0_19] : memref<16x128x64xbf16, #tpu.memory_space<vmem>>, vector<1x128x64xbf16>
    %31 = vector.shape_cast %30 : vector<1x128x64xbf16> to vector<128x64xbf16>
    %cst_20 = arith.constant dense<0.000000e+00> : vector<14x64xf32>
    %32 = tpu.matmul %29, %31, %cst_20 {dimension_numbers = #tpu.dot_dimension_numbers<[1], [0], [0], [1], [0, 0, 1, 1], [], []>} : vector<14x128xbf16>, vector<128x64xbf16>, vector<14x64xf32> -> vector<14x64xf32>
    %33 = arith.addf %24, %32 : vector<14x64xf32>
    %34 = vector.extract_strided_slice %28 {offsets = [1, 0], sizes = [14, 128], strides = [1, 1]} : vector<17x128xbf16> to vector<14x128xbf16>
    %c5 = arith.constant 5 : index
    %c0_21 = arith.constant 0 : index
    %c0_22 = arith.constant 0 : index
    %35 = vector.load %arg3[%c5, %c0_21, %c0_22] : memref<16x128x64xbf16, #tpu.memory_space<vmem>>, vector<1x128x64xbf16>
    %36 = vector.shape_cast %35 : vector<1x128x64xbf16> to vector<128x64xbf16>
    %cst_23 = arith.constant dense<0.000000e+00> : vector<14x64xf32>
    %37 = tpu.matmul %34, %36, %cst_23 {dimension_numbers = #tpu.dot_dimension_numbers<[1], [0], [0], [1], [0, 0, 1, 1], [], []>} : vector<14x128xbf16>, vector<128x64xbf16>, vector<14x64xf32> -> vector<14x64xf32>
    %38 = arith.addf %33, %37 : vector<14x64xf32>
    %39 = vector.extract_strided_slice %28 {offsets = [2, 0], sizes = [14, 128], strides = [1, 1]} : vector<17x128xbf16> to vector<14x128xbf16>
    %c6 = arith.constant 6 : index
    %c0_24 = arith.constant 0 : index
    %c0_25 = arith.constant 0 : index
    %40 = vector.load %arg3[%c6, %c0_24, %c0_25] : memref<16x128x64xbf16, #tpu.memory_space<vmem>>, vector<1x128x64xbf16>
    %41 = vector.shape_cast %40 : vector<1x128x64xbf16> to vector<128x64xbf16>
    %cst_26 = arith.constant dense<0.000000e+00> : vector<14x64xf32>
    %42 = tpu.matmul %39, %41, %cst_26 {dimension_numbers = #tpu.dot_dimension_numbers<[1], [0], [0], [1], [0, 0, 1, 1], [], []>} : vector<14x128xbf16>, vector<128x64xbf16>, vector<14x64xf32> -> vector<14x64xf32>
    %43 = arith.addf %38, %42 : vector<14x64xf32>
    %44 = vector.extract_strided_slice %28 {offsets = [3, 0], sizes = [14, 128], strides = [1, 1]} : vector<17x128xbf16> to vector<14x128xbf16>
    %c7 = arith.constant 7 : index
    %c0_27 = arith.constant 0 : index
    %c0_28 = arith.constant 0 : index
    %45 = vector.load %arg3[%c7, %c0_27, %c0_28] : memref<16x128x64xbf16, #tpu.memory_space<vmem>>, vector<1x128x64xbf16>
    %46 = vector.shape_cast %45 : vector<1x128x64xbf16> to vector<128x64xbf16>
    %cst_29 = arith.constant dense<0.000000e+00> : vector<14x64xf32>
    %47 = tpu.matmul %44, %46, %cst_29 {dimension_numbers = #tpu.dot_dimension_numbers<[1], [0], [0], [1], [0, 0, 1, 1], [], []>} : vector<14x128xbf16>, vector<128x64xbf16>, vector<14x64xf32> -> vector<14x64xf32>
    %48 = arith.addf %43, %47 : vector<14x64xf32>
    %c2_i32 = arith.constant 2 : i32
    %49 = arith.addi %arg1, %c2_i32 : i32
    %c0_30 = arith.constant 0 : index
    %50 = arith.index_cast %49 : i32 to index
    %c0_31 = arith.constant 0 : index
    %c0_32 = arith.constant 0 : index
    %51 = vector.load %arg2[%c0_30, %50, %c0_31, %c0_32] : memref<1x17x17x128xbf16, #tpu.memory_space<vmem>>, vector<1x1x17x128xbf16>
    %52 = vector.shape_cast %51 : vector<1x1x17x128xbf16> to vector<17x128xbf16>
    %53 = vector.extract_strided_slice %52 {offsets = [0, 0], sizes = [14, 128], strides = [1, 1]} : vector<17x128xbf16> to vector<14x128xbf16>
    %c8 = arith.constant 8 : index
    %c0_33 = arith.constant 0 : index
    %c0_34 = arith.constant 0 : index
    %54 = vector.load %arg3[%c8, %c0_33, %c0_34] : memref<16x128x64xbf16, #tpu.memory_space<vmem>>, vector<1x128x64xbf16>
    %55 = vector.shape_cast %54 : vector<1x128x64xbf16> to vector<128x64xbf16>
    %cst_35 = arith.constant dense<0.000000e+00> : vector<14x64xf32>
    %56 = tpu.matmul %53, %55, %cst_35 {dimension_numbers = #tpu.dot_dimension_numbers<[1], [0], [0], [1], [0, 0, 1, 1], [], []>} : vector<14x128xbf16>, vector<128x64xbf16>, vector<14x64xf32> -> vector<14x64xf32>
    %57 = arith.addf %48, %56 : vector<14x64xf32>
    %58 = vector.extract_strided_slice %52 {offsets = [1, 0], sizes = [14, 128], strides = [1, 1]} : vector<17x128xbf16> to vector<14x128xbf16>
    %c9 = arith.constant 9 : index
    %c0_36 = arith.constant 0 : index
    %c0_37 = arith.constant 0 : index
    %59 = vector.load %arg3[%c9, %c0_36, %c0_37] : memref<16x128x64xbf16, #tpu.memory_space<vmem>>, vector<1x128x64xbf16>
    %60 = vector.shape_cast %59 : vector<1x128x64xbf16> to vector<128x64xbf16>
    %cst_38 = arith.constant dense<0.000000e+00> : vector<14x64xf32>
    %61 = tpu.matmul %58, %60, %cst_38 {dimension_numbers = #tpu.dot_dimension_numbers<[1], [0], [0], [1], [0, 0, 1, 1], [], []>} : vector<14x128xbf16>, vector<128x64xbf16>, vector<14x64xf32> -> vector<14x64xf32>
    %62 = arith.addf %57, %61 : vector<14x64xf32>
    %63 = vector.extract_strided_slice %52 {offsets = [2, 0], sizes = [14, 128], strides = [1, 1]} : vector<17x128xbf16> to vector<14x128xbf16>
    %c10 = arith.constant 10 : index
    %c0_39 = arith.constant 0 : index
    %c0_40 = arith.constant 0 : index
    %64 = vector.load %arg3[%c10, %c0_39, %c0_40] : memref<16x128x64xbf16, #tpu.memory_space<vmem>>, vector<1x128x64xbf16>
    %65 = vector.shape_cast %64 : vector<1x128x64xbf16> to vector<128x64xbf16>
    %cst_41 = arith.constant dense<0.000000e+00> : vector<14x64xf32>
    %66 = tpu.matmul %63, %65, %cst_41 {dimension_numbers = #tpu.dot_dimension_numbers<[1], [0], [0], [1], [0, 0, 1, 1], [], []>} : vector<14x128xbf16>, vector<128x64xbf16>, vector<14x64xf32> -> vector<14x64xf32>
    %67 = arith.addf %62, %66 : vector<14x64xf32>
    %68 = vector.extract_strided_slice %52 {offsets = [3, 0], sizes = [14, 128], strides = [1, 1]} : vector<17x128xbf16> to vector<14x128xbf16>
    %c11 = arith.constant 11 : index
    %c0_42 = arith.constant 0 : index
    %c0_43 = arith.constant 0 : index
    %69 = vector.load %arg3[%c11, %c0_42, %c0_43] : memref<16x128x64xbf16, #tpu.memory_space<vmem>>, vector<1x128x64xbf16>
    %70 = vector.shape_cast %69 : vector<1x128x64xbf16> to vector<128x64xbf16>
    %cst_44 = arith.constant dense<0.000000e+00> : vector<14x64xf32>
    %71 = tpu.matmul %68, %70, %cst_44 {dimension_numbers = #tpu.dot_dimension_numbers<[1], [0], [0], [1], [0, 0, 1, 1], [], []>} : vector<14x128xbf16>, vector<128x64xbf16>, vector<14x64xf32> -> vector<14x64xf32>
    %72 = arith.addf %67, %71 : vector<14x64xf32>
    %c3_i32 = arith.constant 3 : i32
    %73 = arith.addi %arg1, %c3_i32 : i32
    %c0_45 = arith.constant 0 : index
    %74 = arith.index_cast %73 : i32 to index
    %c0_46 = arith.constant 0 : index
    %c0_47 = arith.constant 0 : index
    %75 = vector.load %arg2[%c0_45, %74, %c0_46, %c0_47] : memref<1x17x17x128xbf16, #tpu.memory_space<vmem>>, vector<1x1x17x128xbf16>
    %76 = vector.shape_cast %75 : vector<1x1x17x128xbf16> to vector<17x128xbf16>
    %77 = vector.extract_strided_slice %76 {offsets = [0, 0], sizes = [14, 128], strides = [1, 1]} : vector<17x128xbf16> to vector<14x128xbf16>
    %c12 = arith.constant 12 : index
    %c0_48 = arith.constant 0 : index
    %c0_49 = arith.constant 0 : index
    %78 = vector.load %arg3[%c12, %c0_48, %c0_49] : memref<16x128x64xbf16, #tpu.memory_space<vmem>>, vector<1x128x64xbf16>
    %79 = vector.shape_cast %78 : vector<1x128x64xbf16> to vector<128x64xbf16>
    %cst_50 = arith.constant dense<0.000000e+00> : vector<14x64xf32>
    %80 = tpu.matmul %77, %79, %cst_50 {dimension_numbers = #tpu.dot_dimension_numbers<[1], [0], [0], [1], [0, 0, 1, 1], [], []>} : vector<14x128xbf16>, vector<128x64xbf16>, vector<14x64xf32> -> vector<14x64xf32>
    %81 = arith.addf %72, %80 : vector<14x64xf32>
    %82 = vector.extract_strided_slice %76 {offsets = [1, 0], sizes = [14, 128], strides = [1, 1]} : vector<17x128xbf16> to vector<14x128xbf16>
    %c13 = arith.constant 13 : index
    %c0_51 = arith.constant 0 : index
    %c0_52 = arith.constant 0 : index
    %83 = vector.load %arg3[%c13, %c0_51, %c0_52] : memref<16x128x64xbf16, #tpu.memory_space<vmem>>, vector<1x128x64xbf16>
    %84 = vector.shape_cast %83 : vector<1x128x64xbf16> to vector<128x64xbf16>
    %cst_53 = arith.constant dense<0.000000e+00> : vector<14x64xf32>
    %85 = tpu.matmul %82, %84, %cst_53 {dimension_numbers = #tpu.dot_dimension_numbers<[1], [0], [0], [1], [0, 0, 1, 1], [], []>} : vector<14x128xbf16>, vector<128x64xbf16>, vector<14x64xf32> -> vector<14x64xf32>
    %86 = arith.addf %81, %85 : vector<14x64xf32>
    %87 = vector.extract_strided_slice %76 {offsets = [2, 0], sizes = [14, 128], strides = [1, 1]} : vector<17x128xbf16> to vector<14x128xbf16>
    %c14 = arith.constant 14 : index
    %c0_54 = arith.constant 0 : index
    %c0_55 = arith.constant 0 : index
    %88 = vector.load %arg3[%c14, %c0_54, %c0_55] : memref<16x128x64xbf16, #tpu.memory_space<vmem>>, vector<1x128x64xbf16>
    %89 = vector.shape_cast %88 : vector<1x128x64xbf16> to vector<128x64xbf16>
    %cst_56 = arith.constant dense<0.000000e+00> : vector<14x64xf32>
    %90 = tpu.matmul %87, %89, %cst_56 {dimension_numbers = #tpu.dot_dimension_numbers<[1], [0], [0], [1], [0, 0, 1, 1], [], []>} : vector<14x128xbf16>, vector<128x64xbf16>, vector<14x64xf32> -> vector<14x64xf32>
    %91 = arith.addf %86, %90 : vector<14x64xf32>
    %92 = vector.extract_strided_slice %76 {offsets = [3, 0], sizes = [14, 128], strides = [1, 1]} : vector<17x128xbf16> to vector<14x128xbf16>
    %c15 = arith.constant 15 : index
    %c0_57 = arith.constant 0 : index
    %c0_58 = arith.constant 0 : index
    %93 = vector.load %arg3[%c15, %c0_57, %c0_58] : memref<16x128x64xbf16, #tpu.memory_space<vmem>>, vector<1x128x64xbf16>
    %94 = vector.shape_cast %93 : vector<1x128x64xbf16> to vector<128x64xbf16>
    %cst_59 = arith.constant dense<0.000000e+00> : vector<14x64xf32>
    %95 = tpu.matmul %92, %94, %cst_59 {dimension_numbers = #tpu.dot_dimension_numbers<[1], [0], [0], [1], [0, 0, 1, 1], [], []>} : vector<14x128xbf16>, vector<128x64xbf16>, vector<14x64xf32> -> vector<14x64xf32>
    %96 = arith.addf %91, %95 : vector<14x64xf32>
    %c0_60 = arith.constant 0 : index
    %c0_61 = arith.constant 0 : index
    %97 = vector.load %arg4[%c0_60, %c0_61] : memref<1x64xf32, #tpu.memory_space<vmem>>, vector<1x64xf32>
    %98 = vector.broadcast %97 : vector<1x64xf32> to vector<14x64xf32>
    %99 = arith.addf %96, %98 : vector<14x64xf32>
    %c0_62 = arith.constant 0 : index
    %c0_63 = arith.constant 0 : index
    %c0_64 = arith.constant 0 : index
    %c0_65 = arith.constant 0 : index
    %100 = vector.load %arg5[%c0_62, %c0_63, %c0_64, %c0_65] : memref<1x1x14x64xf32, #tpu.memory_space<vmem>>, vector<1x1x14x64xf32>
    %101 = vector.shape_cast %100 : vector<1x1x14x64xf32> to vector<14x64xf32>
    %102 = vector.shape_cast %99 : vector<14x64xf32> to vector<1x1x14x64xf32>
    tpu.vector_store %arg5[%c0_62, %c0_63, %c0_64, %c0_65], %102 {strides = array<i32>} : memref<1x1x14x64xf32, #tpu.memory_space<vmem>>, vector<1x1x14x64xf32>,
    %cst_66 = arith.constant dense<0.000000e+00> : vector<64xf32>
    %103 = vector.multi_reduction <add>, %99, %cst_66 [0] : vector<14x64xf32> to vector<64xf32>
    %104 = vector.shape_cast %103 : vector<64xf32> to vector<1x64xf32>
    %105 = arith.mulf %99, %99 : vector<14x64xf32>
    %cst_67 = arith.constant dense<0.000000e+00> : vector<64xf32>
    %106 = vector.multi_reduction <add>, %105, %cst_67 [0] : vector<14x64xf32> to vector<64xf32>
    %107 = vector.shape_cast %106 : vector<64xf32> to vector<1x64xf32>
    %108 = tpu.concatenate %104, %107 in 0 : vector<1x64xf32>, vector<1x64xf32> -> vector<2x64xf32>
    %c0_68 = arith.constant 0 : index
    %c0_69 = arith.constant 0 : index
    %c0_70 = arith.constant 0 : index
    %c0_71 = arith.constant 0 : index
    %109 = vector.load %arg6[%c0_68, %c0_69, %c0_70, %c0_71] : memref<1x1x2x64xf32, #tpu.memory_space<vmem>>, vector<1x1x2x64xf32>
    %110 = vector.shape_cast %109 : vector<1x1x2x64xf32> to vector<2x64xf32>
    %111 = vector.shape_cast %108 : vector<2x64xf32> to vector<1x1x2x64xf32>
    tpu.vector_store %arg6[%c0_68, %c0_69, %c0_70, %c0_71], %111 {strides = array<i32>} : memref<1x1x2x64xf32, #tpu.memory_space<vmem>>, vector<1x1x2x64xf32>,
    return
  }
  func.func @transform_0(%arg0: i32, %arg1: i32) -> (i32, i32, i32, i32) {
    %c0_i32 = arith.constant 0 : i32
    %c0_i32_0 = arith.constant 0 : i32
    %c0_i32_1 = arith.constant 0 : i32
    %c0_i32_2 = arith.constant 0 : i32
    return %arg0, %c0_i32, %c0_i32_0, %c0_i32_1 : i32, i32, i32, i32
  }
  func.func @transform_1(%arg0: i32, %arg1: i32) -> (i32, i32, i32) {
    %c0_i32 = arith.constant 0 : i32
    %c0_i32_0 = arith.constant 0 : i32
    %c0_i32_1 = arith.constant 0 : i32
    %c0_i32_2 = arith.constant 0 : i32
    return %c0_i32, %c0_i32_0, %c0_i32_1 : i32, i32, i32
  }
  func.func @transform_2(%arg0: i32, %arg1: i32) -> (i32, i32) {
    %c0_i32 = arith.constant 0 : i32
    %c0_i32_0 = arith.constant 0 : i32
    %c0_i32_1 = arith.constant 0 : i32
    return %c0_i32, %c0_i32_0 : i32, i32
  }
  func.func @transform_3(%arg0: i32, %arg1: i32) -> (i32, i32, i32, i32) {
    %c0_i32 = arith.constant 0 : i32
    %c0_i32_0 = arith.constant 0 : i32
    %c0_i32_1 = arith.constant 0 : i32
    return %arg0, %arg1, %c0_i32, %c0_i32_0 : i32, i32, i32, i32
  }
  func.func @transform_4(%arg0: i32, %arg1: i32) -> (i32, i32, i32, i32) {
    %c0_i32 = arith.constant 0 : i32
    %c0_i32_0 = arith.constant 0 : i32
    %c0_i32_1 = arith.constant 0 : i32
    return %arg0, %arg1, %c0_i32, %c0_i32_0 : i32, i32, i32, i32
  }
}

module attributes {stable_mosaic.version = 11 : i64} {
  func.func @bn_relu_kernel(%arg0: i32, %arg1: memref<1x14x14x64xf32, #tpu.memory_space<vmem>>, %arg2: memref<1x64xf32, #tpu.memory_space<vmem>>, %arg3: memref<1x64xf32, #tpu.memory_space<vmem>>, %arg4: memref<1x14x14x64xbf16, #tpu.memory_space<vmem>>) attributes {dimension_semantics = [#tpu.dimension_semantics<parallel>], iteration_bounds = array<i64: 2>, scalar_prefetch = 0 : i64, scratch_operands = 0 : i64, tpu.core_type = #tpu.core_type<tc>, window_params = [{transform_indices = @transform_0, window_bounds = array<i64: 1, 14, 14, 64>}, {pipeline_mode = #tpu.pipeline_mode<synchronous>, transform_indices = @transform_1, window_bounds = array<i64: 1, 64>}, {pipeline_mode = #tpu.pipeline_mode<synchronous>, transform_indices = @transform_2, window_bounds = array<i64: 1, 64>}, {transform_indices = @transform_3, window_bounds = array<i64: 1, 14, 14, 64>}]} {
    %c0 = arith.constant 0 : index
    %c0_0 = arith.constant 0 : index
    %c0_1 = arith.constant 0 : index
    %c0_2 = arith.constant 0 : index
    %0 = vector.load %arg1[%c0, %c0_0, %c0_1, %c0_2] : memref<1x14x14x64xf32, #tpu.memory_space<vmem>>, vector<1x14x14x64xf32>
    %1 = vector.shape_cast %0 : vector<1x14x14x64xf32> to vector<14x14x64xf32>
    %c0_3 = arith.constant 0 : index
    %c0_4 = arith.constant 0 : index
    %2 = vector.load %arg2[%c0_3, %c0_4] : memref<1x64xf32, #tpu.memory_space<vmem>>, vector<1x64xf32>
    %3 = vector.shape_cast %2 : vector<1x64xf32> to vector<1x1x64xf32>
    %4 = vector.broadcast %3 : vector<1x1x64xf32> to vector<14x14x64xf32>
    %5 = arith.mulf %1, %4 : vector<14x14x64xf32>
    %c0_5 = arith.constant 0 : index
    %c0_6 = arith.constant 0 : index
    %6 = vector.load %arg3[%c0_5, %c0_6] : memref<1x64xf32, #tpu.memory_space<vmem>>, vector<1x64xf32>
    %7 = vector.shape_cast %6 : vector<1x64xf32> to vector<1x1x64xf32>
    %8 = vector.broadcast %7 : vector<1x1x64xf32> to vector<14x14x64xf32>
    %9 = arith.addf %5, %8 : vector<14x14x64xf32>
    %cst = arith.constant 0.000000e+00 : f32
    %10 = vector.broadcast %cst : f32 to vector<14x14x64xf32>
    %11 = arith.maximumf %9, %10 : vector<14x14x64xf32>
    %12 = arith.truncf %11 : vector<14x14x64xf32> to vector<14x14x64xbf16>
    %c0_7 = arith.constant 0 : index
    %c0_8 = arith.constant 0 : index
    %c0_9 = arith.constant 0 : index
    %c0_10 = arith.constant 0 : index
    %13 = vector.load %arg4[%c0_7, %c0_8, %c0_9, %c0_10] : memref<1x14x14x64xbf16, #tpu.memory_space<vmem>>, vector<1x14x14x64xbf16>
    %14 = vector.shape_cast %13 : vector<1x14x14x64xbf16> to vector<14x14x64xbf16>
    %15 = vector.shape_cast %12 : vector<14x14x64xbf16> to vector<1x14x14x64xbf16>
    tpu.vector_store %arg4[%c0_7, %c0_8, %c0_9, %c0_10], %15 {strides = array<i32>} : memref<1x14x14x64xbf16, #tpu.memory_space<vmem>>, vector<1x14x14x64xbf16>,
    return
  }
  func.func @transform_0(%arg0: i32) -> (i32, i32, i32, i32) {
    %c0_i32 = arith.constant 0 : i32
    %c0_i32_0 = arith.constant 0 : i32
    %c0_i32_1 = arith.constant 0 : i32
    %c0_i32_2 = arith.constant 0 : i32
    return %arg0, %c0_i32, %c0_i32_0, %c0_i32_1 : i32, i32, i32, i32
  }
  func.func @transform_1(%arg0: i32) -> (i32, i32) {
    %c0_i32 = arith.constant 0 : i32
    %c0_i32_0 = arith.constant 0 : i32
    %c0_i32_1 = arith.constant 0 : i32
    return %c0_i32, %c0_i32_0 : i32, i32
  }
  func.func @transform_2(%arg0: i32) -> (i32, i32) {
    %c0_i32 = arith.constant 0 : i32
    %c0_i32_0 = arith.constant 0 : i32
    %c0_i32_1 = arith.constant 0 : i32
    return %c0_i32, %c0_i32_0 : i32, i32
  }
  func.func @transform_3(%arg0: i32) -> (i32, i32, i32, i32) {
    %c0_i32 = arith.constant 0 : i32
    %c0_i32_0 = arith.constant 0 : i32
    %c0_i32_1 = arith.constant 0 : i32
    %c0_i32_2 = arith.constant 0 : i32
    return %arg0, %c0_i32, %c0_i32_0, %c0_i32_1 : i32, i32, i32, i32
  }
}

module attributes {stable_mosaic.version = 11 : i64} {
  func.func @conv2_row_tanh_kernel(%arg0: i32, %arg1: i32, %arg2: memref<1x31x31x64xbf16, #tpu.memory_space<vmem>>, %arg3: memref<16x64x128xbf16, #tpu.memory_space<vmem>>, %arg4: memref<1x128xf32, #tpu.memory_space<vmem>>, %arg5: memref<1x1x28x128xf32, #tpu.memory_space<vmem>>) attributes {dimension_semantics = [#tpu.dimension_semantics<parallel>, #tpu.dimension_semantics<arbitrary>], iteration_bounds = array<i64: 2, 28>, scalar_prefetch = 0 : i64, scratch_operands = 0 : i64, tpu.core_type = #tpu.core_type<tc>, window_params = [{transform_indices = @transform_0, window_bounds = array<i64: 1, 31, 31, 64>}, {pipeline_mode = #tpu.pipeline_mode<synchronous>, transform_indices = @transform_1, window_bounds = array<i64: 16, 64, 128>}, {pipeline_mode = #tpu.pipeline_mode<synchronous>, transform_indices = @transform_2, window_bounds = array<i64: 1, 128>}, {transform_indices = @transform_3, window_bounds = array<i64: 1, 1, 28, 128>}]} {
    %cst = arith.constant 0.000000e+00 : f32
    %0 = vector.broadcast %cst : f32 to vector<28x128xf32>
    %c0_i32 = arith.constant 0 : i32
    %1 = arith.addi %arg1, %c0_i32 : i32
    %c0 = arith.constant 0 : index
    %2 = arith.index_cast %1 : i32 to index
    %c0_0 = arith.constant 0 : index
    %c0_1 = arith.constant 0 : index
    %3 = vector.load %arg2[%c0, %2, %c0_0, %c0_1] : memref<1x31x31x64xbf16, #tpu.memory_space<vmem>>, vector<1x1x31x64xbf16>
    %4 = vector.shape_cast %3 : vector<1x1x31x64xbf16> to vector<31x64xbf16>
    %5 = vector.extract_strided_slice %4 {offsets = [0, 0], sizes = [28, 64], strides = [1, 1]} : vector<31x64xbf16> to vector<28x64xbf16>
    %c0_2 = arith.constant 0 : index
    %c0_3 = arith.constant 0 : index
    %c0_4 = arith.constant 0 : index
    %6 = vector.load %arg3[%c0_2, %c0_3, %c0_4] : memref<16x64x128xbf16, #tpu.memory_space<vmem>>, vector<1x64x128xbf16>
    %7 = vector.shape_cast %6 : vector<1x64x128xbf16> to vector<64x128xbf16>
    %cst_5 = arith.constant dense<0.000000e+00> : vector<28x128xf32>
    %8 = tpu.matmul %5, %7, %cst_5 {dimension_numbers = #tpu.dot_dimension_numbers<[1], [0], [0], [1], [0, 0, 1, 1], [], []>} : vector<28x64xbf16>, vector<64x128xbf16>, vector<28x128xf32> -> vector<28x128xf32>
    %9 = arith.addf %0, %8 : vector<28x128xf32>
    %10 = vector.extract_strided_slice %4 {offsets = [1, 0], sizes = [28, 64], strides = [1, 1]} : vector<31x64xbf16> to vector<28x64xbf16>
    %c1 = arith.constant 1 : index
    %c0_6 = arith.constant 0 : index
    %c0_7 = arith.constant 0 : index
    %11 = vector.load %arg3[%c1, %c0_6, %c0_7] : memref<16x64x128xbf16, #tpu.memory_space<vmem>>, vector<1x64x128xbf16>
    %12 = vector.shape_cast %11 : vector<1x64x128xbf16> to vector<64x128xbf16>
    %cst_8 = arith.constant dense<0.000000e+00> : vector<28x128xf32>
    %13 = tpu.matmul %10, %12, %cst_8 {dimension_numbers = #tpu.dot_dimension_numbers<[1], [0], [0], [1], [0, 0, 1, 1], [], []>} : vector<28x64xbf16>, vector<64x128xbf16>, vector<28x128xf32> -> vector<28x128xf32>
    %14 = arith.addf %9, %13 : vector<28x128xf32>
    %15 = vector.extract_strided_slice %4 {offsets = [2, 0], sizes = [28, 64], strides = [1, 1]} : vector<31x64xbf16> to vector<28x64xbf16>
    %c2 = arith.constant 2 : index
    %c0_9 = arith.constant 0 : index
    %c0_10 = arith.constant 0 : index
    %16 = vector.load %arg3[%c2, %c0_9, %c0_10] : memref<16x64x128xbf16, #tpu.memory_space<vmem>>, vector<1x64x128xbf16>
    %17 = vector.shape_cast %16 : vector<1x64x128xbf16> to vector<64x128xbf16>
    %cst_11 = arith.constant dense<0.000000e+00> : vector<28x128xf32>
    %18 = tpu.matmul %15, %17, %cst_11 {dimension_numbers = #tpu.dot_dimension_numbers<[1], [0], [0], [1], [0, 0, 1, 1], [], []>} : vector<28x64xbf16>, vector<64x128xbf16>, vector<28x128xf32> -> vector<28x128xf32>
    %19 = arith.addf %14, %18 : vector<28x128xf32>
    %20 = vector.extract_strided_slice %4 {offsets = [3, 0], sizes = [28, 64], strides = [1, 1]} : vector<31x64xbf16> to vector<28x64xbf16>
    %c3 = arith.constant 3 : index
    %c0_12 = arith.constant 0 : index
    %c0_13 = arith.constant 0 : index
    %21 = vector.load %arg3[%c3, %c0_12, %c0_13] : memref<16x64x128xbf16, #tpu.memory_space<vmem>>, vector<1x64x128xbf16>
    %22 = vector.shape_cast %21 : vector<1x64x128xbf16> to vector<64x128xbf16>
    %cst_14 = arith.constant dense<0.000000e+00> : vector<28x128xf32>
    %23 = tpu.matmul %20, %22, %cst_14 {dimension_numbers = #tpu.dot_dimension_numbers<[1], [0], [0], [1], [0, 0, 1, 1], [], []>} : vector<28x64xbf16>, vector<64x128xbf16>, vector<28x128xf32> -> vector<28x128xf32>
    %24 = arith.addf %19, %23 : vector<28x128xf32>
    %c1_i32 = arith.constant 1 : i32
    %25 = arith.addi %arg1, %c1_i32 : i32
    %c0_15 = arith.constant 0 : index
    %26 = arith.index_cast %25 : i32 to index
    %c0_16 = arith.constant 0 : index
    %c0_17 = arith.constant 0 : index
    %27 = vector.load %arg2[%c0_15, %26, %c0_16, %c0_17] : memref<1x31x31x64xbf16, #tpu.memory_space<vmem>>, vector<1x1x31x64xbf16>
    %28 = vector.shape_cast %27 : vector<1x1x31x64xbf16> to vector<31x64xbf16>
    %29 = vector.extract_strided_slice %28 {offsets = [0, 0], sizes = [28, 64], strides = [1, 1]} : vector<31x64xbf16> to vector<28x64xbf16>
    %c4 = arith.constant 4 : index
    %c0_18 = arith.constant 0 : index
    %c0_19 = arith.constant 0 : index
    %30 = vector.load %arg3[%c4, %c0_18, %c0_19] : memref<16x64x128xbf16, #tpu.memory_space<vmem>>, vector<1x64x128xbf16>
    %31 = vector.shape_cast %30 : vector<1x64x128xbf16> to vector<64x128xbf16>
    %cst_20 = arith.constant dense<0.000000e+00> : vector<28x128xf32>
    %32 = tpu.matmul %29, %31, %cst_20 {dimension_numbers = #tpu.dot_dimension_numbers<[1], [0], [0], [1], [0, 0, 1, 1], [], []>} : vector<28x64xbf16>, vector<64x128xbf16>, vector<28x128xf32> -> vector<28x128xf32>
    %33 = arith.addf %24, %32 : vector<28x128xf32>
    %34 = vector.extract_strided_slice %28 {offsets = [1, 0], sizes = [28, 64], strides = [1, 1]} : vector<31x64xbf16> to vector<28x64xbf16>
    %c5 = arith.constant 5 : index
    %c0_21 = arith.constant 0 : index
    %c0_22 = arith.constant 0 : index
    %35 = vector.load %arg3[%c5, %c0_21, %c0_22] : memref<16x64x128xbf16, #tpu.memory_space<vmem>>, vector<1x64x128xbf16>
    %36 = vector.shape_cast %35 : vector<1x64x128xbf16> to vector<64x128xbf16>
    %cst_23 = arith.constant dense<0.000000e+00> : vector<28x128xf32>
    %37 = tpu.matmul %34, %36, %cst_23 {dimension_numbers = #tpu.dot_dimension_numbers<[1], [0], [0], [1], [0, 0, 1, 1], [], []>} : vector<28x64xbf16>, vector<64x128xbf16>, vector<28x128xf32> -> vector<28x128xf32>
    %38 = arith.addf %33, %37 : vector<28x128xf32>
    %39 = vector.extract_strided_slice %28 {offsets = [2, 0], sizes = [28, 64], strides = [1, 1]} : vector<31x64xbf16> to vector<28x64xbf16>
    %c6 = arith.constant 6 : index
    %c0_24 = arith.constant 0 : index
    %c0_25 = arith.constant 0 : index
    %40 = vector.load %arg3[%c6, %c0_24, %c0_25] : memref<16x64x128xbf16, #tpu.memory_space<vmem>>, vector<1x64x128xbf16>
    %41 = vector.shape_cast %40 : vector<1x64x128xbf16> to vector<64x128xbf16>
    %cst_26 = arith.constant dense<0.000000e+00> : vector<28x128xf32>
    %42 = tpu.matmul %39, %41, %cst_26 {dimension_numbers = #tpu.dot_dimension_numbers<[1], [0], [0], [1], [0, 0, 1, 1], [], []>} : vector<28x64xbf16>, vector<64x128xbf16>, vector<28x128xf32> -> vector<28x128xf32>
    %43 = arith.addf %38, %42 : vector<28x128xf32>
    %44 = vector.extract_strided_slice %28 {offsets = [3, 0], sizes = [28, 64], strides = [1, 1]} : vector<31x64xbf16> to vector<28x64xbf16>
    %c7 = arith.constant 7 : index
    %c0_27 = arith.constant 0 : index
    %c0_28 = arith.constant 0 : index
    %45 = vector.load %arg3[%c7, %c0_27, %c0_28] : memref<16x64x128xbf16, #tpu.memory_space<vmem>>, vector<1x64x128xbf16>
    %46 = vector.shape_cast %45 : vector<1x64x128xbf16> to vector<64x128xbf16>
    %cst_29 = arith.constant dense<0.000000e+00> : vector<28x128xf32>
    %47 = tpu.matmul %44, %46, %cst_29 {dimension_numbers = #tpu.dot_dimension_numbers<[1], [0], [0], [1], [0, 0, 1, 1], [], []>} : vector<28x64xbf16>, vector<64x128xbf16>, vector<28x128xf32> -> vector<28x128xf32>
    %48 = arith.addf %43, %47 : vector<28x128xf32>
    %c2_i32 = arith.constant 2 : i32
    %49 = arith.addi %arg1, %c2_i32 : i32
    %c0_30 = arith.constant 0 : index
    %50 = arith.index_cast %49 : i32 to index
    %c0_31 = arith.constant 0 : index
    %c0_32 = arith.constant 0 : index
    %51 = vector.load %arg2[%c0_30, %50, %c0_31, %c0_32] : memref<1x31x31x64xbf16, #tpu.memory_space<vmem>>, vector<1x1x31x64xbf16>
    %52 = vector.shape_cast %51 : vector<1x1x31x64xbf16> to vector<31x64xbf16>
    %53 = vector.extract_strided_slice %52 {offsets = [0, 0], sizes = [28, 64], strides = [1, 1]} : vector<31x64xbf16> to vector<28x64xbf16>
    %c8 = arith.constant 8 : index
    %c0_33 = arith.constant 0 : index
    %c0_34 = arith.constant 0 : index
    %54 = vector.load %arg3[%c8, %c0_33, %c0_34] : memref<16x64x128xbf16, #tpu.memory_space<vmem>>, vector<1x64x128xbf16>
    %55 = vector.shape_cast %54 : vector<1x64x128xbf16> to vector<64x128xbf16>
    %cst_35 = arith.constant dense<0.000000e+00> : vector<28x128xf32>
    %56 = tpu.matmul %53, %55, %cst_35 {dimension_numbers = #tpu.dot_dimension_numbers<[1], [0], [0], [1], [0, 0, 1, 1], [], []>} : vector<28x64xbf16>, vector<64x128xbf16>, vector<28x128xf32> -> vector<28x128xf32>
    %57 = arith.addf %48, %56 : vector<28x128xf32>
    %58 = vector.extract_strided_slice %52 {offsets = [1, 0], sizes = [28, 64], strides = [1, 1]} : vector<31x64xbf16> to vector<28x64xbf16>
    %c9 = arith.constant 9 : index
    %c0_36 = arith.constant 0 : index
    %c0_37 = arith.constant 0 : index
    %59 = vector.load %arg3[%c9, %c0_36, %c0_37] : memref<16x64x128xbf16, #tpu.memory_space<vmem>>, vector<1x64x128xbf16>
    %60 = vector.shape_cast %59 : vector<1x64x128xbf16> to vector<64x128xbf16>
    %cst_38 = arith.constant dense<0.000000e+00> : vector<28x128xf32>
    %61 = tpu.matmul %58, %60, %cst_38 {dimension_numbers = #tpu.dot_dimension_numbers<[1], [0], [0], [1], [0, 0, 1, 1], [], []>} : vector<28x64xbf16>, vector<64x128xbf16>, vector<28x128xf32> -> vector<28x128xf32>
    %62 = arith.addf %57, %61 : vector<28x128xf32>
    %63 = vector.extract_strided_slice %52 {offsets = [2, 0], sizes = [28, 64], strides = [1, 1]} : vector<31x64xbf16> to vector<28x64xbf16>
    %c10 = arith.constant 10 : index
    %c0_39 = arith.constant 0 : index
    %c0_40 = arith.constant 0 : index
    %64 = vector.load %arg3[%c10, %c0_39, %c0_40] : memref<16x64x128xbf16, #tpu.memory_space<vmem>>, vector<1x64x128xbf16>
    %65 = vector.shape_cast %64 : vector<1x64x128xbf16> to vector<64x128xbf16>
    %cst_41 = arith.constant dense<0.000000e+00> : vector<28x128xf32>
    %66 = tpu.matmul %63, %65, %cst_41 {dimension_numbers = #tpu.dot_dimension_numbers<[1], [0], [0], [1], [0, 0, 1, 1], [], []>} : vector<28x64xbf16>, vector<64x128xbf16>, vector<28x128xf32> -> vector<28x128xf32>
    %67 = arith.addf %62, %66 : vector<28x128xf32>
    %68 = vector.extract_strided_slice %52 {offsets = [3, 0], sizes = [28, 64], strides = [1, 1]} : vector<31x64xbf16> to vector<28x64xbf16>
    %c11 = arith.constant 11 : index
    %c0_42 = arith.constant 0 : index
    %c0_43 = arith.constant 0 : index
    %69 = vector.load %arg3[%c11, %c0_42, %c0_43] : memref<16x64x128xbf16, #tpu.memory_space<vmem>>, vector<1x64x128xbf16>
    %70 = vector.shape_cast %69 : vector<1x64x128xbf16> to vector<64x128xbf16>
    %cst_44 = arith.constant dense<0.000000e+00> : vector<28x128xf32>
    %71 = tpu.matmul %68, %70, %cst_44 {dimension_numbers = #tpu.dot_dimension_numbers<[1], [0], [0], [1], [0, 0, 1, 1], [], []>} : vector<28x64xbf16>, vector<64x128xbf16>, vector<28x128xf32> -> vector<28x128xf32>
    %72 = arith.addf %67, %71 : vector<28x128xf32>
    %c3_i32 = arith.constant 3 : i32
    %73 = arith.addi %arg1, %c3_i32 : i32
    %c0_45 = arith.constant 0 : index
    %74 = arith.index_cast %73 : i32 to index
    %c0_46 = arith.constant 0 : index
    %c0_47 = arith.constant 0 : index
    %75 = vector.load %arg2[%c0_45, %74, %c0_46, %c0_47] : memref<1x31x31x64xbf16, #tpu.memory_space<vmem>>, vector<1x1x31x64xbf16>
    %76 = vector.shape_cast %75 : vector<1x1x31x64xbf16> to vector<31x64xbf16>
    %77 = vector.extract_strided_slice %76 {offsets = [0, 0], sizes = [28, 64], strides = [1, 1]} : vector<31x64xbf16> to vector<28x64xbf16>
    %c12 = arith.constant 12 : index
    %c0_48 = arith.constant 0 : index
    %c0_49 = arith.constant 0 : index
    %78 = vector.load %arg3[%c12, %c0_48, %c0_49] : memref<16x64x128xbf16, #tpu.memory_space<vmem>>, vector<1x64x128xbf16>
    %79 = vector.shape_cast %78 : vector<1x64x128xbf16> to vector<64x128xbf16>
    %cst_50 = arith.constant dense<0.000000e+00> : vector<28x128xf32>
    %80 = tpu.matmul %77, %79, %cst_50 {dimension_numbers = #tpu.dot_dimension_numbers<[1], [0], [0], [1], [0, 0, 1, 1], [], []>} : vector<28x64xbf16>, vector<64x128xbf16>, vector<28x128xf32> -> vector<28x128xf32>
    %81 = arith.addf %72, %80 : vector<28x128xf32>
    %82 = vector.extract_strided_slice %76 {offsets = [1, 0], sizes = [28, 64], strides = [1, 1]} : vector<31x64xbf16> to vector<28x64xbf16>
    %c13 = arith.constant 13 : index
    %c0_51 = arith.constant 0 : index
    %c0_52 = arith.constant 0 : index
    %83 = vector.load %arg3[%c13, %c0_51, %c0_52] : memref<16x64x128xbf16, #tpu.memory_space<vmem>>, vector<1x64x128xbf16>
    %84 = vector.shape_cast %83 : vector<1x64x128xbf16> to vector<64x128xbf16>
    %cst_53 = arith.constant dense<0.000000e+00> : vector<28x128xf32>
    %85 = tpu.matmul %82, %84, %cst_53 {dimension_numbers = #tpu.dot_dimension_numbers<[1], [0], [0], [1], [0, 0, 1, 1], [], []>} : vector<28x64xbf16>, vector<64x128xbf16>, vector<28x128xf32> -> vector<28x128xf32>
    %86 = arith.addf %81, %85 : vector<28x128xf32>
    %87 = vector.extract_strided_slice %76 {offsets = [2, 0], sizes = [28, 64], strides = [1, 1]} : vector<31x64xbf16> to vector<28x64xbf16>
    %c14 = arith.constant 14 : index
    %c0_54 = arith.constant 0 : index
    %c0_55 = arith.constant 0 : index
    %88 = vector.load %arg3[%c14, %c0_54, %c0_55] : memref<16x64x128xbf16, #tpu.memory_space<vmem>>, vector<1x64x128xbf16>
    %89 = vector.shape_cast %88 : vector<1x64x128xbf16> to vector<64x128xbf16>
    %cst_56 = arith.constant dense<0.000000e+00> : vector<28x128xf32>
    %90 = tpu.matmul %87, %89, %cst_56 {dimension_numbers = #tpu.dot_dimension_numbers<[1], [0], [0], [1], [0, 0, 1, 1], [], []>} : vector<28x64xbf16>, vector<64x128xbf16>, vector<28x128xf32> -> vector<28x128xf32>
    %91 = arith.addf %86, %90 : vector<28x128xf32>
    %92 = vector.extract_strided_slice %76 {offsets = [3, 0], sizes = [28, 64], strides = [1, 1]} : vector<31x64xbf16> to vector<28x64xbf16>
    %c15 = arith.constant 15 : index
    %c0_57 = arith.constant 0 : index
    %c0_58 = arith.constant 0 : index
    %93 = vector.load %arg3[%c15, %c0_57, %c0_58] : memref<16x64x128xbf16, #tpu.memory_space<vmem>>, vector<1x64x128xbf16>
    %94 = vector.shape_cast %93 : vector<1x64x128xbf16> to vector<64x128xbf16>
    %cst_59 = arith.constant dense<0.000000e+00> : vector<28x128xf32>
    %95 = tpu.matmul %92, %94, %cst_59 {dimension_numbers = #tpu.dot_dimension_numbers<[1], [0], [0], [1], [0, 0, 1, 1], [], []>} : vector<28x64xbf16>, vector<64x128xbf16>, vector<28x128xf32> -> vector<28x128xf32>
    %96 = arith.addf %91, %95 : vector<28x128xf32>
    %c0_60 = arith.constant 0 : index
    %c0_61 = arith.constant 0 : index
    %97 = vector.load %arg4[%c0_60, %c0_61] : memref<1x128xf32, #tpu.memory_space<vmem>>, vector<1x128xf32>
    %98 = vector.broadcast %97 : vector<1x128xf32> to vector<28x128xf32>
    %99 = arith.addf %96, %98 : vector<28x128xf32>
    %100 = math.tanh %99 : vector<28x128xf32>
    %c0_62 = arith.constant 0 : index
    %c0_63 = arith.constant 0 : index
    %c0_64 = arith.constant 0 : index
    %c0_65 = arith.constant 0 : index
    %101 = vector.load %arg5[%c0_62, %c0_63, %c0_64, %c0_65] : memref<1x1x28x128xf32, #tpu.memory_space<vmem>>, vector<1x1x28x128xf32>
    %102 = vector.shape_cast %101 : vector<1x1x28x128xf32> to vector<28x128xf32>
    %103 = vector.shape_cast %100 : vector<28x128xf32> to vector<1x1x28x128xf32>
    tpu.vector_store %arg5[%c0_62, %c0_63, %c0_64, %c0_65], %103 {strides = array<i32>} : memref<1x1x28x128xf32, #tpu.memory_space<vmem>>, vector<1x1x28x128xf32>,
    return
  }
  func.func @transform_0(%arg0: i32, %arg1: i32) -> (i32, i32, i32, i32) {
    %c0_i32 = arith.constant 0 : i32
    %c0_i32_0 = arith.constant 0 : i32
    %c0_i32_1 = arith.constant 0 : i32
    %c0_i32_2 = arith.constant 0 : i32
    return %arg0, %c0_i32, %c0_i32_0, %c0_i32_1 : i32, i32, i32, i32
  }
  func.func @transform_1(%arg0: i32, %arg1: i32) -> (i32, i32, i32) {
    %c0_i32 = arith.constant 0 : i32
    %c0_i32_0 = arith.constant 0 : i32
    %c0_i32_1 = arith.constant 0 : i32
    %c0_i32_2 = arith.constant 0 : i32
    return %c0_i32, %c0_i32_0, %c0_i32_1 : i32, i32, i32
  }
  func.func @transform_2(%arg0: i32, %arg1: i32) -> (i32, i32) {
    %c0_i32 = arith.constant 0 : i32
    %c0_i32_0 = arith.constant 0 : i32
    %c0_i32_1 = arith.constant 0 : i32
    return %c0_i32, %c0_i32_0 : i32, i32
  }
  func.func @transform_3(%arg0: i32, %arg1: i32) -> (i32, i32, i32, i32) {
    %c0_i32 = arith.constant 0 : i32
    %c0_i32_0 = arith.constant 0 : i32
    %c0_i32_1 = arith.constant 0 : i32
    return %arg0, %arg1, %c0_i32, %c0_i32_0 : i32, i32, i32, i32
  }
}

</mosaic_0001>

<llo_original>
// kernel: generator_forward.4
$region0: #{generator_forward.4}
  #allocation0 [shape = 'u32[]', space=smem, size = 0x4, offset = 0x4, fixed_abs, tag = 'smem constant byte address 0x4 - core index']
  #allocation1 [shape = 'u32[144,128]{1,0:T(1,128)}', space=vmem, size = 0x12000, scoped, tag = 'internal scratch']
  %s0 = inlined_call_operand.vmem [shape: bf16[2,64], index: 0, kind: input, shape index: {}]
  %s1 = inlined_call_operand.hbm [shape: bf16[64,6272], index: 1, kind: input, shape index: {}]
  %s2 = inlined_call_operand.vmem [shape: f32[1,6272], index: 2, kind: input, shape index: {}]
  %s3 = inlined_call_operand.vmem [shape: bf16[2,6272], index: 3, kind: output, shape index: {}]
  %s4 = sld [smem:[#allocation0]]
  $region49: #{generator_forward.4} parent=0
    _
  %s6 = ssub.s32 1, %s4
  %s7 = scalar_select 0, %s6, %s4
  $region1: #{generator_forward.4} parent=0
    #allocation2 [shape = 'u8[229376]{0}', space=vmem, size = 0x38000, scoped, tag = 'input window, operand 1']
    #allocation3 [shape = 's32[2]{0}', space=sflag, size = 0x8, scoped, tag = 'scoped memory for generator_forward.4']
    %8 = vsyncpa [#allocation3], 0
    %s9 = scalar_lea.sflag [#allocation3], 1
    %10 = vsyncpa %s9, 0
    loop: start=0, step=1, limit=9
    $region2: #{generator_forward.4} parent=1 // loop_pre_header
      _
    $region3: #{generator_forward.4} parent=1 // loop_header
      %s12 = sphi 0, %s16
      %p13 = scmp.ge.s32.totalorder %s12, 9
      %s20 = sphi 0, %s20
      %s22 = sphi 0, %s20
      %s23 = sphi 0, %s22
      %s37 = sphi 0, %s23
      %s43 = sphi 0, %s45
      %s46 = sphi 0, %s43
      %s47 = sphi 0, %s46
      %s63 = sphi 0, %s47
      %s69 = sphi 0, %s71
      %s72 = sphi 0, %s69
      %s73 = sphi 0, %s72
      %s89 = sphi 0, %s73
      %s95 = sphi 0, %s97
      %s98 = sphi 0, %s95
      %s99 = sphi 0, %s98
      %s115 = sphi 0, %s99
    $region4: #{generator_forward.4} parent=1 // loop_header_branch
      %15 = sbr.rel (%p13) target = $region8
    $region5: #{generator_forward.4} parent=1 // loop_body
      %s17 = ssub.s32 %s12, 1
      %s18 = ssub.s32 %s12, 2
      %s19 = sadd.s32 %s12, 1
      %s21 = sadd.s32 %s20, 1
      %p24 = scmp.eq.s32.totalorder %s12, 6
      %p25 = scmp.ne.s32.totalorder %s20, %s22
      %p26 = scmp.eq.s32.totalorder %s12, 0
      %p27 = por %p25, %p26
      %p28 = scmp.ne.s32.totalorder %s20, %s22
      %p29 = scmp.eq.s32.totalorder %s17, 6
      %p30 = por %p28, %p29
      %p31 = scmp.ne.s32.totalorder %s22, %s23
      %p32 = scmp.eq.s32.totalorder %s17, 0
      %p33 = por %p31, %p32
      %p34 = scmp.ne.s32.totalorder %s22, %s23
      %p35 = scmp.eq.s32.totalorder %s18, 6
      %p36 = por %p34, %p35
      %p38 = scmp.ne.s32.totalorder %s23, %s37
      %p39 = scmp.eq.s32.totalorder %s18, 0
      %p40 = por %p38, %p39
      %s41 = ssub.s32 %s12, %s19
      %p42 = scmp.eq.s32.totalorder %s41, 0
      %s44 = sadd.s32 %s43, 1
      %s45 = scalar_select %p42, %s43, %s44
      %p48 = pneg %p42
      %p49 = scmp.eq.s32.totalorder %s12, 6
      %p50 = por %p48, %p49
      %p51 = scmp.ne.s32.totalorder %s43, %s46
      %p52 = scmp.eq.s32.totalorder %s12, 0
      %p53 = por %p51, %p52
      %p54 = scmp.ne.s32.totalorder %s43, %s46
      %p55 = scmp.eq.s32.totalorder %s17, 6
      %p56 = por %p54, %p55
      %p57 = scmp.ne.s32.totalorder %s46, %s47
      %p58 = scmp.eq.s32.totalorder %s17, 0
      %p59 = por %p57, %p58
      %p60 = scmp.ne.s32.totalorder %s46, %s47
      %p61 = scmp.eq.s32.totalorder %s18, 6
      %p62 = por %p60, %p61
      %p64 = scmp.ne.s32.totalorder %s47, %s63
      %p65 = scmp.eq.s32.totalorder %s18, 0
      %p66 = por %p64, %p65
      %s67 = ssub.s32 %s12, %s19
      %p68 = scmp.eq.s32.totalorder %s67, 0
      %s70 = sadd.s32 %s69, 1
      %s71 = scalar_select %p68, %s69, %s70
      %p74 = pneg %p68
      %p75 = scmp.eq.s32.totalorder %s12, 6
      %p76 = por %p74, %p75
      %p77 = scmp.ne.s32.totalorder %s69, %s72
      %p78 = scmp.eq.s32.totalorder %s12, 0
      %p79 = por %p77, %p78
      %p80 = scmp.ne.s32.totalorder %s69, %s72
      %p81 = scmp.eq.s32.totalorder %s17, 6
      %p82 = por %p80, %p81
      %p83 = scmp.ne.s32.totalorder %s72, %s73
      %p84 = scmp.eq.s32.totalorder %s17, 0
      %p85 = por %p83, %p84
      %p86 = scmp.ne.s32.totalorder %s72, %s73
      %p87 = scmp.eq.s32.totalorder %s18, 6
      %p88 = por %p86, %p87
      %p90 = scmp.ne.s32.totalorder %s73, %s89
      %p91 = scmp.eq.s32.totalorder %s18, 0
      %p92 = por %p90, %p91
      %s93 = ssub.s32 %s12, %s19
      %p94 = scmp.eq.s32.totalorder %s93, 0
      %s96 = sadd.s32 %s95, 1
      %s97 = scalar_select %p94, %s95, %s96
      %p100 = pneg %p94
      %p101 = scmp.eq.s32.totalorder %s12, 6
      %p102 = por %p100, %p101
      %p103 = scmp.ne.s32.totalorder %s95, %s98
      %p104 = scmp.eq.s32.totalorder %s12, 0
      %p105 = por %p103, %p104
      %p106 = scmp.ne.s32.totalorder %s95, %s98
      %p107 = scmp.eq.s32.totalorder %s17, 6
      %p108 = por %p106, %p107
      %p109 = scmp.ne.s32.totalorder %s98, %s99
      %p110 = scmp.eq.s32.totalorder %s17, 0
      %p111 = por %p109, %p110
      %p112 = scmp.ne.s32.totalorder %s98, %s99
      %p113 = scmp.eq.s32.totalorder %s18, 6
      %p114 = por %p112, %p113
      %p116 = scmp.ne.s32.totalorder %s99, %s115
      %p117 = scmp.eq.s32.totalorder %s18, 0
      %p118 = por %p116, %p117
      %p119 = scmp.le.s32.totalorder 1, %s12
      %p120 = scmp.lt.s32.totalorder %s12, 8
      %p121 = pnand %p119, %p120
      %p122 = pneg %p121
      // Predicated region
      $region9: #{generator_forward.4} parent=5 // pred_check
        _
      $region10: #{generator_forward.4} parent=5 // pred_check_branch
        %124 = sbr.rel (%p121) target = $region12
      $region11: #{generator_forward.4} parent=5 // pred_region
        %s125 = ssub.s32 %s12, 1
        // Predicated region
        $region13: #{generator_forward.4} parent=11 // pred_check
          %p126 = pneg %p33
        $region14: #{generator_forward.4} parent=11 // pred_check_branch
          %128 = sbr.rel (%p126) target = $region16
        $region15: #{generator_forward.4} parent=11 // pred_region
          _
        $region16: #{generator_forward.4} parent=11 // pred_fallthru
          _
      $region12: #{generator_forward.4} parent=5 // pred_fallthru
        _
      %p129 = scmp.lt.s32.totalorder %s12, 7
      // Predicated region
      $region17: #{generator_forward.4} parent=5 // pred_check
        %p130 = pneg %p129
      $region18: #{generator_forward.4} parent=5 // pred_check_branch
        %132 = sbr.rel (%p130) target = $region20
      $region19: #{generator_forward.4} parent=5 // pred_region
        // Predicated region
        $region21: #{generator_forward.4} parent=19 // pred_check
          %p133 = pneg %p53
        $region22: #{generator_forward.4} parent=19 // pred_check_branch
          %135 = sbr.rel (%p133) target = $region24
        $region23: #{generator_forward.4} parent=19 // pred_region
          %s136 = sand.u32 %s43, 1
          %s137 = scalar_lea.sflag [#allocation3], %s136
          %s138 = sand.u32 %s43, 1
          %s139 = smul.addr %s138, 224
          %s140 = scalar_lea.vmem [#allocation2], %s139
          %s141 = smul.u32 7, %s12
          %s143 = ssub.s32 3584, 3584
          %144 = vsyncadd %s137, %s143
          %s145 = smul.addr %s141, 64
          %s146 = scalar_lea.hbm %s1, %s145
          %s147 = sshll.u32 %s140, 4
          %s148 = int_to_ptr.vmem [resolvable:$true] %s147
          %153 = dma.hbm_to_vmem [thread:$0]  %s146, 3584, %s148, %s137, 3136, 448, 28
        $region24: #{generator_forward.4} parent=19 // pred_fallthru
          _
        // Predicated region
        $region25: #{generator_forward.4} parent=19 // pred_check
          %p154 = pneg %p79
        $region26: #{generator_forward.4} parent=19 // pred_check_branch
          %156 = sbr.rel (%p154) target = $region28
        $region27: #{generator_forward.4} parent=19 // pred_region
          %s157 = smul.u32 7, %s12
          %p158 = scmp.lt.s32.totalorder %s157, 48
          %s159 = scalar_select %p158, %s157, 48
          %s160 = scalar_lea.vmem %s2, %s159
          %s161 = smul.u32 7, %s12
        $region28: #{generator_forward.4} parent=19 // pred_fallthru
          _
      $region20: #{generator_forward.4} parent=5 // pred_fallthru
        _
      %p162 = scmp.le.s32.totalorder 1, %s12
      %p163 = scmp.lt.s32.totalorder %s12, 8
      %p164 = pnand %p162, %p163
      %p165 = pneg %p164
      // Predicated region
      $region29: #{generator_forward.4} parent=5 // pred_check
        _
      $region30: #{generator_forward.4} parent=5 // pred_check_branch
        %167 = sbr.rel (%p164) target = $region32
      $region31: #{generator_forward.4} parent=5 // pred_region
        %s168 = ssub.s32 %s12, 1
        %s169 = sand.u32 %s46, 1
        %s170 = scalar_lea.sflag [#allocation3], %s169
        %s171 = sand.u32 %s46, 1
        %s172 = smul.addr %s171, 224
        %s173 = scalar_lea.vmem [#allocation2], %s172
        // Predicated region
        $region33: #{generator_forward.4} parent=31 // pred_check
          %p174 = pneg %p59
        $region34: #{generator_forward.4} parent=31 // pred_check_branch
          %176 = sbr.rel (%p174) target = $region36
        $region35: #{generator_forward.4} parent=31 // pred_region
          %177 = dma.done %s170, 3584
        $region36: #{generator_forward.4} parent=31 // pred_fallthru
          _
        %p178 = pneg %p33
        %p179 = pneg %p30
        %s180 = sand.u32 %s46, 1
        %s181 = scalar_lea.sflag [#allocation3], %s180
        %s182 = sand.u32 %s46, 1
        %s183 = smul.addr %s182, 224
        %s184 = scalar_lea.vmem [#allocation2], %s183
        %p185 = pneg %p59
        %p186 = pneg %p56
        %s187 = smul.u32 7, %s17
        %p188 = scmp.lt.s32.totalorder %s187, 48
        %s189 = scalar_select %p188, %s187, 48
        %s190 = scalar_lea.vmem %s2, %s189
        %p191 = pneg %p85
        %p192 = pneg %p82
        %p193 = pneg %p111
        %p194 = pneg %p108
        %s195 = smul.u32 7, %s17
        %p196 = scmp.lt.s32.totalorder %s195, 48
        %s197 = scalar_select %p196, %s195, 48
        %s198 = scalar_lea.vmem %s3, %s197
        %s199 = smul.u32 7, %s17
        %s200 = smul.u32 7, %s17
        %p201 = scmp.lt.s32.totalorder %s200, 48
        %s202 = scalar_select %p201, %s200, 48
        %s203 = scalar_lea.vmem %s2, %s202
        %s204 = smul.u32 7, %s17
        %s205 = smul.u32 7, %s17
        %p206 = scmp.lt.s32.totalorder %s205, 48
        %s207 = scalar_select %p206, %s205, 48
        %s208 = scalar_lea.vmem %s3, %s207
        %s209 = smul.u32 7, %s17
        %v211 = vld [vmem:[%s0] sm:$0x1]
        %v212 = vld [vmem:[%s173] sm:$0xff]
        %v213 = vld [vmem:[%s173 + $0x8] sm:$0xff]
        %v214 = vld [vmem:[%s173 + $0x10] sm:$0xff]
        %v215 = vld [vmem:[%s173 + $0x18] sm:$0xf]
        %v216 = vld [vmem:[%s173 + $0x1c] sm:$0xff]
        %v217 = vld [vmem:[%s173 + $0x24] sm:$0xff]
        %v218 = vld [vmem:[%s173 + $0x2c] sm:$0xff]
        %v219 = vld [vmem:[%s173 + $0x34] sm:$0xf]
        %v220 = vld [vmem:[%s173 + $0x38] sm:$0xff]
        %v221 = vld [vmem:[%s173 + $0x40] sm:$0xff]
        %v222 = vld [vmem:[%s173 + $0x48] sm:$0xff]
        %v223 = vld [vmem:[%s173 + $0x50] sm:$0xf]
        %v224 = vld [vmem:[%s173 + $0x54] sm:$0xff]
        %v225 = vld [vmem:[%s173 + $0x5c] sm:$0xff]
        %v226 = vld [vmem:[%s173 + $0x64] sm:$0xff]
        %v227 = vld [vmem:[%s173 + $0x6c] sm:$0xf]
        %v228 = vld [vmem:[%s173 + $0x70] sm:$0xff]
        %v229 = vld [vmem:[%s173 + $0x78] sm:$0xff]
        %v230 = vld [vmem:[%s173 + $0x80] sm:$0xff]
        %v231 = vld [vmem:[%s173 + $0x88] sm:$0xf]
        %v232 = vld [vmem:[%s173 + $0x8c] sm:$0xff]
        %v233 = vld [vmem:[%s173 + $0x94] sm:$0xff]
        %v234 = vld [vmem:[%s173 + $0x9c] sm:$0xff]
        %v235 = vld [vmem:[%s173 + $0xa4] sm:$0xf]
        %v236 = vld [vmem:[%s173 + $0xa8] sm:$0xff]
        %v237 = vld [vmem:[%s173 + $0xb0] sm:$0xff]
        %v238 = vld [vmem:[%s173 + $0xb8] sm:$0xff]
        %v239 = vld [vmem:[%s173 + $0xc0] sm:$0xf]
        %v240 = vld [vmem:[%s173 + $0xc4] sm:$0xff]
        %v241 = vld [vmem:[%s173 + $0xcc] sm:$0xff]
        %v242 = vld [vmem:[%s173 + $0xd4] sm:$0xff]
        %v243 = vld [vmem:[%s173 + $0xdc] sm:$0xf]
        %v244 = vld [vmem:[%s203] sm:$0xff]
        %v246 = vlaneseq
        %v247 = vshrl.u32 %v246, 7
        %v248 = vsub.s32 0, %v247
        %v249 = vrot.slane %v244, %v248
        %v250 = vlaneseq
        %v251 = vshrl.u32 %v250, 7
        %v252 = vsub.s32 1, %v251
        %v253 = vrot.slane %v244, %v252
        %v254 = vlaneseq
        %v255 = vshrl.u32 %v254, 7
        %v256 = vsub.s32 2, %v255
        %v257 = vrot.slane %v244, %v256
        %v258 = vlaneseq
        %v259 = vshrl.u32 %v258, 7
        %v260 = vsub.s32 3, %v259
        %v261 = vrot.slane %v244, %v260
        %v262 = vlaneseq
        %v263 = vshrl.u32 %v262, 7
        %v264 = vsub.s32 4, %v263
        %v265 = vrot.slane %v244, %v264
        %v266 = vlaneseq
        %v267 = vshrl.u32 %v266, 7
        %v268 = vsub.s32 5, %v267
        %v269 = vrot.slane %v244, %v268
        %v270 = vlaneseq
        %v271 = vshrl.u32 %v270, 7
        %v272 = vsub.s32 6, %v271
        %v273 = vrot.slane %v244, %v272
        %v313 = vunpack.c.l.b16 %v212
        %v314 = vunpack.c.h.b16 %v212
        %v315 = vunpack.c.l.b16 %v213
        %v316 = vunpack.c.h.b16 %v213
        %v317 = vunpack.c.l.b16 %v214
        %v318 = vunpack.c.h.b16 %v214
        %v319 = vunpack.c.l.b16 %v215
        %v320 = vunpack.c.l.b16 %v216
        %v321 = vunpack.c.h.b16 %v216
        %v322 = vunpack.c.l.b16 %v217
        %v323 = vunpack.c.h.b16 %v217
        %v324 = vunpack.c.l.b16 %v218
        %v325 = vunpack.c.h.b16 %v218
        %v326 = vunpack.c.l.b16 %v219
        %v327 = vunpack.c.l.b16 %v220
        %v328 = vunpack.c.h.b16 %v220
        %v329 = vunpack.c.l.b16 %v221
        %v330 = vunpack.c.h.b16 %v221
        %v331 = vunpack.c.l.b16 %v222
        %v332 = vunpack.c.h.b16 %v222
        %v333 = vunpack.c.l.b16 %v223
        %v334 = vunpack.c.l.b16 %v224
        %v335 = vunpack.c.h.b16 %v224
        %v336 = vunpack.c.l.b16 %v225
        %v337 = vunpack.c.h.b16 %v225
        %v338 = vunpack.c.l.b16 %v226
        %v339 = vunpack.c.h.b16 %v226
        %v340 = vunpack.c.l.b16 %v227
        %v341 = vunpack.c.l.b16 %v228
        %v342 = vunpack.c.h.b16 %v228
        %v343 = vunpack.c.l.b16 %v229
        %v344 = vunpack.c.h.b16 %v229
        %v345 = vunpack.c.l.b16 %v230
        %v346 = vunpack.c.h.b16 %v230
        %v347 = vunpack.c.l.b16 %v231
        %v348 = vunpack.c.l.b16 %v232
        %v349 = vunpack.c.h.b16 %v232
        %v350 = vunpack.c.l.b16 %v233
        %v351 = vunpack.c.h.b16 %v233
        %v352 = vunpack.c.l.b16 %v234
        %v353 = vunpack.c.h.b16 %v234
        %v354 = vunpack.c.l.b16 %v235
        %v355 = vunpack.c.l.b16 %v236
        %v356 = vunpack.c.h.b16 %v236
        %v357 = vunpack.c.l.b16 %v237
        %v358 = vunpack.c.h.b16 %v237
        %v359 = vunpack.c.l.b16 %v238
        %v360 = vunpack.c.h.b16 %v238
        %v361 = vunpack.c.l.b16 %v239
        %v362 = vunpack.c.l.b16 %v240
        %v363 = vunpack.c.h.b16 %v240
        %v364 = vunpack.c.l.b16 %v241
        %v365 = vunpack.c.h.b16 %v241
        %v366 = vunpack.c.l.b16 %v242
        %v367 = vunpack.c.h.b16 %v242
        %v368 = vunpack.c.l.b16 %v243
        %v369 = vpack.c.b16 %v320, %v313
        %v370 = vpack.c.b16 %v321, %v314
        %v371 = vpack.c.b16 %v322, %v315
        %v372 = vpack.c.b16 %v323, %v316
        %v373 = vpack.c.b16 %v324, %v317
        %v374 = vpack.c.b16 %v325, %v318
        %v375 = vpack.c.b16 %v326, %v319
        %v376 = vpack.c.b16 %v334, %v327
        %v377 = vpack.c.b16 %v335, %v328
        %v378 = vpack.c.b16 %v336, %v329
        %v379 = vpack.c.b16 %v337, %v330
        %v380 = vpack.c.b16 %v338, %v331
        %v381 = vpack.c.b16 %v339, %v332
        %v382 = vpack.c.b16 %v340, %v333
        %v383 = vpack.c.b16 %v348, %v341
        %v384 = vpack.c.b16 %v349, %v342
        %v385 = vpack.c.b16 %v350, %v343
        %v386 = vpack.c.b16 %v351, %v344
        %v387 = vpack.c.b16 %v352, %v345
        %v388 = vpack.c.b16 %v353, %v346
        %v389 = vpack.c.b16 %v354, %v347
        %v390 = vpack.c.b16 %v362, %v355
        %v391 = vpack.c.b16 %v363, %v356
        %v392 = vpack.c.b16 %v364, %v357
        %v393 = vpack.c.b16 %v365, %v358
        %v394 = vpack.c.b16 %v366, %v359
        %v395 = vpack.c.b16 %v367, %v360
        %v396 = vpack.c.b16 %v368, %v361
        %vm425 = vcmask 523264
        %v427 = vsel %vm425, %v211, 0
        %429 = vmatprep.subr.bf16.mxu0 0
        %430 = vmatpush1.bf16.msra.mxu0 0
        %431 = vmatprep.subr.bf16.mxu0 0
        %432 = vmatpush1.bf16.msra.mxu0 0
        %433 = vmatprep.subr.bf16.mxu0 0
        %434 = vmatpush1.bf16.msra.mxu0 0
        %435 = vmatprep.subr.bf16.mxu0 0
        %436 = vmatpush1.bf16.msra.mxu0 0
        %437 = vmatprep.subr.bf16.mxu0 %v391
        %438 = vmatpush1.bf16.msra.mxu0 %v390
        %439 = vmatprep.subr.bf16.mxu0 %v384
        %440 = vmatpush1.bf16.msra.mxu0 %v383
        %441 = vmatprep.subr.bf16.mxu0 %v377
        %442 = vmatpush1.bf16.msra.mxu0 %v376
        %443 = vmatprep.subr.bf16.mxu0 %v370
        %444 = vmatpush1.bf16.msra.mxu0 %v369
        %445 = vmatprep.subr.bf16.mxu0 0
        %446 = vmatpush2.bf16.msra.mxu0 0
        %447 = vmatprep.subr.bf16.mxu0 0
        %448 = vmatpush2.bf16.msra.mxu0 0
        %449 = vmatprep.subr.bf16.mxu0 0
        %450 = vmatpush2.bf16.msra.mxu0 0
        %451 = vmatprep.subr.bf16.mxu0 0
        %452 = vmatpush2.bf16.msra.mxu0 0
        %453 = vmatprep.subr.bf16.mxu0 0
        %454 = vmatpush2.bf16.msra.mxu0 0
        %455 = vmatprep.subr.bf16.mxu0 0
        %456 = vmatpush2.bf16.msra.mxu0 0
        %457 = vmatprep.subr.bf16.mxu0 0
        %458 = vmatpush2.bf16.msra.mxu0 0
        %459 = vmatprep.subr.bf16.mxu0 0
        %460 = vmatpush2.bf16.msra.mxu0 0
        %461 = vmatprep.mubr.bf16.mxu0 0
        %462 = vmatmul.mubr.bf16.gmra.mxu0 %v427
        %v463 = vpop.f32.mrf.mxu0
        %v464 = vadd.f32 %v249, %v463
        %v465 = vpop.f32.mrf.mxu0
        %v466 = vadd.f32 %v253, %v465
        %v467 = vpop.f32.mrf.mxu0
        %v468 = vpop.f32.mrf.mxu0
        %469 = vdwg.mxu0
        %470 = vmatprep.subr.bf16.mxu0 0
        %471 = vmatpush1.bf16.msra.mxu0 0
        %472 = vmatprep.subr.bf16.mxu0 0
        %473 = vmatpush1.bf16.msra.mxu0 0
        %474 = vmatprep.subr.bf16.mxu0 0
        %475 = vmatpush1.bf16.msra.mxu0 0
        %476 = vmatprep.subr.bf16.mxu0 0
        %477 = vmatpush1.bf16.msra.mxu0 0
        %478 = vmatprep.subr.bf16.mxu0 %v393
        %479 = vmatpush1.bf16.msra.mxu0 %v392
        %480 = vmatprep.subr.bf16.mxu0 %v386
        %481 = vmatpush1.bf16.msra.mxu0 %v385
        %482 = vmatprep.subr.bf16.mxu0 %v379
        %483 = vmatpush1.bf16.msra.mxu0 %v378
        %484 = vmatprep.subr.bf16.mxu0 %v372
        %485 = vmatpush1.bf16.msra.mxu0 %v371
        %486 = vmatprep.subr.bf16.mxu0 0
        %487 = vmatpush2.bf16.msra.mxu0 0
        %488 = vmatprep.subr.bf16.mxu0 0
        %489 = vmatpush2.bf16.msra.mxu0 0
        %490 = vmatprep.subr.bf16.mxu0 0
        %491 = vmatpush2.bf16.msra.mxu0 0
        %492 = vmatprep.subr.bf16.mxu0 0
        %493 = vmatpush2.bf16.msra.mxu0 0
        %494 = vmatprep.subr.bf16.mxu0 0
        %495 = vmatpush2.bf16.msra.mxu0 0
        %496 = vmatprep.subr.bf16.mxu0 0
        %497 = vmatpush2.bf16.msra.mxu0 0
        %498 = vmatprep.subr.bf16.mxu0 0
        %499 = vmatpush2.bf16.msra.mxu0 0
        %500 = vmatprep.subr.bf16.mxu0 0
        %501 = vmatpush2.bf16.msra.mxu0 0
        %502 = vmatprep.mubr.bf16.mxu0 0
        %503 = vmatmul.mubr.bf16.gmra.mxu0 %v427
        %v504 = vpop.f32.mrf.mxu0
        %v505 = vadd.f32 %v257, %v504
        %v506 = vpop.f32.mrf.mxu0
        %v507 = vadd.f32 %v261, %v506
        %v508 = vpop.f32.mrf.mxu0
        %v509 = vpop.f32.mrf.mxu0
        %510 = vdwg.mxu0
        %511 = vmatprep.subr.bf16.mxu0 0
        %512 = vmatpush1.bf16.msra.mxu0 0
        %513 = vmatprep.subr.bf16.mxu0 0
        %514 = vmatpush1.bf16.msra.mxu0 0
        %515 = vmatprep.subr.bf16.mxu0 0
        %516 = vmatpush1.bf16.msra.mxu0 0
        %517 = vmatprep.subr.bf16.mxu0 0
        %518 = vmatpush1.bf16.msra.mxu0 0
        %519 = vmatprep.subr.bf16.mxu0 %v395
        %520 = vmatpush1.bf16.msra.mxu0 %v394
        %521 = vmatprep.subr.bf16.mxu0 %v388
        %522 = vmatpush1.bf16.msra.mxu0 %v387
        %523 = vmatprep.subr.bf16.mxu0 %v381
        %524 = vmatpush1.bf16.msra.mxu0 %v380
        %525 = vmatprep.subr.bf16.mxu0 %v374
        %526 = vmatpush1.bf16.msra.mxu0 %v373
        %527 = vmatprep.subr.bf16.mxu0 0
        %528 = vmatpush2.bf16.msra.mxu0 0
        %529 = vmatprep.subr.bf16.mxu0 0
        %530 = vmatpush2.bf16.msra.mxu0 0
        %531 = vmatprep.subr.bf16.mxu0 0
        %532 = vmatpush2.bf16.msra.mxu0 0
        %533 = vmatprep.subr.bf16.mxu0 0
        %534 = vmatpush2.bf16.msra.mxu0 0
        %535 = vmatprep.subr.bf16.mxu0 0
        %536 = vmatpush2.bf16.msra.mxu0 0
        %537 = vmatprep.subr.bf16.mxu0 0
        %538 = vmatpush2.bf16.msra.mxu0 0
        %539 = vmatprep.subr.bf16.mxu0 0
        %540 = vmatpush2.bf16.msra.mxu0 0
        %541 = vmatprep.subr.bf16.mxu0 0
        %542 = vmatpush2.bf16.msra.mxu0 0
        %543 = vmatprep.mubr.bf16.mxu0 0
        %544 = vmatmul.mubr.bf16.gmra.mxu0 %v427
        %v545 = vpop.f32.mrf.mxu0
        %v546 = vadd.f32 %v265, %v545
        %v547 = vpop.f32.mrf.mxu0
        %v548 = vadd.f32 %v269, %v547
        %v549 = vpop.f32.mrf.mxu0
        %v550 = vpop.f32.mrf.mxu0
        %551 = vdwg.mxu0
        %552 = vmatprep.subr.bf16.mxu0 0
        %553 = vmatpush1.bf16.msra.mxu0 0
        %554 = vmatprep.subr.bf16.mxu0 0
        %555 = vmatpush1.bf16.msra.mxu0 0
        %556 = vmatprep.subr.bf16.mxu0 0
        %557 = vmatpush1.bf16.msra.mxu0 0
        %558 = vmatprep.subr.bf16.mxu0 0
        %559 = vmatpush1.bf16.msra.mxu0 0
        %560 = vmatprep.subr.bf16.mxu0 0
        %561 = vmatpush1.bf16.msra.mxu0 %v396
        %562 = vmatprep.subr.bf16.mxu0 0
        %563 = vmatpush1.bf16.msra.mxu0 %v389
        %564 = vmatprep.subr.bf16.mxu0 0
        %565 = vmatpush1.bf16.msra.mxu0 %v382
        %566 = vmatprep.subr.bf16.mxu0 0
        %567 = vmatpush1.bf16.msra.mxu0 %v375
        %568 = vmatprep.subr.bf16.mxu0 0
        %569 = vmatpush2.bf16.msra.mxu0 0
        %570 = vmatprep.subr.bf16.mxu0 0
        %571 = vmatpush2.bf16.msra.mxu0 0
        %572 = vmatprep.subr.bf16.mxu0 0
        %573 = vmatpush2.bf16.msra.mxu0 0
        %574 = vmatprep.subr.bf16.mxu0 0
        %575 = vmatpush2.bf16.msra.mxu0 0
        %576 = vmatprep.subr.bf16.mxu0 0
        %577 = vmatpush2.bf16.msra.mxu0 0
        %578 = vmatprep.subr.bf16.mxu0 0
        %579 = vmatpush2.bf16.msra.mxu0 0
        %580 = vmatprep.subr.bf16.mxu0 0
        %581 = vmatpush2.bf16.msra.mxu0 0
        %582 = vmatprep.subr.bf16.mxu0 0
        %583 = vmatpush2.bf16.msra.mxu0 0
        %584 = vmatprep.mubr.bf16.mxu0 0
        %585 = vmatmul.mubr.bf16.gmra.mxu0 %v427
        %v586 = vpop.f32.mrf.mxu0
        %v587 = vadd.f32 %v273, %v586
        %v588 = vpop.f32.mrf.mxu0
        %v589 = vpop.f32.mrf.mxu0
        %v590 = vpop.f32.mrf.mxu0
        %591 = vdwg.mxu0
        %v592 = vmax.f32 %v464, 0.0
        %v593 = vmax.f32 %v466, 0.0
        %v594 = vmax.f32 %v505, 0.0
        %v595 = vmax.f32 %v507, 0.0
        %v596 = vmax.f32 %v546, 0.0
        %v597 = vmax.f32 %v548, 0.0
        %v598 = vmax.f32 %v587, 0.0
        %v599 = vpack.c.bf16 %v592, %v592
        %v600 = vpack.c.bf16 %v593, %v593
        %v601 = vpack.c.bf16 %v594, %v594
        %v602 = vpack.c.bf16 %v595, %v595
        %v603 = vpack.c.bf16 %v596, %v596
        %v604 = vpack.c.bf16 %v597, %v597
        %v605 = vpack.c.bf16 %v598, %v598
        %v613 = vcombine.low %v599, %v600
        %v614 = vcombine.low %v601, %v602
        %v615 = vcombine.low %v603, %v604
        %v617 = vunpack.c.l.s4 1966171168
        %v618 = vunpack.c.0.s8 %v617
        %v619 = vlaneseq
        %v620 = vshrl.u32 %v619, 7
        %v621 = vsub.s32 %v618, %v620
        %v622 = vrot.slane %v613, %v621
        %v624 = vunpack.c.l.s4 1966171168
        %v625 = vunpack.c.0.s8 %v624
        %v626 = vlaneseq
        %v627 = vshrl.u32 %v626, 7
        %v628 = vsub.s32 %v625, %v627
        %v629 = vrot.slane %v614, %v628
        %v631 = vunpack.c.l.s4 1966171168
        %v632 = vunpack.c.0.s8 %v631
        %v633 = vlaneseq
        %v634 = vshrl.u32 %v633, 7
        %v635 = vsub.s32 %v632, %v634
        %v636 = vrot.slane %v615, %v635
        %v638 = vunpack.c.l.s4 1966171168
        %v639 = vunpack.c.0.s8 %v638
        %v640 = vlaneseq
        %v641 = vshrl.u32 %v640, 7
        %v642 = vsub.s32 %v639, %v641
        %v643 = vrot.slane %v605, %v642
        %v644 = vcombine.low %v622, %v629
        %v645 = vcombine.low %v636, %v643
        %v647 = vunpack.c.l.s4 1966171168
        %v648 = vunpack.c.0.s8 %v647
        %v649 = vlaneseq
        %v650 = vshrl.u32 %v649, 7
        %v651 = vsub.s32 %v648, %v650
        %v652 = vrot.slane %v644, %v651
        %v654 = vunpack.c.l.s4 1966171168
        %v655 = vunpack.c.0.s8 %v654
        %v656 = vlaneseq
        %v657 = vshrl.u32 %v656, 7
        %v658 = vsub.s32 %v655, %v657
        %v659 = vrot.slane %v645, %v658
        %v660 = vcombine.low %v652, %v659
        %662 = vst [vmem:[%s208] sm:$0x7f] %v660
        %s663 = smul.u32 7, %s17
        %p664 = scmp.lt.s32.totalorder %s663, 48
        %s665 = scalar_select %p664, %s663, 48
        %s666 = scalar_lea.vmem %s3, %s665
        // Predicated region
        $region37: #{generator_forward.4} parent=31 // pred_check
          %p667 = pneg %p108
        $region38: #{generator_forward.4} parent=31 // pred_check_branch
          %669 = sbr.rel (%p667) target = $region40
        $region39: #{generator_forward.4} parent=31 // pred_region
          %s670 = smul.u32 7, %s17
        $region40: #{generator_forward.4} parent=31 // pred_fallthru
          _
      $region32: #{generator_forward.4} parent=5 // pred_fallthru
        _
      %p671 = scmp.le.s32.totalorder 2, %s12
      // Predicated region
      $region41: #{generator_forward.4} parent=5 // pred_check
        %p672 = pneg %p671
      $region42: #{generator_forward.4} parent=5 // pred_check_branch
        %674 = sbr.rel (%p672) target = $region44
      $region43: #{generator_forward.4} parent=5 // pred_region
        %s675 = ssub.s32 %s12, 2
        // Predicated region
        $region45: #{generator_forward.4} parent=43 // pred_check
          %p676 = pneg %p114
        $region46: #{generator_forward.4} parent=43 // pred_check_branch
          %678 = sbr.rel (%p676) target = $region48
        $region47: #{generator_forward.4} parent=43 // pred_region
          %s679 = smul.u32 7, %s18
          %p680 = scmp.lt.s32.totalorder %s679, 48
          %s681 = scalar_select %p680, %s679, 48
          %s682 = scalar_lea.vmem %s3, %s681
        $region48: #{generator_forward.4} parent=43 // pred_fallthru
          _
      $region44: #{generator_forward.4} parent=5 // pred_fallthru
        _
    $region6: #{generator_forward.4} parent=1 // loop_footer
      %s16 = sadd.s32 1, %s12
    $region7: #{generator_forward.4} parent=1 // loop_footer_branch
      %11 = sbr.rel target = $region3
    $region8: #{generator_forward.4} parent=1 // loop_exit
      _
    %683 = vsyncpa [#allocation3], 1
    %s684 = scalar_lea.sflag [#allocation3], 1
    %685 = vsyncpa %s684, 1

// kernel: generator_forward.6
$region0: #{generator_forward.6}
  #allocation0 [shape = 'u32[]', space=smem, size = 0x4, offset = 0x4, fixed_abs, tag = 'smem constant byte address 0x4 - core index']
  #allocation1 [shape = 'u32[144,128]{1,0:T(1,128)}', space=vmem, size = 0x12000, scoped, tag = 'internal scratch']
  %s0 = inlined_call_operand.vmem [shape: f32[2,14,14,64], index: 0, kind: input, shape index: {}]
  %s1 = inlined_call_operand.vmem [shape: f32[1,64], index: 1, kind: input, shape index: {}]
  %s2 = inlined_call_operand.vmem [shape: f32[1,64], index: 2, kind: input, shape index: {}]
  %s3 = inlined_call_operand.vmem [shape: bf16[2,14,14,64], index: 3, kind: output, shape index: {}]
  %s4 = sld [smem:[#allocation0]]
  $region45: #{generator_forward.6} parent=0
    _
  %s6 = ssub.s32 1, %s4
  %s7 = scalar_select 0, %s6, %s4
  loop: start=0, step=1, limit=4
  $region2: #{generator_forward.6} parent=0 // loop_pre_header
    _
  $region3: #{generator_forward.6} parent=0 // loop_header
    %s9 = sphi 0, %s13
    %p10 = scmp.ge.s32.totalorder %s9, 4
    %s19 = sphi 0, %s21
    %s22 = sphi 0, %s19
    %s23 = sphi 0, %s22
    %s39 = sphi 0, %s23
    %s43 = sphi 0, %s43
    %s45 = sphi 0, %s43
    %s46 = sphi 0, %s45
    %s60 = sphi 0, %s46
    %s64 = sphi 0, %s64
    %s66 = sphi 0, %s64
    %s67 = sphi 0, %s66
    %s81 = sphi 0, %s67
    %s87 = sphi 0, %s89
    %s90 = sphi 0, %s87
    %s91 = sphi 0, %s90
    %s107 = sphi 0, %s91
  $region4: #{generator_forward.6} parent=0 // loop_header_branch
    %12 = sbr.rel (%p10) target = $region8
  $region5: #{generator_forward.6} parent=0 // loop_body
    %s14 = ssub.s32 %s9, 1
    %s15 = ssub.s32 %s9, 2
    %s16 = sadd.s32 %s9, 1
    %s17 = ssub.s32 %s9, %s16
    %p18 = scmp.eq.s32.totalorder %s17, 0
    %s20 = sadd.s32 %s19, 1
    %s21 = scalar_select %p18, %s19, %s20
    %p24 = pneg %p18
    %p25 = scmp.eq.s32.totalorder %s9, 1
    %p26 = por %p24, %p25
    %p27 = scmp.ne.s32.totalorder %s19, %s22
    %p28 = scmp.eq.s32.totalorder %s9, 0
    %p29 = por %p27, %p28
    %p30 = scmp.ne.s32.totalorder %s19, %s22
    %p31 = scmp.eq.s32.totalorder %s14, 1
    %p32 = por %p30, %p31
    %p33 = scmp.ne.s32.totalorder %s22, %s23
    %p34 = scmp.eq.s32.totalorder %s14, 0
    %p35 = por %p33, %p34
    %p36 = scmp.ne.s32.totalorder %s22, %s23
    %p37 = scmp.eq.s32.totalorder %s15, 1
    %p38 = por %p36, %p37
    %p40 = scmp.ne.s32.totalorder %s23, %s39
    %p41 = scmp.eq.s32.totalorder %s15, 0
    %p42 = por %p40, %p41
    %s44 = sadd.s32 %s43, 1
    %p47 = scmp.eq.s32.totalorder %s9, 1
    %p48 = scmp.ne.s32.totalorder %s43, %s45
    %p49 = scmp.eq.s32.totalorder %s9, 0
    %p50 = por %p48, %p49
    %p51 = scmp.ne.s32.totalorder %s43, %s45
    %p52 = scmp.eq.s32.totalorder %s14, 1
    %p53 = por %p51, %p52
    %p54 = scmp.ne.s32.totalorder %s45, %s46
    %p55 = scmp.eq.s32.totalorder %s14, 0
    %p56 = por %p54, %p55
    %p57 = scmp.ne.s32.totalorder %s45, %s46
    %p58 = scmp.eq.s32.totalorder %s15, 1
    %p59 = por %p57, %p58
    %p61 = scmp.ne.s32.totalorder %s46, %s60
    %p62 = scmp.eq.s32.totalorder %s15, 0
    %p63 = por %p61, %p62
    %s65 = sadd.s32 %s64, 1
    %p68 = scmp.eq.s32.totalorder %s9, 1
    %p69 = scmp.ne.s32.totalorder %s64, %s66
    %p70 = scmp.eq.s32.totalorder %s9, 0
    %p71 = por %p69, %p70
    %p72 = scmp.ne.s32.totalorder %s64, %s66
    %p73 = scmp.eq.s32.totalorder %s14, 1
    %p74 = por %p72, %p73
    %p75 = scmp.ne.s32.totalorder %s66, %s67
    %p76 = scmp.eq.s32.totalorder %s14, 0
    %p77 = por %p75, %p76
    %p78 = scmp.ne.s32.totalorder %s66, %s67
    %p79 = scmp.eq.s32.totalorder %s15, 1
    %p80 = por %p78, %p79
    %p82 = scmp.ne.s32.totalorder %s67, %s81
    %p83 = scmp.eq.s32.totalorder %s15, 0
    %p84 = por %p82, %p83
    %s85 = ssub.s32 %s9, %s16
    %p86 = scmp.eq.s32.totalorder %s85, 0
    %s88 = sadd.s32 %s87, 1
    %s89 = scalar_select %p86, %s87, %s88
    %p92 = pneg %p86
    %p93 = scmp.eq.s32.totalorder %s9, 1
    %p94 = por %p92, %p93
    %p95 = scmp.ne.s32.totalorder %s87, %s90
    %p96 = scmp.eq.s32.totalorder %s9, 0
    %p97 = por %p95, %p96
    %p98 = scmp.ne.s32.totalorder %s87, %s90
    %p99 = scmp.eq.s32.totalorder %s14, 1
    %p100 = por %p98, %p99
    %p101 = scmp.ne.s32.totalorder %s90, %s91
    %p102 = scmp.eq.s32.totalorder %s14, 0
    %p103 = por %p101, %p102
    %p104 = scmp.ne.s32.totalorder %s90, %s91
    %p105 = scmp.eq.s32.totalorder %s15, 1
    %p106 = por %p104, %p105
    %p108 = scmp.ne.s32.totalorder %s91, %s107
    %p109 = scmp.eq.s32.totalorder %s15, 0
    %p110 = por %p108, %p109
    %p111 = scmp.le.s32.totalorder 1, %s9
    %p112 = scmp.lt.s32.totalorder %s9, 3
    %p113 = pnand %p111, %p112
    %p114 = pneg %p113
    // Predicated region
    $region9: #{generator_forward.6} parent=5 // pred_check
      _
    $region10: #{generator_forward.6} parent=5 // pred_check_branch
      %116 = sbr.rel (%p113) target = $region12
    $region11: #{generator_forward.6} parent=5 // pred_region
      %s117 = ssub.s32 %s9, 1
      // Predicated region
      $region13: #{generator_forward.6} parent=11 // pred_check
        %p118 = pneg %p56
      $region14: #{generator_forward.6} parent=11 // pred_check_branch
        %120 = sbr.rel (%p118) target = $region16
      $region15: #{generator_forward.6} parent=11 // pred_region
        _
      $region16: #{generator_forward.6} parent=11 // pred_fallthru
        _
      // Predicated region
      $region17: #{generator_forward.6} parent=11 // pred_check
        %p121 = pneg %p77
      $region18: #{generator_forward.6} parent=11 // pred_check_branch
        %123 = sbr.rel (%p121) target = $region20
      $region19: #{generator_forward.6} parent=11 // pred_region
        _
      $region20: #{generator_forward.6} parent=11 // pred_fallthru
        _
    $region12: #{generator_forward.6} parent=5 // pred_fallthru
      _
    %p124 = scmp.lt.s32.totalorder %s9, 2
    // Predicated region
    $region21: #{generator_forward.6} parent=5 // pred_check
      %p125 = pneg %p124
    $region22: #{generator_forward.6} parent=5 // pred_check_branch
      %127 = sbr.rel (%p125) target = $region24
    $region23: #{generator_forward.6} parent=5 // pred_region
      // Predicated region
      $region25: #{generator_forward.6} parent=23 // pred_check
        %p128 = pneg %p29
      $region26: #{generator_forward.6} parent=23 // pred_check_branch
        %130 = sbr.rel (%p128) target = $region28
      $region27: #{generator_forward.6} parent=23 // pred_region
        %p131 = scmp.lt.s32.totalorder %s9, 1
        %s132 = scalar_select %p131, %s9, 1
        %s133 = smul.addr %s132, 28
        %s134 = smul.addr %s133, 8
        %s135 = scalar_lea.vmem %s0, %s134
      $region28: #{generator_forward.6} parent=23 // pred_fallthru
        _
    $region24: #{generator_forward.6} parent=5 // pred_fallthru
      _
    %p136 = scmp.le.s32.totalorder 1, %s9
    %p137 = scmp.lt.s32.totalorder %s9, 3
    %p138 = pnand %p136, %p137
    %p139 = pneg %p138
    // Predicated region
    $region29: #{generator_forward.6} parent=5 // pred_check
      _
    $region30: #{generator_forward.6} parent=5 // pred_check_branch
      %141 = sbr.rel (%p138) target = $region32
    $region31: #{generator_forward.6} parent=5 // pred_region
      %s142 = ssub.s32 %s9, 1
      %p143 = scmp.lt.s32.totalorder %s14, 1
      %s144 = scalar_select %p143, %s14, 1
      %s145 = smul.addr %s144, 28
      %s146 = smul.addr %s145, 8
      %s147 = scalar_lea.vmem %s0, %s146
      %p148 = pneg %p35
      %p149 = pneg %p32
      %p150 = pneg %p56
      %p151 = pneg %p53
      %p152 = pneg %p77
      %p153 = pneg %p74
      %p154 = pneg %p103
      %p155 = pneg %p100
      %p156 = scmp.lt.s32.totalorder %s14, 1
      %s157 = scalar_select %p156, %s14, 1
      %s158 = smul.addr %s157, 28
      %s159 = smul.addr %s158, 4
      %s160 = scalar_lea.vmem %s3, %s159
      %p161 = scmp.lt.s32.totalorder %s14, 1
      %s162 = scalar_select %p161, %s14, 1
      %s163 = smul.addr %s162, 28
      %s164 = smul.addr %s163, 8
      %s165 = scalar_lea.vmem %s0, %s164
      %p166 = scmp.lt.s32.totalorder %s14, 1
      %s167 = scalar_select %p166, %s14, 1
      %s168 = smul.addr %s167, 28
      %s169 = smul.addr %s168, 4
      %s170 = scalar_lea.vmem %s3, %s169
      %v171 = vld [vmem:[%s165] sm:$0xff]
      %v172 = vld [vmem:[%s165 + $0x8] sm:$0x3f]
      %v173 = vld [vmem:[%s165 + $0x10] sm:$0xff]
      %v174 = vld [vmem:[%s165 + $0x18] sm:$0x3f]
      %v175 = vld [vmem:[%s165 + $0x20] sm:$0xff]
      %v176 = vld [vmem:[%s165 + $0x28] sm:$0x3f]
      %v177 = vld [vmem:[%s165 + $0x30] sm:$0xff]
      %v178 = vld [vmem:[%s165 + $0x38] sm:$0x3f]
      %v179 = vld [vmem:[%s165 + $0x40] sm:$0xff]
      %v180 = vld [vmem:[%s165 + $0x48] sm:$0x3f]
      %v181 = vld [vmem:[%s165 + $0x50] sm:$0xff]
      %v182 = vld [vmem:[%s165 + $0x58] sm:$0x3f]
      %v183 = vld [vmem:[%s165 + $0x60] sm:$0xff]
      %v184 = vld [vmem:[%s165 + $0x68] sm:$0x3f]
      %v185 = vld [vmem:[%s165 + $0x70] sm:$0xff]
      %v186 = vld [vmem:[%s165 + $0x78] sm:$0x3f]
      %v187 = vld [vmem:[%s165 + $0x80] sm:$0xff]
      %v188 = vld [vmem:[%s165 + $0x88] sm:$0x3f]
      %v189 = vld [vmem:[%s165 + $0x90] sm:$0xff]
      %v190 = vld [vmem:[%s165 + $0x98] sm:$0x3f]
      %v191 = vld [vmem:[%s165 + $0xa0] sm:$0xff]
      %v192 = vld [vmem:[%s165 + $0xa8] sm:$0x3f]
      %v193 = vld [vmem:[%s165 + $0xb0] sm:$0xff]
      %v194 = vld [vmem:[%s165 + $0xb8] sm:$0x3f]
      %v195 = vld [vmem:[%s165 + $0xc0] sm:$0xff]
      %v196 = vld [vmem:[%s165 + $0xc8] sm:$0x3f]
      %v197 = vld [vmem:[%s165 + $0xd0] sm:$0xff]
      %v198 = vld [vmem:[%s165 + $0xd8] sm:$0x3f]
      %v199 = vld [vmem:[%s1] sm:$0x1]
      %v201 = vlaneseq
      %v202 = vshrl.u32 %v201, 7
      %v203 = vsub.s32 0, %v202
      %v204 = vrot.slane %v199, %v203
      %v206 = vmul.f32 %v171, %v204
      %v207 = vmul.f32 %v172, %v204
      %v208 = vmul.f32 %v173, %v204
      %v209 = vmul.f32 %v174, %v204
      %v210 = vmul.f32 %v175, %v204
      %v211 = vmul.f32 %v176, %v204
      %v212 = vmul.f32 %v177, %v204
      %v213 = vmul.f32 %v178, %v204
      %v214 = vmul.f32 %v179, %v204
      %v215 = vmul.f32 %v180, %v204
      %v216 = vmul.f32 %v181, %v204
      %v217 = vmul.f32 %v182, %v204
      %v218 = vmul.f32 %v183, %v204
      %v219 = vmul.f32 %v184, %v204
      %v220 = vmul.f32 %v185, %v204
      %v221 = vmul.f32 %v186, %v204
      %v222 = vmul.f32 %v187, %v204
      %v223 = vmul.f32 %v188, %v204
      %v224 = vmul.f32 %v189, %v204
      %v225 = vmul.f32 %v190, %v204
      %v226 = vmul.f32 %v191, %v204
      %v227 = vmul.f32 %v192, %v204
      %v228 = vmul.f32 %v193, %v204
      %v229 = vmul.f32 %v194, %v204
      %v230 = vmul.f32 %v195, %v204
      %v231 = vmul.f32 %v196, %v204
      %v232 = vmul.f32 %v197, %v204
      %v233 = vmul.f32 %v198, %v204
      %v234 = vld [vmem:[%s2] sm:$0x1]
      %v236 = vlaneseq
      %v237 = vshrl.u32 %v236, 7
      %v238 = vsub.s32 0, %v237
      %v239 = vrot.slane %v234, %v238
      %v241 = vadd.f32 %v206, %v239
      %v242 = vadd.f32 %v207, %v239
      %v243 = vadd.f32 %v208, %v239
      %v244 = vadd.f32 %v209, %v239
      %v245 = vadd.f32 %v210, %v239
      %v246 = vadd.f32 %v211, %v239
      %v247 = vadd.f32 %v212, %v239
      %v248 = vadd.f32 %v213, %v239
      %v249 = vadd.f32 %v214, %v239
      %v250 = vadd.f32 %v215, %v239
      %v251 = vadd.f32 %v216, %v239
      %v252 = vadd.f32 %v217, %v239
      %v253 = vadd.f32 %v218, %v239
      %v254 = vadd.f32 %v219, %v239
      %v255 = vadd.f32 %v220, %v239
      %v256 = vadd.f32 %v221, %v239
      %v257 = vadd.f32 %v222, %v239
      %v258 = vadd.f32 %v223, %v239
      %v259 = vadd.f32 %v224, %v239
      %v260 = vadd.f32 %v225, %v239
      %v261 = vadd.f32 %v226, %v239
      %v262 = vadd.f32 %v227, %v239
      %v263 = vadd.f32 %v228, %v239
      %v264 = vadd.f32 %v229, %v239
      %v265 = vadd.f32 %v230, %v239
      %v266 = vadd.f32 %v231, %v239
      %v267 = vadd.f32 %v232, %v239
      %v268 = vadd.f32 %v233, %v239
      %v269 = vmax.f32 %v241, 0.0
      %v270 = vmax.f32 %v242, 0.0
      %v271 = vmax.f32 %v243, 0.0
      %v272 = vmax.f32 %v244, 0.0
      %v273 = vmax.f32 %v245, 0.0
      %v274 = vmax.f32 %v246, 0.0
      %v275 = vmax.f32 %v247, 0.0
      %v276 = vmax.f32 %v248, 0.0
      %v277 = vmax.f32 %v249, 0.0
      %v278 = vmax.f32 %v250, 0.0
      %v279 = vmax.f32 %v251, 0.0
      %v280 = vmax.f32 %v252, 0.0
      %v281 = vmax.f32 %v253, 0.0
      %v282 = vmax.f32 %v254, 0.0
      %v283 = vmax.f32 %v255, 0.0
      %v284 = vmax.f32 %v256, 0.0
      %v285 = vmax.f32 %v257, 0.0
      %v286 = vmax.f32 %v258, 0.0
      %v287 = vmax.f32 %v259, 0.0
      %v288 = vmax.f32 %v260, 0.0
      %v289 = vmax.f32 %v261, 0.0
      %v290 = vmax.f32 %v262, 0.0
      %v291 = vmax.f32 %v263, 0.0
      %v292 = vmax.f32 %v264, 0.0
      %v293 = vmax.f32 %v265, 0.0
      %v294 = vmax.f32 %v266, 0.0
      %v295 = vmax.f32 %v267, 0.0
      %v296 = vmax.f32 %v268, 0.0
      %v297 = vpack.c.bf16 %v270, %v269
      %v298 = vpack.c.bf16 %v272, %v271
      %v299 = vpack.c.bf16 %v274, %v273
      %v300 = vpack.c.bf16 %v276, %v275
      %v301 = vpack.c.bf16 %v278, %v277
      %v302 = vpack.c.bf16 %v280, %v279
      %v303 = vpack.c.bf16 %v282, %v281
      %v304 = vpack.c.bf16 %v284, %v283
      %v305 = vpack.c.bf16 %v286, %v285
      %v306 = vpack.c.bf16 %v288, %v287
      %v307 = vpack.c.bf16 %v290, %v289
      %v308 = vpack.c.bf16 %v292, %v291
      %v309 = vpack.c.bf16 %v294, %v293
      %v310 = vpack.c.bf16 %v296, %v295
      %v325 = vunpack.c.l.b16 %v297
      %v326 = vunpack.c.h.b16 %v297
      %v327 = vunpack.c.l.b16 %v298
      %v328 = vunpack.c.h.b16 %v298
      %v329 = vunpack.c.l.b16 %v299
      %v330 = vunpack.c.h.b16 %v299
      %v331 = vunpack.c.l.b16 %v300
      %v332 = vunpack.c.h.b16 %v300
      %v333 = vunpack.c.l.b16 %v301
      %v334 = vunpack.c.h.b16 %v301
      %v335 = vunpack.c.l.b16 %v302
      %v336 = vunpack.c.h.b16 %v302
      %v337 = vunpack.c.l.b16 %v303
      %v338 = vunpack.c.h.b16 %v303
      %v339 = vunpack.c.l.b16 %v304
      %v340 = vunpack.c.h.b16 %v304
      %v341 = vunpack.c.l.b16 %v305
      %v342 = vunpack.c.h.b16 %v305
      %v343 = vunpack.c.l.b16 %v306
      %v344 = vunpack.c.h.b16 %v306
      %v345 = vunpack.c.l.b16 %v307
      %v346 = vunpack.c.h.b16 %v307
      %v347 = vunpack.c.l.b16 %v308
      %v348 = vunpack.c.h.b16 %v308
      %v349 = vunpack.c.l.b16 %v309
      %v350 = vunpack.c.h.b16 %v309
      %v351 = vunpack.c.l.b16 %v310
      %v352 = vunpack.c.h.b16 %v310
      %v353 = vpack.c.b16 %v325, %v325
      %v354 = vpack.c.b16 %v326, %v326
      %v355 = vpack.c.b16 %v327, %v327
      %v356 = vpack.c.b16 %v328, %v328
      %v357 = vpack.c.b16 %v329, %v329
      %v358 = vpack.c.b16 %v330, %v330
      %v359 = vpack.c.b16 %v331, %v331
      %v360 = vpack.c.b16 %v332, %v332
      %v361 = vpack.c.b16 %v333, %v333
      %v362 = vpack.c.b16 %v334, %v334
      %v363 = vpack.c.b16 %v335, %v335
      %v364 = vpack.c.b16 %v336, %v336
      %v365 = vpack.c.b16 %v337, %v337
      %v366 = vpack.c.b16 %v338, %v338
      %v367 = vpack.c.b16 %v339, %v339
      %v368 = vpack.c.b16 %v340, %v340
      %v369 = vpack.c.b16 %v341, %v341
      %v370 = vpack.c.b16 %v342, %v342
      %v371 = vpack.c.b16 %v343, %v343
      %v372 = vpack.c.b16 %v344, %v344
      %v373 = vpack.c.b16 %v345, %v345
      %v374 = vpack.c.b16 %v346, %v346
      %v375 = vpack.c.b16 %v347, %v347
      %v376 = vpack.c.b16 %v348, %v348
      %v377 = vpack.c.b16 %v349, %v349
      %v378 = vpack.c.b16 %v350, %v350
      %v379 = vpack.c.b16 %v351, %v351
      %v380 = vpack.c.b16 %v352, %v352
      %vm409 = vcmask 519168
      %410 = vst.msk [vmem:[%s170] sm:$0xf] %vm409, %v353
      %vm411 = vcmask 518144
      %412 = vst.msk [vmem:[%s170 + $0x4] sm:$0x7] %vm411, %v354
      %413 = vst.msk [vmem:[%s170 + $0x8] sm:$0xf] %vm409, %v355
      %414 = vst.msk [vmem:[%s170 + $0xc] sm:$0x7] %vm411, %v356
      %415 = vst.msk [vmem:[%s170 + $0x10] sm:$0xf] %vm409, %v357
      %416 = vst.msk [vmem:[%s170 + $0x14] sm:$0x7] %vm411, %v358
      %417 = vst.msk [vmem:[%s170 + $0x18] sm:$0xf] %vm409, %v359
      %418 = vst.msk [vmem:[%s170 + $0x1c] sm:$0x7] %vm411, %v360
      %419 = vst.msk [vmem:[%s170 + $0x20] sm:$0xf] %vm409, %v361
      %420 = vst.msk [vmem:[%s170 + $0x24] sm:$0x7] %vm411, %v362
      %421 = vst.msk [vmem:[%s170 + $0x28] sm:$0xf] %vm409, %v363
      %422 = vst.msk [vmem:[%s170 + $0x2c] sm:$0x7] %vm411, %v364
      %423 = vst.msk [vmem:[%s170 + $0x30] sm:$0xf] %vm409, %v365
      %424 = vst.msk [vmem:[%s170 + $0x34] sm:$0x7] %vm411, %v366
      %425 = vst.msk [vmem:[%s170 + $0x38] sm:$0xf] %vm409, %v367
      %426 = vst.msk [vmem:[%s170 + $0x3c] sm:$0x7] %vm411, %v368
      %427 = vst.msk [vmem:[%s170 + $0x40] sm:$0xf] %vm409, %v369
      %428 = vst.msk [vmem:[%s170 + $0x44] sm:$0x7] %vm411, %v370
      %429 = vst.msk [vmem:[%s170 + $0x48] sm:$0xf] %vm409, %v371
      %430 = vst.msk [vmem:[%s170 + $0x4c] sm:$0x7] %vm411, %v372
      %431 = vst.msk [vmem:[%s170 + $0x50] sm:$0xf] %vm409, %v373
      %432 = vst.msk [vmem:[%s170 + $0x54] sm:$0x7] %vm411, %v374
      %433 = vst.msk [vmem:[%s170 + $0x58] sm:$0xf] %vm409, %v375
      %434 = vst.msk [vmem:[%s170 + $0x5c] sm:$0x7] %vm411, %v376
      %435 = vst.msk [vmem:[%s170 + $0x60] sm:$0xf] %vm409, %v377
      %436 = vst.msk [vmem:[%s170 + $0x64] sm:$0x7] %vm411, %v378
      %437 = vst.msk [vmem:[%s170 + $0x68] sm:$0xf] %vm409, %v379
      %438 = vst.msk [vmem:[%s170 + $0x6c] sm:$0x7] %vm411, %v380
      %p439 = scmp.lt.s32.totalorder %s14, 1
      %s440 = scalar_select %p439, %s14, 1
      %s441 = smul.addr %s440, 28
      %s442 = smul.addr %s441, 4
      %s443 = scalar_lea.vmem %s3, %s442
      // Predicated region
      $region33: #{generator_forward.6} parent=31 // pred_check
        %p444 = pneg %p100
      $region34: #{generator_forward.6} parent=31 // pred_check_branch
        %446 = sbr.rel (%p444) target = $region36
      $region35: #{generator_forward.6} parent=31 // pred_region
        _
      $region36: #{generator_forward.6} parent=31 // pred_fallthru
        _
    $region32: #{generator_forward.6} parent=5 // pred_fallthru
      _
    %p447 = scmp.le.s32.totalorder 2, %s9
    // Predicated region
    $region37: #{generator_forward.6} parent=5 // pred_check
      %p448 = pneg %p447
    $region38: #{generator_forward.6} parent=5 // pred_check_branch
      %450 = sbr.rel (%p448) target = $region40
    $region39: #{generator_forward.6} parent=5 // pred_region
      %s451 = ssub.s32 %s9, 2
      // Predicated region
      $region41: #{generator_forward.6} parent=39 // pred_check
        %p452 = pneg %p106
      $region42: #{generator_forward.6} parent=39 // pred_check_branch
        %454 = sbr.rel (%p452) target = $region44
      $region43: #{generator_forward.6} parent=39 // pred_region
        %p455 = scmp.lt.s32.totalorder %s15, 1
        %s456 = scalar_select %p455, %s15, 1
        %s457 = smul.addr %s456, 28
        %s458 = smul.addr %s457, 4
        %s459 = scalar_lea.vmem %s3, %s458
      $region44: #{generator_forward.6} parent=39 // pred_fallthru
        _
    $region40: #{generator_forward.6} parent=5 // pred_fallthru
      _
  $region6: #{generator_forward.6} parent=0 // loop_footer
    %s13 = sadd.s32 1, %s9
  $region7: #{generator_forward.6} parent=0 // loop_footer_branch
    %8 = sbr.rel target = $region3
  $region8: #{generator_forward.6} parent=0 // loop_exit
    _

// kernel: generator_forward.5
$region0: #{generator_forward.5}
  #allocation0 [shape = 'u32[]', space=smem, size = 0x4, offset = 0x4, fixed_abs, tag = 'smem constant byte address 0x4 - core index']
  #allocation1 [shape = 'u32[144,128]{1,0:T(1,128)}', space=vmem, size = 0x12000, scoped, tag = 'internal scratch']
  %s0 = inlined_call_operand.vmem [shape: bf16[2,17,17,128], index: 0, kind: input, shape index: {}]
  %s1 = inlined_call_operand.vmem [shape: bf16[16,128,64], index: 1, kind: input, shape index: {}]
  %s2 = inlined_call_operand.vmem [shape: f32[1,64], index: 2, kind: input, shape index: {}]
  %s3 = inlined_call_operand.vmem [shape: f32[2,14,14,64], index: 3, kind: output, shape index: {0}]
  %s4 = inlined_call_operand.vmem [shape: f32[2,14,2,64], index: 4, kind: output, shape index: {1}]
  %5 = xla_tuple %s3, %s4
  %s6 = sld [smem:[#allocation0]]
  $region53: #{generator_forward.5} parent=0
    _
  %s8 = ssub.s32 1, %s6
  %s9 = scalar_select 0, %s8, %s6
  loop: start=0, step=1, limit=30
  $region2: #{generator_forward.5} parent=0 // loop_pre_header
    _
  $region3: #{generator_forward.5} parent=0 // loop_header
    %s11 = sphi 0, %s15
    %p12 = scmp.ge.s32.totalorder %s11, 30
    %s18 = sphi 0, %s30
    %s19 = sphi 0, %s26
    %s20 = sphi 0, %s18
    %s21 = sphi 0, %s19
    %s22 = sphi 0, %s20
    %s23 = sphi 0, %s21
    %s33 = sphi 0, %s35
    %s36 = sphi 0, %s33
    %s37 = sphi 0, %s36
    %s53 = sphi 0, %s37
    %s57 = sphi 0, %s57
    %s59 = sphi 0, %s57
    %s60 = sphi 0, %s59
    %s74 = sphi 0, %s60
    %s78 = sphi 0, %s78
    %s80 = sphi 0, %s78
    %s81 = sphi 0, %s80
    %s95 = sphi 0, %s81
    %s103 = sphi 0, %s105
    %s106 = sphi 0, %s103
    %s107 = sphi 0, %s106
    %s123 = sphi 0, %s107
    %s131 = sphi 0, %s133
    %s134 = sphi 0, %s131
    %s135 = sphi 0, %s134
    %s151 = sphi 0, %s135
  $region4: #{generator_forward.5} parent=0 // loop_header_branch
    %14 = sbr.rel (%p12) target = $region8
  $region5: #{generator_forward.5} parent=0 // loop_body
    %s16 = ssub.s32 %s11, 1
    %s17 = ssub.s32 %s11, 2
    %s24 = sadd.s32 1, %s19
    %p25 = scmp.ge.s32.totalorder %s24, 14
    %s26 = scalar_select %p25, 0, %s24
    %s27 = sadd.s32 1, %s18
    %s28 = scalar_select %p25, %s27, %s18
    %p29 = scmp.ge.s32.totalorder %s28, 2
    %s30 = scalar_select %p29, 0, %s28
    %s31 = ssub.s32 %s18, %s30
    %p32 = scmp.eq.s32.totalorder %s31, 0
    %s34 = sadd.s32 %s33, 1
    %s35 = scalar_select %p32, %s33, %s34
    %p38 = pneg %p32
    %p39 = scmp.eq.s32.totalorder %s11, 27
    %p40 = por %p38, %p39
    %p41 = scmp.ne.s32.totalorder %s33, %s36
    %p42 = scmp.eq.s32.totalorder %s11, 0
    %p43 = por %p41, %p42
    %p44 = scmp.ne.s32.totalorder %s33, %s36
    %p45 = scmp.eq.s32.totalorder %s16, 27
    %p46 = por %p44, %p45
    %p47 = scmp.ne.s32.totalorder %s36, %s37
    %p48 = scmp.eq.s32.totalorder %s16, 0
    %p49 = por %p47, %p48
    %p50 = scmp.ne.s32.totalorder %s36, %s37
    %p51 = scmp.eq.s32.totalorder %s17, 27
    %p52 = por %p50, %p51
    %p54 = scmp.ne.s32.totalorder %s37, %s53
    %p55 = scmp.eq.s32.totalorder %s17, 0
    %p56 = por %p54, %p55
    %s58 = sadd.s32 %s57, 1
    %p61 = scmp.eq.s32.totalorder %s11, 27
    %p62 = scmp.ne.s32.totalorder %s57, %s59
    %p63 = scmp.eq.s32.totalorder %s11, 0
    %p64 = por %p62, %p63
    %p65 = scmp.ne.s32.totalorder %s57, %s59
    %p66 = scmp.eq.s32.totalorder %s16, 27
    %p67 = por %p65, %p66
    %p68 = scmp.ne.s32.totalorder %s59, %s60
    %p69 = scmp.eq.s32.totalorder %s16, 0
    %p70 = por %p68, %p69
    %p71 = scmp.ne.s32.totalorder %s59, %s60
    %p72 = scmp.eq.s32.totalorder %s17, 27
    %p73 = por %p71, %p72
    %p75 = scmp.ne.s32.totalorder %s60, %s74
    %p76 = scmp.eq.s32.totalorder %s17, 0
    %p77 = por %p75, %p76
    %s79 = sadd.s32 %s78, 1
    %p82 = scmp.eq.s32.totalorder %s11, 27
    %p83 = scmp.ne.s32.totalorder %s78, %s80
    %p84 = scmp.eq.s32.totalorder %s11, 0
    %p85 = por %p83, %p84
    %p86 = scmp.ne.s32.totalorder %s78, %s80
    %p87 = scmp.eq.s32.totalorder %s16, 27
    %p88 = por %p86, %p87
    %p89 = scmp.ne.s32.totalorder %s80, %s81
    %p90 = scmp.eq.s32.totalorder %s16, 0
    %p91 = por %p89, %p90
    %p92 = scmp.ne.s32.totalorder %s80, %s81
    %p93 = scmp.eq.s32.totalorder %s17, 27
    %p94 = por %p92, %p93
    %p96 = scmp.ne.s32.totalorder %s81, %s95
    %p97 = scmp.eq.s32.totalorder %s17, 0
    %p98 = por %p96, %p97
    %s99 = ssub.s32 %s18, %s30
    %s100 = ssub.s32 %s19, %s26
    %s101 = sor.u32 %s99, %s100
    %p102 = scmp.eq.s32.totalorder %s101, 0
    %s104 = sadd.s32 %s103, 1
    %s105 = scalar_select %p102, %s103, %s104
    %p108 = pneg %p102
    %p109 = scmp.eq.s32.totalorder %s11, 27
    %p110 = por %p108, %p109
    %p111 = scmp.ne.s32.totalorder %s103, %s106
    %p112 = scmp.eq.s32.totalorder %s11, 0
    %p113 = por %p111, %p112
    %p114 = scmp.ne.s32.totalorder %s103, %s106
    %p115 = scmp.eq.s32.totalorder %s16, 27
    %p116 = por %p114, %p115
    %p117 = scmp.ne.s32.totalorder %s106, %s107
    %p118 = scmp.eq.s32.totalorder %s16, 0
    %p119 = por %p117, %p118
    %p120 = scmp.ne.s32.totalorder %s106, %s107
    %p121 = scmp.eq.s32.totalorder %s17, 27
    %p122 = por %p120, %p121
    %p124 = scmp.ne.s32.totalorder %s107, %s123
    %p125 = scmp.eq.s32.totalorder %s17, 0
    %p126 = por %p124, %p125
    %s127 = ssub.s32 %s18, %s30
    %s128 = ssub.s32 %s19, %s26
    %s129 = sor.u32 %s127, %s128
    %p130 = scmp.eq.s32.totalorder %s129, 0
    %s132 = sadd.s32 %s131, 1
    %s133 = scalar_select %p130, %s131, %s132
    %p136 = pneg %p130
    %p137 = scmp.eq.s32.totalorder %s11, 27
    %p138 = por %p136, %p137
    %p139 = scmp.ne.s32.totalorder %s131, %s134
    %p140 = scmp.eq.s32.totalorder %s11, 0
    %p141 = por %p139, %p140
    %p142 = scmp.ne.s32.totalorder %s131, %s134
    %p143 = scmp.eq.s32.totalorder %s16, 27
    %p144 = por %p142, %p143
    %p145 = scmp.ne.s32.totalorder %s134, %s135
    %p146 = scmp.eq.s32.totalorder %s16, 0
    %p147 = por %p145, %p146
    %p148 = scmp.ne.s32.totalorder %s134, %s135
    %p149 = scmp.eq.s32.totalorder %s17, 27
    %p150 = por %p148, %p149
    %p152 = scmp.ne.s32.totalorder %s135, %s151
    %p153 = scmp.eq.s32.totalorder %s17, 0
    %p154 = por %p152, %p153
    %p155 = scmp.le.s32.totalorder 1, %s11
    %p156 = scmp.lt.s32.totalorder %s11, 29
    %p157 = pnand %p155, %p156
    %p158 = pneg %p157
    // Predicated region
    $region9: #{generator_forward.5} parent=5 // pred_check
      _
    $region10: #{generator_forward.5} parent=5 // pred_check_branch
      %160 = sbr.rel (%p157) target = $region12
    $region11: #{generator_forward.5} parent=5 // pred_region
      %s161 = ssub.s32 %s11, 1
      // Predicated region
      $region13: #{generator_forward.5} parent=11 // pred_check
        %p162 = pneg %p70
      $region14: #{generator_forward.5} parent=11 // pred_check_branch
        %164 = sbr.rel (%p162) target = $region16
      $region15: #{generator_forward.5} parent=11 // pred_region
        _
      $region16: #{generator_forward.5} parent=11 // pred_fallthru
        _
      // Predicated region
      $region17: #{generator_forward.5} parent=11 // pred_check
        %p165 = pneg %p91
      $region18: #{generator_forward.5} parent=11 // pred_check_branch
        %167 = sbr.rel (%p165) target = $region20
      $region19: #{generator_forward.5} parent=11 // pred_region
        _
      $region20: #{generator_forward.5} parent=11 // pred_fallthru
        _
    $region12: #{generator_forward.5} parent=5 // pred_fallthru
      _
    %p168 = scmp.lt.s32.totalorder %s11, 28
    // Predicated region
    $region21: #{generator_forward.5} parent=5 // pred_check
      %p169 = pneg %p168
    $region22: #{generator_forward.5} parent=5 // pred_check_branch
      %171 = sbr.rel (%p169) target = $region24
    $region23: #{generator_forward.5} parent=5 // pred_region
      // Predicated region
      $region25: #{generator_forward.5} parent=23 // pred_check
        %p172 = pneg %p43
      $region26: #{generator_forward.5} parent=23 // pred_check_branch
        %174 = sbr.rel (%p172) target = $region28
      $region27: #{generator_forward.5} parent=23 // pred_region
        %p175 = scmp.lt.s32.totalorder %s18, 1
        %s176 = scalar_select %p175, %s18, 1
        %s177 = smul.addr %s176, 51
        %s178 = smul.addr %s177, 4
        %s179 = scalar_lea.vmem %s0, %s178
      $region28: #{generator_forward.5} parent=23 // pred_fallthru
        _
    $region24: #{generator_forward.5} parent=5 // pred_fallthru
      _
    %p180 = scmp.le.s32.totalorder 1, %s11
    %p181 = scmp.lt.s32.totalorder %s11, 29
    %p182 = pnand %p180, %p181
    %p183 = pneg %p182
    // Predicated region
    $region29: #{generator_forward.5} parent=5 // pred_check
      _
    $region30: #{generator_forward.5} parent=5 // pred_check_branch
      %185 = sbr.rel (%p182) target = $region32
    $region31: #{generator_forward.5} parent=5 // pred_region
      %s186 = ssub.s32 %s11, 1
      %p187 = scmp.lt.s32.totalorder %s20, 1
      %s188 = scalar_select %p187, %s20, 1
      %s189 = smul.addr %s188, 51
      %s190 = smul.addr %s189, 4
      %s191 = scalar_lea.vmem %s0, %s190
      %p192 = pneg %p49
      %p193 = pneg %p46
      %p194 = pneg %p70
      %p195 = pneg %p67
      %p196 = pneg %p91
      %p197 = pneg %p88
      %p198 = pneg %p119
      %p199 = pneg %p116
      %p200 = scmp.lt.s32.totalorder %s20, 1
      %s201 = scalar_select %p200, %s20, 1
      %p202 = scmp.lt.s32.totalorder %s21, 13
      %s203 = scalar_select %p202, %s21, 13
      %s204 = smul.addr %s203, 2
      %s205 = smul.addr %s201, 28
      %s206 = sadd.s32 %s204, %s205
      %s207 = smul.addr %s206, 8
      %s208 = scalar_lea.vmem %s3, %s207
      %p209 = pneg %p147
      %p210 = pneg %p144
      %p211 = scmp.lt.s32.totalorder %s20, 1
      %s212 = scalar_select %p211, %s20, 1
      %p213 = scmp.lt.s32.totalorder %s21, 13
      %s214 = scalar_select %p213, %s21, 13
      %s215 = smul.addr %s212, 14
      %s216 = sadd.s32 %s214, %s215
      %s217 = smul.addr %s216, 2
      %s218 = scalar_lea.vmem %s4, %s217
      %p219 = scmp.lt.s32.totalorder %s20, 1
      %s220 = scalar_select %p219, %s20, 1
      %s221 = smul.addr %s220, 51
      %s222 = smul.addr %s221, 4
      %s223 = scalar_lea.vmem %s0, %s222
      %p224 = scmp.lt.s32.totalorder %s20, 1
      %s225 = scalar_select %p224, %s20, 1
      %p226 = scmp.lt.s32.totalorder %s21, 13
      %s227 = scalar_select %p226, %s21, 13
      %s228 = smul.addr %s227, 2
      %s229 = smul.addr %s225, 28
      %s230 = sadd.s32 %s228, %s229
      %s231 = smul.addr %s230, 8
      %s232 = scalar_lea.vmem %s3, %s231
      %p233 = scmp.lt.s32.totalorder %s20, 1
      %s234 = scalar_select %p233, %s20, 1
      %p235 = scmp.lt.s32.totalorder %s21, 13
      %s236 = scalar_select %p235, %s21, 13
      %s237 = smul.addr %s234, 14
      %s238 = sadd.s32 %s236, %s237
      %s239 = smul.addr %s238, 2
      %s240 = scalar_lea.vmem %s4, %s239
      %s242 = smul.u32 %s21, 3
      %s243 = smul.addr %s242, 4
      %s244 = scalar_lea.vmem %s223, %s243
      %v245 = vld [vmem:[%s244] sm:$0xf]
      %v246 = vld [vmem:[%s244 + $0x4] sm:$0xf]
      %v247 = vld [vmem:[%s244 + $0x8] sm:$0x1]
      %v248 = vld [vmem:[%s1] sm:$0xf]
      %v249 = vld [vmem:[%s1 + $0x4] sm:$0xf]
      %v250 = vld [vmem:[%s1 + $0x8] sm:$0xf]
      %v251 = vld [vmem:[%s1 + $0xc] sm:$0xf]
      %v252 = vld [vmem:[%s1 + $0x10] sm:$0xf]
      %v253 = vld [vmem:[%s1 + $0x14] sm:$0xf]
      %v254 = vld [vmem:[%s1 + $0x18] sm:$0xf]
      %v255 = vld [vmem:[%s1 + $0x1c] sm:$0xf]
      %v256 = vld [vmem:[%s1 + $0x20] sm:$0xf]
      %v257 = vld [vmem:[%s1 + $0x24] sm:$0xf]
      %v258 = vld [vmem:[%s1 + $0x28] sm:$0xf]
      %v259 = vld [vmem:[%s1 + $0x2c] sm:$0xf]
      %v260 = vld [vmem:[%s1 + $0x30] sm:$0xf]
      %v261 = vld [vmem:[%s1 + $0x34] sm:$0xf]
      %v262 = vld [vmem:[%s1 + $0x38] sm:$0xf]
      %v263 = vld [vmem:[%s1 + $0x3c] sm:$0xf]
      %s264 = scalar_lea.vmem %s1, 64
      %v265 = vld [vmem:[%s264] sm:$0xf]
      %v266 = vld [vmem:[%s264 + $0x4] sm:$0xf]
      %v267 = vld [vmem:[%s264 + $0x8] sm:$0xf]
      %v268 = vld [vmem:[%s264 + $0xc] sm:$0xf]
      %v269 = vld [vmem:[%s264 + $0x10] sm:$0xf]
      %v270 = vld [vmem:[%s264 + $0x14] sm:$0xf]
      %v271 = vld [vmem:[%s264 + $0x18] sm:$0xf]
      %v272 = vld [vmem:[%s264 + $0x1c] sm:$0xf]
      %v273 = vld [vmem:[%s264 + $0x20] sm:$0xf]
      %v274 = vld [vmem:[%s264 + $0x24] sm:$0xf]
      %v275 = vld [vmem:[%s264 + $0x28] sm:$0xf]
      %v276 = vld [vmem:[%s264 + $0x2c] sm:$0xf]
      %v277 = vld [vmem:[%s264 + $0x30] sm:$0xf]
      %v278 = vld [vmem:[%s264 + $0x34] sm:$0xf]
      %v279 = vld [vmem:[%s264 + $0x38] sm:$0xf]
      %v280 = vld [vmem:[%s264 + $0x3c] sm:$0xf]
      %v283 = vunpack.c.l.b16 %v245
      %v284 = vunpack.c.l.b16 %v246
      %v285 = vpack.c.b16 %v284, %v283
      %v287 = vshrl.u32 %v285, 16
      %v289 = vshll.u32 %v285, 16
      %v291 = vrot.slane %v289, 1
      %v292 = vor.u32 %v287, %v291
      %v310 = vunpack.c.l.b16 %v265
      %v311 = vunpack.c.l.b16 %v266
      %v312 = vunpack.c.l.b16 %v267
      %v313 = vunpack.c.l.b16 %v268
      %v314 = vunpack.c.l.b16 %v269
      %v315 = vunpack.c.l.b16 %v270
      %v316 = vunpack.c.l.b16 %v271
      %v317 = vunpack.c.l.b16 %v272
      %v318 = vunpack.c.l.b16 %v273
      %v319 = vunpack.c.l.b16 %v274
      %v320 = vunpack.c.l.b16 %v275
      %v321 = vunpack.c.l.b16 %v276
      %v322 = vunpack.c.l.b16 %v277
      %v323 = vunpack.c.l.b16 %v278
      %v324 = vunpack.c.l.b16 %v279
      %v325 = vunpack.c.l.b16 %v280
      %v326 = vpack.c.b16 %v311, %v310
      %v327 = vpack.c.b16 %v313, %v312
      %v328 = vpack.c.b16 %v315, %v314
      %v329 = vpack.c.b16 %v317, %v316
      %v330 = vpack.c.b16 %v319, %v318
      %v331 = vpack.c.b16 %v321, %v320
      %v332 = vpack.c.b16 %v323, %v322
      %v333 = vpack.c.b16 %v325, %v324
      %342 = vmatprep.subr.bf16.mxu0 0
      %343 = vmatpush1.bf16.msra.mxu0 %v333
      %344 = vmatprep.subr.bf16.mxu0 0
      %345 = vmatpush1.bf16.msra.mxu0 %v332
      %346 = vmatprep.subr.bf16.mxu0 0
      %347 = vmatpush1.bf16.msra.mxu0 %v331
      %348 = vmatprep.subr.bf16.mxu0 0
      %349 = vmatpush1.bf16.msra.mxu0 %v330
      %350 = vmatprep.subr.bf16.mxu0 0
      %351 = vmatpush1.bf16.msra.mxu0 %v329
      %352 = vmatprep.subr.bf16.mxu0 0
      %353 = vmatpush1.bf16.msra.mxu0 %v328
      %354 = vmatprep.subr.bf16.mxu0 0
      %355 = vmatpush1.bf16.msra.mxu0 %v327
      %356 = vmatprep.subr.bf16.mxu0 0
      %357 = vmatpush1.bf16.msra.mxu0 %v326
      %358 = vmatprep.subr.bf16.mxu0 0
      %359 = vmatpush2.bf16.msra.mxu0 0
      %360 = vmatprep.subr.bf16.mxu0 0
      %361 = vmatpush2.bf16.msra.mxu0 0
      %362 = vmatprep.subr.bf16.mxu0 0
      %363 = vmatpush2.bf16.msra.mxu0 0
      %364 = vmatprep.subr.bf16.mxu0 0
      %365 = vmatpush2.bf16.msra.mxu0 0
      %366 = vmatprep.subr.bf16.mxu0 0
      %367 = vmatpush2.bf16.msra.mxu0 0
      %368 = vmatprep.subr.bf16.mxu0 0
      %369 = vmatpush2.bf16.msra.mxu0 0
      %370 = vmatprep.subr.bf16.mxu0 0
      %371 = vmatpush2.bf16.msra.mxu0 0
      %372 = vmatprep.subr.bf16.mxu0 0
      %373 = vmatpush2.bf16.msra.mxu0 0
      %374 = vmatprep.mubr.bf16.mxu0 0
      %375 = vmatmul.mubr.bf16.gmra.mxu0 %v292
      %v376 = vpop.f32.mrf.mxu0
      %v377 = vadd.f32 0.0, %v376
      %v378 = vpop.f32.mrf.mxu0
      %v379 = vpop.f32.mrf.mxu0
      %v380 = vadd.f32 0.0, %v379
      %v381 = vpop.f32.mrf.mxu0
      %382 = vdwg.mxu0
      %v400 = vunpack.c.l.b16 %v248
      %v401 = vunpack.c.l.b16 %v249
      %v402 = vunpack.c.l.b16 %v250
      %v403 = vunpack.c.l.b16 %v251
      %v404 = vunpack.c.l.b16 %v252
      %v405 = vunpack.c.l.b16 %v253
      %v406 = vunpack.c.l.b16 %v254
      %v407 = vunpack.c.l.b16 %v255
      %v408 = vunpack.c.l.b16 %v256
      %v409 = vunpack.c.l.b16 %v257
      %v410 = vunpack.c.l.b16 %v258
      %v411 = vunpack.c.l.b16 %v259
      %v412 = vunpack.c.l.b16 %v260
      %v413 = vunpack.c.l.b16 %v261
      %v414 = vunpack.c.l.b16 %v262
      %v415 = vunpack.c.l.b16 %v263
      %v416 = vpack.c.b16 %v401, %v400
      %v417 = vpack.c.b16 %v403, %v402
      %v418 = vpack.c.b16 %v405, %v404
      %v419 = vpack.c.b16 %v407, %v406
      %v420 = vpack.c.b16 %v409, %v408
      %v421 = vpack.c.b16 %v411, %v410
      %v422 = vpack.c.b16 %v413, %v412
      %v423 = vpack.c.b16 %v415, %v414
      %432 = vmatprep.subr.bf16.mxu0 0
      %433 = vmatpush1.bf16.msra.mxu0 %v423
      %434 = vmatprep.subr.bf16.mxu0 0
      %435 = vmatpush1.bf16.msra.mxu0 %v422
      %436 = vmatprep.subr.bf16.mxu0 0
      %437 = vmatpush1.bf16.msra.mxu0 %v421
      %438 = vmatprep.subr.bf16.mxu0 0
      %439 = vmatpush1.bf16.msra.mxu0 %v420
      %440 = vmatprep.subr.bf16.mxu0 0
      %441 = vmatpush1.bf16.msra.mxu0 %v419
      %442 = vmatprep.subr.bf16.mxu0 0
      %443 = vmatpush1.bf16.msra.mxu0 %v418
      %444 = vmatprep.subr.bf16.mxu0 0
      %445 = vmatpush1.bf16.msra.mxu0 %v417
      %446 = vmatprep.subr.bf16.mxu0 0
      %447 = vmatpush1.bf16.msra.mxu0 %v416
      %448 = vmatprep.subr.bf16.mxu0 0
      %449 = vmatpush2.bf16.msra.mxu0 0
      %450 = vmatprep.subr.bf16.mxu0 0
      %451 = vmatpush2.bf16.msra.mxu0 0
      %452 = vmatprep.subr.bf16.mxu0 0
      %453 = vmatpush2.bf16.msra.mxu0 0
      %454 = vmatprep.subr.bf16.mxu0 0
      %455 = vmatpush2.bf16.msra.mxu0 0
      %456 = vmatprep.subr.bf16.mxu0 0
      %457 = vmatpush2.bf16.msra.mxu0 0
      %458 = vmatprep.subr.bf16.mxu0 0
      %459 = vmatpush2.bf16.msra.mxu0 0
      %460 = vmatprep.subr.bf16.mxu0 0
      %461 = vmatpush2.bf16.msra.mxu0 0
      %462 = vmatprep.subr.bf16.mxu0 0
      %463 = vmatpush2.bf16.msra.mxu0 0
      %464 = vmatprep.mubr.bf16.mxu0 0
      %465 = vmatmul.mubr.bf16.gmra.mxu0 %v285
      %v466 = vpop.f32.mrf.mxu0
      %v467 = vadd.f32 %v377, %v466
      %v468 = vpop.f32.mrf.mxu0
      %v469 = vpop.f32.mrf.mxu0
      %v470 = vadd.f32 %v380, %v469
      %v471 = vpop.f32.mrf.mxu0
      %472 = vdwg.mxu0
      %s473 = scalar_lea.vmem %s1, 128
      %v474 = vld [vmem:[%s473] sm:$0xf]
      %v475 = vld [vmem:[%s473 + $0x4] sm:$0xf]
      %v476 = vld [vmem:[%s473 + $0x8] sm:$0xf]
      %v477 = vld [vmem:[%s473 + $0xc] sm:$0xf]
      %v478 = vld [vmem:[%s473 + $0x10] sm:$0xf]
      %v479 = vld [vmem:[%s473 + $0x14] sm:$0xf]
      %v480 = vld [vmem:[%s473 + $0x18] sm:$0xf]
      %v481 = vld [vmem:[%s473 + $0x1c] sm:$0xf]
      %v482 = vld [vmem:[%s473 + $0x20] sm:$0xf]
      %v483 = vld [vmem:[%s473 + $0x24] sm:$0xf]
      %v484 = vld [vmem:[%s473 + $0x28] sm:$0xf]
      %v485 = vld [vmem:[%s473 + $0x2c] sm:$0xf]
      %v486 = vld [vmem:[%s473 + $0x30] sm:$0xf]
      %v487 = vld [vmem:[%s473 + $0x34] sm:$0xf]
      %v488 = vld [vmem:[%s473 + $0x38] sm:$0xf]
      %v489 = vld [vmem:[%s473 + $0x3c] sm:$0xf]
      %v490 = vrot.slane %v285, 1
      %v508 = vunpack.c.l.b16 %v474
      %v509 = vunpack.c.l.b16 %v475
      %v510 = vunpack.c.l.b16 %v476
      %v511 = vunpack.c.l.b16 %v477
      %v512 = vunpack.c.l.b16 %v478
      %v513 = vunpack.c.l.b16 %v479
      %v514 = vunpack.c.l.b16 %v480
      %v515 = vunpack.c.l.b16 %v481
      %v516 = vunpack.c.l.b16 %v482
      %v517 = vunpack.c.l.b16 %v483
      %v518 = vunpack.c.l.b16 %v484
      %v519 = vunpack.c.l.b16 %v485
      %v520 = vunpack.c.l.b16 %v486
      %v521 = vunpack.c.l.b16 %v487
      %v522 = vunpack.c.l.b16 %v488
      %v523 = vunpack.c.l.b16 %v489
      %v524 = vpack.c.b16 %v509, %v508
      %v525 = vpack.c.b16 %v511, %v510
      %v526 = vpack.c.b16 %v513, %v512
      %v527 = vpack.c.b16 %v515, %v514
      %v528 = vpack.c.b16 %v517, %v516
      %v529 = vpack.c.b16 %v519, %v518
      %v530 = vpack.c.b16 %v521, %v520
      %v531 = vpack.c.b16 %v523, %v522
      %540 = vmatprep.subr.bf16.mxu0 0
      %541 = vmatpush1.bf16.msra.mxu0 %v531
      %542 = vmatprep.subr.bf16.mxu0 0
      %543 = vmatpush1.bf16.msra.mxu0 %v530
      %544 = vmatprep.subr.bf16.mxu0 0
      %545 = vmatpush1.bf16.msra.mxu0 %v529
      %546 = vmatprep.subr.bf16.mxu0 0
      %547 = vmatpush1.bf16.msra.mxu0 %v528
      %548 = vmatprep.subr.bf16.mxu0 0
      %549 = vmatpush1.bf16.msra.mxu0 %v527
      %550 = vmatprep.subr.bf16.mxu0 0
      %551 = vmatpush1.bf16.msra.mxu0 %v526
      %552 = vmatprep.subr.bf16.mxu0 0
      %553 = vmatpush1.bf16.msra.mxu0 %v525
      %554 = vmatprep.subr.bf16.mxu0 0
      %555 = vmatpush1.bf16.msra.mxu0 %v524
      %556 = vmatprep.subr.bf16.mxu0 0
      %557 = vmatpush2.bf16.msra.mxu0 0
      %558 = vmatprep.subr.bf16.mxu0 0
      %559 = vmatpush2.bf16.msra.mxu0 0
      %560 = vmatprep.subr.bf16.mxu0 0
      %561 = vmatpush2.bf16.msra.mxu0 0
      %562 = vmatprep.subr.bf16.mxu0 0
      %563 = vmatpush2.bf16.msra.mxu0 0
      %564 = vmatprep.subr.bf16.mxu0 0
      %565 = vmatpush2.bf16.msra.mxu0 0
      %566 = vmatprep.subr.bf16.mxu0 0
      %567 = vmatpush2.bf16.msra.mxu0 0
      %568 = vmatprep.subr.bf16.mxu0 0
      %569 = vmatpush2.bf16.msra.mxu0 0
      %570 = vmatprep.subr.bf16.mxu0 0
      %571 = vmatpush2.bf16.msra.mxu0 0
      %572 = vmatprep.mubr.bf16.mxu0 0
      %573 = vmatmul.mubr.bf16.gmra.mxu0 %v490
      %v574 = vpop.f32.mrf.mxu0
      %v575 = vadd.f32 0.0, %v574
      %v576 = vpop.f32.mrf.mxu0
      %v577 = vpop.f32.mrf.mxu0
      %v578 = vadd.f32 0.0, %v577
      %v579 = vpop.f32.mrf.mxu0
      %580 = vdwg.mxu0
      %v581 = vadd.f32 %v467, %v575
      %v582 = vadd.f32 %v470, %v578
      %s583 = scalar_lea.vmem %s1, 192
      %v584 = vld [vmem:[%s583] sm:$0xf]
      %v585 = vld [vmem:[%s583 + $0x4] sm:$0xf]
      %v586 = vld [vmem:[%s583 + $0x8] sm:$0xf]
      %v587 = vld [vmem:[%s583 + $0xc] sm:$0xf]
      %v588 = vld [vmem:[%s583 + $0x10] sm:$0xf]
      %v589 = vld [vmem:[%s583 + $0x14] sm:$0xf]
      %v590 = vld [vmem:[%s583 + $0x18] sm:$0xf]
      %v591 = vld [vmem:[%s583 + $0x1c] sm:$0xf]
      %v592 = vld [vmem:[%s583 + $0x20] sm:$0xf]
      %v593 = vld [vmem:[%s583 + $0x24] sm:$0xf]
      %v594 = vld [vmem:[%s583 + $0x28] sm:$0xf]
      %v595 = vld [vmem:[%s583 + $0x2c] sm:$0xf]
      %v596 = vld [vmem:[%s583 + $0x30] sm:$0xf]
      %v597 = vld [vmem:[%s583 + $0x34] sm:$0xf]
      %v598 = vld [vmem:[%s583 + $0x38] sm:$0xf]
      %v599 = vld [vmem:[%s583 + $0x3c] sm:$0xf]
      %v601 = vunpack.c.l.b16 %v247
      %v602 = vpack.c.b16 %v601, %v601
      %vm603 = vsmask.f32 6400
      %v604 = vrot.slane %v287, 1
      %v605 = vrot.slane %v289, 2
      %v606 = vor.u32 %v604, %v605
      %v608 = vshll.u32 %v602, 16
      %v610 = vrot.slane %v608, 2
      %v611 = vsel %vm603, %v606, %v610
      %v629 = vunpack.c.l.b16 %v584
      %v630 = vunpack.c.l.b16 %v585
      %v631 = vunpack.c.l.b16 %v586
      %v632 = vunpack.c.l.b16 %v587
      %v633 = vunpack.c.l.b16 %v588
      %v634 = vunpack.c.l.b16 %v589
      %v635 = vunpack.c.l.b16 %v590
      %v636 = vunpack.c.l.b16 %v591
      %v637 = vunpack.c.l.b16 %v592
      %v638 = vunpack.c.l.b16 %v593
      %v639 = vunpack.c.l.b16 %v594
      %v640 = vunpack.c.l.b16 %v595
      %v641 = vunpack.c.l.b16 %v596
      %v642 = vunpack.c.l.b16 %v597
      %v643 = vunpack.c.l.b16 %v598
      %v644 = vunpack.c.l.b16 %v599
      %v645 = vpack.c.b16 %v630, %v629
      %v646 = vpack.c.b16 %v632, %v631
      %v647 = vpack.c.b16 %v634, %v633
      %v648 = vpack.c.b16 %v636, %v635
      %v649 = vpack.c.b16 %v638, %v637
      %v650 = vpack.c.b16 %v640, %v639
      %v651 = vpack.c.b16 %v642, %v641
      %v652 = vpack.c.b16 %v644, %v643
      %661 = vmatprep.subr.bf16.mxu0 0
      %662 = vmatpush1.bf16.msra.mxu0 %v652
      %663 = vmatprep.subr.bf16.mxu0 0
      %664 = vmatpush1.bf16.msra.mxu0 %v651
      %665 = vmatprep.subr.bf16.mxu0 0
      %666 = vmatpush1.bf16.msra.mxu0 %v650
      %667 = vmatprep.subr.bf16.mxu0 0
      %668 = vmatpush1.bf16.msra.mxu0 %v649
      %669 = vmatprep.subr.bf16.mxu0 0
      %670 = vmatpush1.bf16.msra.mxu0 %v648
      %671 = vmatprep.subr.bf16.mxu0 0
      %672 = vmatpush1.bf16.msra.mxu0 %v647
      %673 = vmatprep.subr.bf16.mxu0 0
      %674 = vmatpush1.bf16.msra.mxu0 %v646
      %675 = vmatprep.subr.bf16.mxu0 0
      %676 = vmatpush1.bf16.msra.mxu0 %v645
      %677 = vmatprep.subr.bf16.mxu0 0
      %678 = vmatpush2.bf16.msra.mxu0 0
      %679 = vmatprep.subr.bf16.mxu0 0
      %680 = vmatpush2.bf16.msra.mxu0 0
      %681 = vmatprep.subr.bf16.mxu0 0
      %682 = vmatpush2.bf16.msra.mxu0 0
      %683 = vmatprep.subr.bf16.mxu0 0
      %684 = vmatpush2.bf16.msra.mxu0 0
      %685 = vmatprep.subr.bf16.mxu0 0
      %686 = vmatpush2.bf16.msra.mxu0 0
      %687 = vmatprep.subr.bf16.mxu0 0
      %688 = vmatpush2.bf16.msra.mxu0 0
      %689 = vmatprep.subr.bf16.mxu0 0
      %690 = vmatpush2.bf16.msra.mxu0 0
      %691 = vmatprep.subr.bf16.mxu0 0
      %692 = vmatpush2.bf16.msra.mxu0 0
      %693 = vmatprep.mubr.bf16.mxu0 0
      %694 = vmatmul.mubr.bf16.gmra.mxu0 %v611
      %v695 = vpop.f32.mrf.mxu0
      %v696 = vadd.f32 0.0, %v695
      %v697 = vpop.f32.mrf.mxu0
      %v698 = vpop.f32.mrf.mxu0
      %v699 = vadd.f32 0.0, %v698
      %v700 = vpop.f32.mrf.mxu0
      %701 = vdwg.mxu0
      %v702 = vadd.f32 %v581, %v696
      %v703 = vadd.f32 %v582, %v699
      %s704 = sadd.s32 %s21, 1
      %s705 = smul.u32 %s704, 3
      %s706 = smul.addr %s705, 4
      %s707 = scalar_lea.vmem %s223, %s706
      %v708 = vld [vmem:[%s707] sm:$0xf]
      %v709 = vld [vmem:[%s707 + $0x4] sm:$0xf]
      %v710 = vld [vmem:[%s707 + $0x8] sm:$0x1]
      %s711 = scalar_lea.vmem %s1, 256
      %v712 = vld [vmem:[%s711] sm:$0xf]
      %v713 = vld [vmem:[%s711 + $0x4] sm:$0xf]
      %v714 = vld [vmem:[%s711 + $0x8] sm:$0xf]
      %v715 = vld [vmem:[%s711 + $0xc] sm:$0xf]
      %v716 = vld [vmem:[%s711 + $0x10] sm:$0xf]
      %v717 = vld [vmem:[%s711 + $0x14] sm:$0xf]
      %v718 = vld [vmem:[%s711 + $0x18] sm:$0xf]
      %v719 = vld [vmem:[%s711 + $0x1c] sm:$0xf]
      %v720 = vld [vmem:[%s711 + $0x20] sm:$0xf]
      %v721 = vld [vmem:[%s711 + $0x24] sm:$0xf]
      %v722 = vld [vmem:[%s711 + $0x28] sm:$0xf]
      %v723 = vld [vmem:[%s711 + $0x2c] sm:$0xf]
      %v724 = vld [vmem:[%s711 + $0x30] sm:$0xf]
      %v725 = vld [vmem:[%s711 + $0x34] sm:$0xf]
      %v726 = vld [vmem:[%s711 + $0x38] sm:$0xf]
      %v727 = vld [vmem:[%s711 + $0x3c] sm:$0xf]
      %v730 = vunpack.c.l.b16 %v708
      %v731 = vunpack.c.l.b16 %v709
      %v732 = vpack.c.b16 %v731, %v730
      %v750 = vunpack.c.l.b16 %v712
      %v751 = vunpack.c.l.b16 %v713
      %v752 = vunpack.c.l.b16 %v714
      %v753 = vunpack.c.l.b16 %v715
      %v754 = vunpack.c.l.b16 %v716
      %v755 = vunpack.c.l.b16 %v717
      %v756 = vunpack.c.l.b16 %v718
      %v757 = vunpack.c.l.b16 %v719
      %v758 = vunpack.c.l.b16 %v720
      %v759 = vunpack.c.l.b16 %v721
      %v760 = vunpack.c.l.b16 %v722
      %v761 = vunpack.c.l.b16 %v723
      %v762 = vunpack.c.l.b16 %v724
      %v763 = vunpack.c.l.b16 %v725
      %v764 = vunpack.c.l.b16 %v726
      %v765 = vunpack.c.l.b16 %v727
      %v766 = vpack.c.b16 %v751, %v750
      %v767 = vpack.c.b16 %v753, %v752
      %v768 = vpack.c.b16 %v755, %v754
      %v769 = vpack.c.b16 %v757, %v756
      %v770 = vpack.c.b16 %v759, %v758
      %v771 = vpack.c.b16 %v761, %v760
      %v772 = vpack.c.b16 %v763, %v762
      %v773 = vpack.c.b16 %v765, %v764
      %782 = vmatprep.subr.bf16.mxu0 0
      %783 = vmatpush1.bf16.msra.mxu0 %v773
      %784 = vmatprep.subr.bf16.mxu0 0
      %785 = vmatpush1.bf16.msra.mxu0 %v772
      %786 = vmatprep.subr.bf16.mxu0 0
      %787 = vmatpush1.bf16.msra.mxu0 %v771
      %788 = vmatprep.subr.bf16.mxu0 0
      %789 = vmatpush1.bf16.msra.mxu0 %v770
      %790 = vmatprep.subr.bf16.mxu0 0
      %791 = vmatpush1.bf16.msra.mxu0 %v769
      %792 = vmatprep.subr.bf16.mxu0 0
      %793 = vmatpush1.bf16.msra.mxu0 %v768
      %794 = vmatprep.subr.bf16.mxu0 0
      %795 = vmatpush1.bf16.msra.mxu0 %v767
      %796 = vmatprep.subr.bf16.mxu0 0
      %797 = vmatpush1.bf16.msra.mxu0 %v766
      %798 = vmatprep.subr.bf16.mxu0 0
      %799 = vmatpush2.bf16.msra.mxu0 0
      %800 = vmatprep.subr.bf16.mxu0 0
      %801 = vmatpush2.bf16.msra.mxu0 0
      %802 = vmatprep.subr.bf16.mxu0 0
      %803 = vmatpush2.bf16.msra.mxu0 0
      %804 = vmatprep.subr.bf16.mxu0 0
      %805 = vmatpush2.bf16.msra.mxu0 0
      %806 = vmatprep.subr.bf16.mxu0 0
      %807 = vmatpush2.bf16.msra.mxu0 0
      %808 = vmatprep.subr.bf16.mxu0 0
      %809 = vmatpush2.bf16.msra.mxu0 0
      %810 = vmatprep.subr.bf16.mxu0 0
      %811 = vmatpush2.bf16.msra.mxu0 0
      %812 = vmatprep.subr.bf16.mxu0 0
      %813 = vmatpush2.bf16.msra.mxu0 0
      %814 = vmatprep.mubr.bf16.mxu0 0
      %815 = vmatmul.mubr.bf16.gmra.mxu0 %v732
      %v816 = vpop.f32.mrf.mxu0
      %v817 = vadd.f32 0.0, %v816
      %v818 = vpop.f32.mrf.mxu0
      %v819 = vpop.f32.mrf.mxu0
      %v820 = vadd.f32 0.0, %v819
      %v821 = vpop.f32.mrf.mxu0
      %822 = vdwg.mxu0
      %v823 = vadd.f32 %v702, %v817
      %v824 = vadd.f32 %v703, %v820
      %s825 = scalar_lea.vmem %s1, 320
      %v826 = vld [vmem:[%s825] sm:$0xf]
      %v827 = vld [vmem:[%s825 + $0x4] sm:$0xf]
      %v828 = vld [vmem:[%s825 + $0x8] sm:$0xf]
      %v829 = vld [vmem:[%s825 + $0xc] sm:$0xf]
      %v830 = vld [vmem:[%s825 + $0x10] sm:$0xf]
      %v831 = vld [vmem:[%s825 + $0x14] sm:$0xf]
      %v832 = vld [vmem:[%s825 + $0x18] sm:$0xf]
      %v833 = vld [vmem:[%s825 + $0x1c] sm:$0xf]
      %v834 = vld [vmem:[%s825 + $0x20] sm:$0xf]
      %v835 = vld [vmem:[%s825 + $0x24] sm:$0xf]
      %v836 = vld [vmem:[%s825 + $0x28] sm:$0xf]
      %v837 = vld [vmem:[%s825 + $0x2c] sm:$0xf]
      %v838 = vld [vmem:[%s825 + $0x30] sm:$0xf]
      %v839 = vld [vmem:[%s825 + $0x34] sm:$0xf]
      %v840 = vld [vmem:[%s825 + $0x38] sm:$0xf]
      %v841 = vld [vmem:[%s825 + $0x3c] sm:$0xf]
      %v843 = vshrl.u32 %v732, 16
      %v845 = vshll.u32 %v732, 16
      %v847 = vrot.slane %v845, 1
      %v848 = vor.u32 %v843, %v847
      %v866 = vunpack.c.l.b16 %v826
      %v867 = vunpack.c.l.b16 %v827
      %v868 = vunpack.c.l.b16 %v828
      %v869 = vunpack.c.l.b16 %v829
      %v870 = vunpack.c.l.b16 %v830
      %v871 = vunpack.c.l.b16 %v831
      %v872 = vunpack.c.l.b16 %v832
      %v873 = vunpack.c.l.b16 %v833
      %v874 = vunpack.c.l.b16 %v834
      %v875 = vunpack.c.l.b16 %v835
      %v876 = vunpack.c.l.b16 %v836
      %v877 = vunpack.c.l.b16 %v837
      %v878 = vunpack.c.l.b16 %v838
      %v879 = vunpack.c.l.b16 %v839
      %v880 = vunpack.c.l.b16 %v840
      %v881 = vunpack.c.l.b16 %v841
      %v882 = vpack.c.b16 %v867, %v866
      %v883 = vpack.c.b16 %v869, %v868
      %v884 = vpack.c.b16 %v871, %v870
      %v885 = vpack.c.b16 %v873, %v872
      %v886 = vpack.c.b16 %v875, %v874
      %v887 = vpack.c.b16 %v877, %v876
      %v888 = vpack.c.b16 %v879, %v878
      %v889 = vpack.c.b16 %v881, %v880
      %898 = vmatprep.subr.bf16.mxu0 0
      %899 = vmatpush1.bf16.msra.mxu0 %v889
      %900 = vmatprep.subr.bf16.mxu0 0
      %901 = vmatpush1.bf16.msra.mxu0 %v888
      %902 = vmatprep.subr.bf16.mxu0 0
      %903 = vmatpush1.bf16.msra.mxu0 %v887
      %904 = vmatprep.subr.bf16.mxu0 0
      %905 = vmatpush1.bf16.msra.mxu0 %v886
      %906 = vmatprep.subr.bf16.mxu0 0
      %907 = vmatpush1.bf16.msra.mxu0 %v885
      %908 = vmatprep.subr.bf16.mxu0 0
      %909 = vmatpush1.bf16.msra.mxu0 %v884
      %910 = vmatprep.subr.bf16.mxu0 0
      %911 = vmatpush1.bf16.msra.mxu0 %v883
      %912 = vmatprep.subr.bf16.mxu0 0
      %913 = vmatpush1.bf16.msra.mxu0 %v882
      %914 = vmatprep.subr.bf16.mxu0 0
      %915 = vmatpush2.bf16.msra.mxu0 0
      %916 = vmatprep.subr.bf16.mxu0 0
      %917 = vmatpush2.bf16.msra.mxu0 0
      %918 = vmatprep.subr.bf16.mxu0 0
      %919 = vmatpush2.bf16.msra.mxu0 0
      %920 = vmatprep.subr.bf16.mxu0 0
      %921 = vmatpush2.bf16.msra.mxu0 0
      %922 = vmatprep.subr.bf16.mxu0 0
      %923 = vmatpush2.bf16.msra.mxu0 0
      %924 = vmatprep.subr.bf16.mxu0 0
      %925 = vmatpush2.bf16.msra.mxu0 0
      %926 = vmatprep.subr.bf16.mxu0 0
      %927 = vmatpush2.bf16.msra.mxu0 0
      %928 = vmatprep.subr.bf16.mxu0 0
      %929 = vmatpush2.bf16.msra.mxu0 0
      %930 = vmatprep.mubr.bf16.mxu0 0
      %931 = vmatmul.mubr.bf16.gmra.mxu0 %v848
      %v932 = vpop.f32.mrf.mxu0
      %v933 = vadd.f32 0.0, %v932
      %v934 = vpop.f32.mrf.mxu0
      %v935 = vpop.f32.mrf.mxu0
      %v936 = vadd.f32 0.0, %v935
      %v937 = vpop.f32.mrf.mxu0
      %938 = vdwg.mxu0
      %v939 = vadd.f32 %v823, %v933
      %v940 = vadd.f32 %v824, %v936
      %s941 = scalar_lea.vmem %s1, 384
      %v942 = vld [vmem:[%s941] sm:$0xf]
      %v943 = vld [vmem:[%s941 + $0x4] sm:$0xf]
      %v944 = vld [vmem:[%s941 + $0x8] sm:$0xf]
      %v945 = vld [vmem:[%s941 + $0xc] sm:$0xf]
      %v946 = vld [vmem:[%s941 + $0x10] sm:$0xf]
      %v947 = vld [vmem:[%s941 + $0x14] sm:$0xf]
      %v948 = vld [vmem:[%s941 + $0x18] sm:$0xf]
      %v949 = vld [vmem:[%s941 + $0x1c] sm:$0xf]
      %v950 = vld [vmem:[%s941 + $0x20] sm:$0xf]
      %v951 = vld [vmem:[%s941 + $0x24] sm:$0xf]
      %v952 = vld [vmem:[%s941 + $0x28] sm:$0xf]
      %v953 = vld [vmem:[%s941 + $0x2c] sm:$0xf]
      %v954 = vld [vmem:[%s941 + $0x30] sm:$0xf]
      %v955 = vld [vmem:[%s941 + $0x34] sm:$0xf]
      %v956 = vld [vmem:[%s941 + $0x38] sm:$0xf]
      %v957 = vld [vmem:[%s941 + $0x3c] sm:$0xf]
      %v958 = vrot.slane %v732, 1
      %v976 = vunpack.c.l.b16 %v942
      %v977 = vunpack.c.l.b16 %v943
      %v978 = vunpack.c.l.b16 %v944
      %v979 = vunpack.c.l.b16 %v945
      %v980 = vunpack.c.l.b16 %v946
      %v981 = vunpack.c.l.b16 %v947
      %v982 = vunpack.c.l.b16 %v948
      %v983 = vunpack.c.l.b16 %v949
      %v984 = vunpack.c.l.b16 %v950
      %v985 = vunpack.c.l.b16 %v951
      %v986 = vunpack.c.l.b16 %v952
      %v987 = vunpack.c.l.b16 %v953
      %v988 = vunpack.c.l.b16 %v954
      %v989 = vunpack.c.l.b16 %v955
      %v990 = vunpack.c.l.b16 %v956
      %v991 = vunpack.c.l.b16 %v957
      %v992 = vpack.c.b16 %v977, %v976
      %v993 = vpack.c.b16 %v979, %v978
      %v994 = vpack.c.b16 %v981, %v980
      %v995 = vpack.c.b16 %v983, %v982
      %v996 = vpack.c.b16 %v985, %v984
      %v997 = vpack.c.b16 %v987, %v986
      %v998 = vpack.c.b16 %v989, %v988
      %v999 = vpack.c.b16 %v991, %v990
      %1008 = vmatprep.subr.bf16.mxu0 0
      %1009 = vmatpush1.bf16.msra.mxu0 %v999
      %1010 = vmatprep.subr.bf16.mxu0 0
      %1011 = vmatpush1.bf16.msra.mxu0 %v998
      %1012 = vmatprep.subr.bf16.mxu0 0
      %1013 = vmatpush1.bf16.msra.mxu0 %v997
      %1014 = vmatprep.subr.bf16.mxu0 0
      %1015 = vmatpush1.bf16.msra.mxu0 %v996
      %1016 = vmatprep.subr.bf16.mxu0 0
      %1017 = vmatpush1.bf16.msra.mxu0 %v995
      %1018 = vmatprep.subr.bf16.mxu0 0
      %1019 = vmatpush1.bf16.msra.mxu0 %v994
      %1020 = vmatprep.subr.bf16.mxu0 0
      %1021 = vmatpush1.bf16.msra.mxu0 %v993
      %1022 = vmatprep.subr.bf16.mxu0 0
      %1023 = vmatpush1.bf16.msra.mxu0 %v992
      %1024 = vmatprep.subr.bf16.mxu0 0
      %1025 = vmatpush2.bf16.msra.mxu0 0
      %1026 = vmatprep.subr.bf16.mxu0 0
      %1027 = vmatpush2.bf16.msra.mxu0 0
      %1028 = vmatprep.subr.bf16.mxu0 0
      %1029 = vmatpush2.bf16.msra.mxu0 0
      %1030 = vmatprep.subr.bf16.mxu0 0
      %1031 = vmatpush2.bf16.msra.mxu0 0
      %1032 = vmatprep.subr.bf16.mxu0 0
      %1033 = vmatpush2.bf16.msra.mxu0 0
      %1034 = vmatprep.subr.bf16.mxu0 0
      %1035 = vmatpush2.bf16.msra.mxu0 0
      %1036 = vmatprep.subr.bf16.mxu0 0
      %1037 = vmatpush2.bf16.msra.mxu0 0
      %1038 = vmatprep.subr.bf16.mxu0 0
      %1039 = vmatpush2.bf16.msra.mxu0 0
      %1040 = vmatprep.mubr.bf16.mxu0 0
      %1041 = vmatmul.mubr.bf16.gmra.mxu0 %v958
      %v1042 = vpop.f32.mrf.mxu0
      %v1043 = vadd.f32 0.0, %v1042
      %v1044 = vpop.f32.mrf.mxu0
      %v1045 = vpop.f32.mrf.mxu0
      %v1046 = vadd.f32 0.0, %v1045
      %v1047 = vpop.f32.mrf.mxu0
      %1048 = vdwg.mxu0
      %v1049 = vadd.f32 %v939, %v1043
      %v1050 = vadd.f32 %v940, %v1046
      %s1051 = scalar_lea.vmem %s1, 448
      %v1052 = vld [vmem:[%s1051] sm:$0xf]
      %v1053 = vld [vmem:[%s1051 + $0x4] sm:$0xf]
      %v1054 = vld [vmem:[%s1051 + $0x8] sm:$0xf]
      %v1055 = vld [vmem:[%s1051 + $0xc] sm:$0xf]
      %v1056 = vld [vmem:[%s1051 + $0x10] sm:$0xf]
      %v1057 = vld [vmem:[%s1051 + $0x14] sm:$0xf]
      %v1058 = vld [vmem:[%s1051 + $0x18] sm:$0xf]
      %v1059 = vld [vmem:[%s1051 + $0x1c] sm:$0xf]
      %v1060 = vld [vmem:[%s1051 + $0x20] sm:$0xf]
      %v1061 = vld [vmem:[%s1051 + $0x24] sm:$0xf]
      %v1062 = vld [vmem:[%s1051 + $0x28] sm:$0xf]
      %v1063 = vld [vmem:[%s1051 + $0x2c] sm:$0xf]
      %v1064 = vld [vmem:[%s1051 + $0x30] sm:$0xf]
      %v1065 = vld [vmem:[%s1051 + $0x34] sm:$0xf]
      %v1066 = vld [vmem:[%s1051 + $0x38] sm:$0xf]
      %v1067 = vld [vmem:[%s1051 + $0x3c] sm:$0xf]
      %v1069 = vunpack.c.l.b16 %v710
      %v1070 = vpack.c.b16 %v1069, %v1069
      %v1071 = vrot.slane %v843, 1
      %v1072 = vrot.slane %v845, 2
      %v1073 = vor.u32 %v1071, %v1072
      %v1075 = vshll.u32 %v1070, 16
      %v1077 = vrot.slane %v1075, 2
      %v1078 = vsel %vm603, %v1073, %v1077
      %v1096 = vunpack.c.l.b16 %v1052
      %v1097 = vunpack.c.l.b16 %v1053
      %v1098 = vunpack.c.l.b16 %v1054
      %v1099 = vunpack.c.l.b16 %v1055
      %v1100 = vunpack.c.l.b16 %v1056
      %v1101 = vunpack.c.l.b16 %v1057
      %v1102 = vunpack.c.l.b16 %v1058
      %v1103 = vunpack.c.l.b16 %v1059
      %v1104 = vunpack.c.l.b16 %v1060
      %v1105 = vunpack.c.l.b16 %v1061
      %v1106 = vunpack.c.l.b16 %v1062
      %v1107 = vunpack.c.l.b16 %v1063
      %v1108 = vunpack.c.l.b16 %v1064
      %v1109 = vunpack.c.l.b16 %v1065
      %v1110 = vunpack.c.l.b16 %v1066
      %v1111 = vunpack.c.l.b16 %v1067
      %v1112 = vpack.c.b16 %v1097, %v1096
      %v1113 = vpack.c.b16 %v1099, %v1098
      %v1114 = vpack.c.b16 %v1101, %v1100
      %v1115 = vpack.c.b16 %v1103, %v1102
      %v1116 = vpack.c.b16 %v1105, %v1104
      %v1117 = vpack.c.b16 %v1107, %v1106
      %v1118 = vpack.c.b16 %v1109, %v1108
      %v1119 = vpack.c.b16 %v1111, %v1110
      %1128 = vmatprep.subr.bf16.mxu0 0
      %1129 = vmatpush1.bf16.msra.mxu0 %v1119
      %1130 = vmatprep.subr.bf16.mxu0 0
      %1131 = vmatpush1.bf16.msra.mxu0 %v1118
      %1132 = vmatprep.subr.bf16.mxu0 0
      %1133 = vmatpush1.bf16.msra.mxu0 %v1117
      %1134 = vmatprep.subr.bf16.mxu0 0
      %1135 = vmatpush1.bf16.msra.mxu0 %v1116
      %1136 = vmatprep.subr.bf16.mxu0 0
      %1137 = vmatpush1.bf16.msra.mxu0 %v1115
      %1138 = vmatprep.subr.bf16.mxu0 0
      %1139 = vmatpush1.bf16.msra.mxu0 %v1114
      %1140 = vmatprep.subr.bf16.mxu0 0
      %1141 = vmatpush1.bf16.msra.mxu0 %v1113
      %1142 = vmatprep.subr.bf16.mxu0 0
      %1143 = vmatpush1.bf16.msra.mxu0 %v1112
      %1144 = vmatprep.subr.bf16.mxu0 0
      %1145 = vmatpush2.bf16.msra.mxu0 0
      %1146 = vmatprep.subr.bf16.mxu0 0
      %1147 = vmatpush2.bf16.msra.mxu0 0
      %1148 = vmatprep.subr.bf16.mxu0 0
      %1149 = vmatpush2.bf16.msra.mxu0 0
      %1150 = vmatprep.subr.bf16.mxu0 0
      %1151 = vmatpush2.bf16.msra.mxu0 0
      %1152 = vmatprep.subr.bf16.mxu0 0
      %1153 = vmatpush2.bf16.msra.mxu0 0
      %1154 = vmatprep.subr.bf16.mxu0 0
      %1155 = vmatpush2.bf16.msra.mxu0 0
      %1156 = vmatprep.subr.bf16.mxu0 0
      %1157 = vmatpush2.bf16.msra.mxu0 0
      %1158 = vmatprep.subr.bf16.mxu0 0
      %1159 = vmatpush2.bf16.msra.mxu0 0
      %1160 = vmatprep.mubr.bf16.mxu0 0
      %1161 = vmatmul.mubr.bf16.gmra.mxu0 %v1078
      %v1162 = vpop.f32.mrf.mxu0
      %v1163 = vadd.f32 0.0, %v1162
      %v1164 = vpop.f32.mrf.mxu0
      %v1165 = vpop.f32.mrf.mxu0
      %v1166 = vadd.f32 0.0, %v1165
      %v1167 = vpop.f32.mrf.mxu0
      %1168 = vdwg.mxu0
      %v1169 = vadd.f32 %v1049, %v1163
      %v1170 = vadd.f32 %v1050, %v1166
      %s1171 = sadd.s32 %s21, 2
      %s1172 = smul.u32 %s1171, 3
      %s1173 = smul.addr %s1172, 4
      %s1174 = scalar_lea.vmem %s223, %s1173
      %v1175 = vld [vmem:[%s1174] sm:$0xf]
      %v1176 = vld [vmem:[%s1174 + $0x4] sm:$0xf]
      %v1177 = vld [vmem:[%s1174 + $0x8] sm:$0x1]
      %s1178 = scalar_lea.vmem %s1, 512
      %v1179 = vld [vmem:[%s1178] sm:$0xf]
      %v1180 = vld [vmem:[%s1178 + $0x4] sm:$0xf]
      %v1181 = vld [vmem:[%s1178 + $0x8] sm:$0xf]
      %v1182 = vld [vmem:[%s1178 + $0xc] sm:$0xf]
      %v1183 = vld [vmem:[%s1178 + $0x10] sm:$0xf]
      %v1184 = vld [vmem:[%s1178 + $0x14] sm:$0xf]
      %v1185 = vld [vmem:[%s1178 + $0x18] sm:$0xf]
      %v1186 = vld [vmem:[%s1178 + $0x1c] sm:$0xf]
      %v1187 = vld [vmem:[%s1178 + $0x20] sm:$0xf]
      %v1188 = vld [vmem:[%s1178 + $0x24] sm:$0xf]
      %v1189 = vld [vmem:[%s1178 + $0x28] sm:$0xf]
      %v1190 = vld [vmem:[%s1178 + $0x2c] sm:$0xf]
      %v1191 = vld [vmem:[%s1178 + $0x30] sm:$0xf]
      %v1192 = vld [vmem:[%s1178 + $0x34] sm:$0xf]
      %v1193 = vld [vmem:[%s1178 + $0x38] sm:$0xf]
      %v1194 = vld [vmem:[%s1178 + $0x3c] sm:$0xf]
      %v1197 = vunpack.c.l.b16 %v1175
      %v1198 = vunpack.c.l.b16 %v1176
      %v1199 = vpack.c.b16 %v1198, %v1197
      %v1217 = vunpack.c.l.b16 %v1179
      %v1218 = vunpack.c.l.b16 %v1180
      %v1219 = vunpack.c.l.b16 %v1181
      %v1220 = vunpack.c.l.b16 %v1182
      %v1221 = vunpack.c.l.b16 %v1183
      %v1222 = vunpack.c.l.b16 %v1184
      %v1223 = vunpack.c.l.b16 %v1185
      %v1224 = vunpack.c.l.b16 %v1186
      %v1225 = vunpack.c.l.b16 %v1187
      %v1226 = vunpack.c.l.b16 %v1188
      %v1227 = vunpack.c.l.b16 %v1189
      %v1228 = vunpack.c.l.b16 %v1190
      %v1229 = vunpack.c.l.b16 %v1191
      %v1230 = vunpack.c.l.b16 %v1192
      %v1231 = vunpack.c.l.b16 %v1193
      %v1232 = vunpack.c.l.b16 %v1194
      %v1233 = vpack.c.b16 %v1218, %v1217
      %v1234 = vpack.c.b16 %v1220, %v1219
      %v1235 = vpack.c.b16 %v1222, %v1221
      %v1236 = vpack.c.b16 %v1224, %v1223
      %v1237 = vpack.c.b16 %v1226, %v1225
      %v1238 = vpack.c.b16 %v1228, %v1227
      %v1239 = vpack.c.b16 %v1230, %v1229
      %v1240 = vpack.c.b16 %v1232, %v1231
      %1249 = vmatprep.subr.bf16.mxu0 0
      %1250 = vmatpush1.bf16.msra.mxu0 %v1240
      %1251 = vmatprep.subr.bf16.mxu0 0
      %1252 = vmatpush1.bf16.msra.mxu0 %v1239
      %1253 = vmatprep.subr.bf16.mxu0 0
      %1254 = vmatpush1.bf16.msra.mxu0 %v1238
      %1255 = vmatprep.subr.bf16.mxu0 0
      %1256 = vmatpush1.bf16.msra.mxu0 %v1237
      %1257 = vmatprep.subr.bf16.mxu0 0
      %1258 = vmatpush1.bf16.msra.mxu0 %v1236
      %1259 = vmatprep.subr.bf16.mxu0 0
      %1260 = vmatpush1.bf16.msra.mxu0 %v1235
      %1261 = vmatprep.subr.bf16.mxu0 0
      %1262 = vmatpush1.bf16.msra.mxu0 %v1234
      %1263 = vmatprep.subr.bf16.mxu0 0
      %1264 = vmatpush1.bf16.msra.mxu0 %v1233
      %1265 = vmatprep.subr.bf16.mxu0 0
      %1266 = vmatpush2.bf16.msra.mxu0 0
      %1267 = vmatprep.subr.bf16.mxu0 0
      %1268 = vmatpush2.bf16.msra.mxu0 0
      %1269 = vmatprep.subr.bf16.mxu0 0
      %1270 = vmatpush2.bf16.msra.mxu0 0
      %1271 = vmatprep.subr.bf16.mxu0 0
      %1272 = vmatpush2.bf16.msra.mxu0 0
      %1273 = vmatprep.subr.bf16.mxu0 0
      %1274 = vmatpush2.bf16.msra.mxu0 0
      %1275 = vmatprep.subr.bf16.mxu0 0
      %1276 = vmatpush2.bf16.msra.mxu0 0
      %1277 = vmatprep.subr.bf16.mxu0 0
      %1278 = vmatpush2.bf16.msra.mxu0 0
      %1279 = vmatprep.subr.bf16.mxu0 0
      %1280 = vmatpush2.bf16.msra.mxu0 0
      %1281 = vmatprep.mubr.bf16.mxu0 0
      %1282 = vmatmul.mubr.bf16.gmra.mxu0 %v1199
      %v1283 = vpop.f32.mrf.mxu0
      %v1284 = vadd.f32 0.0, %v1283
      %v1285 = vpop.f32.mrf.mxu0
      %v1286 = vpop.f32.mrf.mxu0
      %v1287 = vadd.f32 0.0, %v1286
      %v1288 = vpop.f32.mrf.mxu0
      %1289 = vdwg.mxu0
      %v1290 = vadd.f32 %v1169, %v1284
      %v1291 = vadd.f32 %v1170, %v1287
      %s1292 = scalar_lea.vmem %s1, 576
      %v1293 = vld [vmem:[%s1292] sm:$0xf]
      %v1294 = vld [vmem:[%s1292 + $0x4] sm:$0xf]
      %v1295 = vld [vmem:[%s1292 + $0x8] sm:$0xf]
      %v1296 = vld [vmem:[%s1292 + $0xc] sm:$0xf]
      %v1297 = vld [vmem:[%s1292 + $0x10] sm:$0xf]
      %v1298 = vld [vmem:[%s1292 + $0x14] sm:$0xf]
      %v1299 = vld [vmem:[%s1292 + $0x18] sm:$0xf]
      %v1300 = vld [vmem:[%s1292 + $0x1c] sm:$0xf]
      %v1301 = vld [vmem:[%s1292 + $0x20] sm:$0xf]
      %v1302 = vld [vmem:[%s1292 + $0x24] sm:$0xf]
      %v1303 = vld [vmem:[%s1292 + $0x28] sm:$0xf]
      %v1304 = vld [vmem:[%s1292 + $0x2c] sm:$0xf]
      %v1305 = vld [vmem:[%s1292 + $0x30] sm:$0xf]
      %v1306 = vld [vmem:[%s1292 + $0x34] sm:$0xf]
      %v1307 = vld [vmem:[%s1292 + $0x38] sm:$0xf]
      %v1308 = vld [vmem:[%s1292 + $0x3c] sm:$0xf]
      %v1310 = vshrl.u32 %v1199, 16
      %v1312 = vshll.u32 %v1199, 16
      %v1314 = vrot.slane %v1312, 1
      %v1315 = vor.u32 %v1310, %v1314
      %v1333 = vunpack.c.l.b16 %v1293
      %v1334 = vunpack.c.l.b16 %v1294
      %v1335 = vunpack.c.l.b16 %v1295
      %v1336 = vunpack.c.l.b16 %v1296
      %v1337 = vunpack.c.l.b16 %v1297
      %v1338 = vunpack.c.l.b16 %v1298
      %v1339 = vunpack.c.l.b16 %v1299
      %v1340 = vunpack.c.l.b16 %v1300
      %v1341 = vunpack.c.l.b16 %v1301
      %v1342 = vunpack.c.l.b16 %v1302
      %v1343 = vunpack.c.l.b16 %v1303
      %v1344 = vunpack.c.l.b16 %v1304
      %v1345 = vunpack.c.l.b16 %v1305
      %v1346 = vunpack.c.l.b16 %v1306
      %v1347 = vunpack.c.l.b16 %v1307
      %v1348 = vunpack.c.l.b16 %v1308
      %v1349 = vpack.c.b16 %v1334, %v1333
      %v1350 = vpack.c.b16 %v1336, %v1335
      %v1351 = vpack.c.b16 %v1338, %v1337
      %v1352 = vpack.c.b16 %v1340, %v1339
      %v1353 = vpack.c.b16 %v1342, %v1341
      %v1354 = vpack.c.b16 %v1344, %v1343
      %v1355 = vpack.c.b16 %v1346, %v1345
      %v1356 = vpack.c.b16 %v1348, %v1347
      %1365 = vmatprep.subr.bf16.mxu0 0
      %1366 = vmatpush1.bf16.msra.mxu0 %v1356
      %1367 = vmatprep.subr.bf16.mxu0 0
      %1368 = vmatpush1.bf16.msra.mxu0 %v1355
      %1369 = vmatprep.subr.bf16.mxu0 0
      %1370 = vmatpush1.bf16.msra.mxu0 %v1354
      %1371 = vmatprep.subr.bf16.mxu0 0
      %1372 = vmatpush1.bf16.msra.mxu0 %v1353
      %1373 = vmatprep.subr.bf16.mxu0 0
      %1374 = vmatpush1.bf16.msra.mxu0 %v1352
      %1375 = vmatprep.subr.bf16.mxu0 0
      %1376 = vmatpush1.bf16.msra.mxu0 %v1351
      %1377 = vmatprep.subr.bf16.mxu0 0
      %1378 = vmatpush1.bf16.msra.mxu0 %v1350
      %1379 = vmatprep.subr.bf16.mxu0 0
      %1380 = vmatpush1.bf16.msra.mxu0 %v1349
      %1381 = vmatprep.subr.bf16.mxu0 0
      %1382 = vmatpush2.bf16.msra.mxu0 0
      %1383 = vmatprep.subr.bf16.mxu0 0
      %1384 = vmatpush2.bf16.msra.mxu0 0
      %1385 = vmatprep.subr.bf16.mxu0 0
      %1386 = vmatpush2.bf16.msra.mxu0 0
      %1387 = vmatprep.subr.bf16.mxu0 0
      %1388 = vmatpush2.bf16.msra.mxu0 0
      %1389 = vmatprep.subr.bf16.mxu0 0
      %1390 = vmatpush2.bf16.msra.mxu0 0
      %1391 = vmatprep.subr.bf16.mxu0 0
      %1392 = vmatpush2.bf16.msra.mxu0 0
      %1393 = vmatprep.subr.bf16.mxu0 0
      %1394 = vmatpush2.bf16.msra.mxu0 0
      %1395 = vmatprep.subr.bf16.mxu0 0
      %1396 = vmatpush2.bf16.msra.mxu0 0
      %1397 = vmatprep.mubr.bf16.mxu0 0
      %1398 = vmatmul.mubr.bf16.gmra.mxu0 %v1315
      %v1399 = vpop.f32.mrf.mxu0
      %v1400 = vadd.f32 0.0, %v1399
      %v1401 = vpop.f32.mrf.mxu0
      %v1402 = vpop.f32.mrf.mxu0
      %v1403 = vadd.f32 0.0, %v1402
      %v1404 = vpop.f32.mrf.mxu0
      %1405 = vdwg.mxu0
      %v1406 = vadd.f32 %v1290, %v1400
      %v1407 = vadd.f32 %v1291, %v1403
      %s1408 = scalar_lea.vmem %s1, 640
      %v1409 = vld [vmem:[%s1408] sm:$0xf]
      %v1410 = vld [vmem:[%s1408 + $0x4] sm:$0xf]
      %v1411 = vld [vmem:[%s1408 + $0x8] sm:$0xf]
      %v1412 = vld [vmem:[%s1408 + $0xc] sm:$0xf]
      %v1413 = vld [vmem:[%s1408 + $0x10] sm:$0xf]
      %v1414 = vld [vmem:[%s1408 + $0x14] sm:$0xf]
      %v1415 = vld [vmem:[%s1408 + $0x18] sm:$0xf]
      %v1416 = vld [vmem:[%s1408 + $0x1c] sm:$0xf]
      %v1417 = vld [vmem:[%s1408 + $0x20] sm:$0xf]
      %v1418 = vld [vmem:[%s1408 + $0x24] sm:$0xf]
      %v1419 = vld [vmem:[%s1408 + $0x28] sm:$0xf]
      %v1420 = vld [vmem:[%s1408 + $0x2c] sm:$0xf]
      %v1421 = vld [vmem:[%s1408 + $0x30] sm:$0xf]
      %v1422 = vld [vmem:[%s1408 + $0x34] sm:$0xf]
      %v1423 = vld [vmem:[%s1408 + $0x38] sm:$0xf]
      %v1424 = vld [vmem:[%s1408 + $0x3c] sm:$0xf]
      %v1425 = vrot.slane %v1199, 1
      %v1443 = vunpack.c.l.b16 %v1409
      %v1444 = vunpack.c.l.b16 %v1410
      %v1445 = vunpack.c.l.b16 %v1411
      %v1446 = vunpack.c.l.b16 %v1412
      %v1447 = vunpack.c.l.b16 %v1413
      %v1448 = vunpack.c.l.b16 %v1414
      %v1449 = vunpack.c.l.b16 %v1415
      %v1450 = vunpack.c.l.b16 %v1416
      %v1451 = vunpack.c.l.b16 %v1417
      %v1452 = vunpack.c.l.b16 %v1418
      %v1453 = vunpack.c.l.b16 %v1419
      %v1454 = vunpack.c.l.b16 %v1420
      %v1455 = vunpack.c.l.b16 %v1421
      %v1456 = vunpack.c.l.b16 %v1422
      %v1457 = vunpack.c.l.b16 %v1423
      %v1458 = vunpack.c.l.b16 %v1424
      %v1459 = vpack.c.b16 %v1444, %v1443
      %v1460 = vpack.c.b16 %v1446, %v1445
      %v1461 = vpack.c.b16 %v1448, %v1447
      %v1462 = vpack.c.b16 %v1450, %v1449
      %v1463 = vpack.c.b16 %v1452, %v1451
      %v1464 = vpack.c.b16 %v1454, %v1453
      %v1465 = vpack.c.b16 %v1456, %v1455
      %v1466 = vpack.c.b16 %v1458, %v1457
      %1475 = vmatprep.subr.bf16.mxu0 0
      %1476 = vmatpush1.bf16.msra.mxu0 %v1466
      %1477 = vmatprep.subr.bf16.mxu0 0
      %1478 = vmatpush1.bf16.msra.mxu0 %v1465
      %1479 = vmatprep.subr.bf16.mxu0 0
      %1480 = vmatpush1.bf16.msra.mxu0 %v1464
      %1481 = vmatprep.subr.bf16.mxu0 0
      %1482 = vmatpush1.bf16.msra.mxu0 %v1463
      %1483 = vmatprep.subr.bf16.mxu0 0
      %1484 = vmatpush1.bf16.msra.mxu0 %v1462
      %1485 = vmatprep.subr.bf16.mxu0 0
      %1486 = vmatpush1.bf16.msra.mxu0 %v1461
      %1487 = vmatprep.subr.bf16.mxu0 0
      %1488 = vmatpush1.bf16.msra.mxu0 %v1460
      %1489 = vmatprep.subr.bf16.mxu0 0
      %1490 = vmatpush1.bf16.msra.mxu0 %v1459
      %1491 = vmatprep.subr.bf16.mxu0 0
      %1492 = vmatpush2.bf16.msra.mxu0 0
      %1493 = vmatprep.subr.bf16.mxu0 0
      %1494 = vmatpush2.bf16.msra.mxu0 0
      %1495 = vmatprep.subr.bf16.mxu0 0
      %1496 = vmatpush2.bf16.msra.mxu0 0
      %1497 = vmatprep.subr.bf16.mxu0 0
      %1498 = vmatpush2.bf16.msra.mxu0 0
      %1499 = vmatprep.subr.bf16.mxu0 0
      %1500 = vmatpush2.bf16.msra.mxu0 0
      %1501 = vmatprep.subr.bf16.mxu0 0
      %1502 = vmatpush2.bf16.msra.mxu0 0
      %1503 = vmatprep.subr.bf16.mxu0 0
      %1504 = vmatpush2.bf16.msra.mxu0 0
      %1505 = vmatprep.subr.bf16.mxu0 0
      %1506 = vmatpush2.bf16.msra.mxu0 0
      %1507 = vmatprep.mubr.bf16.mxu0 0
      %1508 = vmatmul.mubr.bf16.gmra.mxu0 %v1425
      %v1509 = vpop.f32.mrf.mxu0
      %v1510 = vadd.f32 0.0, %v1509
      %v1511 = vpop.f32.mrf.mxu0
      %v1512 = vpop.f32.mrf.mxu0
      %v1513 = vadd.f32 0.0, %v1512
      %v1514 = vpop.f32.mrf.mxu0
      %1515 = vdwg.mxu0
      %v1516 = vadd.f32 %v1406, %v1510
      %v1517 = vadd.f32 %v1407, %v1513
      %s1518 = scalar_lea.vmem %s1, 704
      %v1519 = vld [vmem:[%s1518] sm:$0xf]
      %v1520 = vld [vmem:[%s1518 + $0x4] sm:$0xf]
      %v1521 = vld [vmem:[%s1518 + $0x8] sm:$0xf]
      %v1522 = vld [vmem:[%s1518 + $0xc] sm:$0xf]
      %v1523 = vld [vmem:[%s1518 + $0x10] sm:$0xf]
      %v1524 = vld [vmem:[%s1518 + $0x14] sm:$0xf]
      %v1525 = vld [vmem:[%s1518 + $0x18] sm:$0xf]
      %v1526 = vld [vmem:[%s1518 + $0x1c] sm:$0xf]
      %v1527 = vld [vmem:[%s1518 + $0x20] sm:$0xf]
      %v1528 = vld [vmem:[%s1518 + $0x24] sm:$0xf]
      %v1529 = vld [vmem:[%s1518 + $0x28] sm:$0xf]
      %v1530 = vld [vmem:[%s1518 + $0x2c] sm:$0xf]
      %v1531 = vld [vmem:[%s1518 + $0x30] sm:$0xf]
      %v1532 = vld [vmem:[%s1518 + $0x34] sm:$0xf]
      %v1533 = vld [vmem:[%s1518 + $0x38] sm:$0xf]
      %v1534 = vld [vmem:[%s1518 + $0x3c] sm:$0xf]
      %v1536 = vunpack.c.l.b16 %v1177
      %v1537 = vpack.c.b16 %v1536, %v1536
      %v1538 = vrot.slane %v1310, 1
      %v1539 = vrot.slane %v1312, 2
      %v1540 = vor.u32 %v1538, %v1539
      %v1542 = vshll.u32 %v1537, 16
      %v1544 = vrot.slane %v1542, 2
      %v1545 = vsel %vm603, %v1540, %v1544
      %v1563 = vunpack.c.l.b16 %v1519
      %v1564 = vunpack.c.l.b16 %v1520
      %v1565 = vunpack.c.l.b16 %v1521
      %v1566 = vunpack.c.l.b16 %v1522
      %v1567 = vunpack.c.l.b16 %v1523
      %v1568 = vunpack.c.l.b16 %v1524
      %v1569 = vunpack.c.l.b16 %v1525
      %v1570 = vunpack.c.l.b16 %v1526
      %v1571 = vunpack.c.l.b16 %v1527
      %v1572 = vunpack.c.l.b16 %v1528
      %v1573 = vunpack.c.l.b16 %v1529
      %v1574 = vunpack.c.l.b16 %v1530
      %v1575 = vunpack.c.l.b16 %v1531
      %v1576 = vunpack.c.l.b16 %v1532
      %v1577 = vunpack.c.l.b16 %v1533
      %v1578 = vunpack.c.l.b16 %v1534
      %v1579 = vpack.c.b16 %v1564, %v1563
      %v1580 = vpack.c.b16 %v1566, %v1565
      %v1581 = vpack.c.b16 %v1568, %v1567
      %v1582 = vpack.c.b16 %v1570, %v1569
      %v1583 = vpack.c.b16 %v1572, %v1571
      %v1584 = vpack.c.b16 %v1574, %v1573
      %v1585 = vpack.c.b16 %v1576, %v1575
      %v1586 = vpack.c.b16 %v1578, %v1577
      %1595 = vmatprep.subr.bf16.mxu0 0
      %1596 = vmatpush1.bf16.msra.mxu0 %v1586
      %1597 = vmatprep.subr.bf16.mxu0 0
      %1598 = vmatpush1.bf16.msra.mxu0 %v1585
      %1599 = vmatprep.subr.bf16.mxu0 0
      %1600 = vmatpush1.bf16.msra.mxu0 %v1584
      %1601 = vmatprep.subr.bf16.mxu0 0
      %1602 = vmatpush1.bf16.msra.mxu0 %v1583
      %1603 = vmatprep.subr.bf16.mxu0 0
      %1604 = vmatpush1.bf16.msra.mxu0 %v1582
      %1605 = vmatprep.subr.bf16.mxu0 0
      %1606 = vmatpush1.bf16.msra.mxu0 %v1581
      %1607 = vmatprep.subr.bf16.mxu0 0
      %1608 = vmatpush1.bf16.msra.mxu0 %v1580
      %1609 = vmatprep.subr.bf16.mxu0 0
      %1610 = vmatpush1.bf16.msra.mxu0 %v1579
      %1611 = vmatprep.subr.bf16.mxu0 0
      %1612 = vmatpush2.bf16.msra.mxu0 0
      %1613 = vmatprep.subr.bf16.mxu0 0
      %1614 = vmatpush2.bf16.msra.mxu0 0
      %1615 = vmatprep.subr.bf16.mxu0 0
      %1616 = vmatpush2.bf16.msra.mxu0 0
      %1617 = vmatprep.subr.bf16.mxu0 0
      %1618 = vmatpush2.bf16.msra.mxu0 0
      %1619 = vmatprep.subr.bf16.mxu0 0
      %1620 = vmatpush2.bf16.msra.mxu0 0
      %1621 = vmatprep.subr.bf16.mxu0 0
      %1622 = vmatpush2.bf16.msra.mxu0 0
      %1623 = vmatprep.subr.bf16.mxu0 0
      %1624 = vmatpush2.bf16.msra.mxu0 0
      %1625 = vmatprep.subr.bf16.mxu0 0
      %1626 = vmatpush2.bf16.msra.mxu0 0
      %1627 = vmatprep.mubr.bf16.mxu0 0
      %1628 = vmatmul.mubr.bf16.gmra.mxu0 %v1545
      %v1629 = vpop.f32.mrf.mxu0
      %v1630 = vadd.f32 0.0, %v1629
      %v1631 = vpop.f32.mrf.mxu0
      %v1632 = vpop.f32.mrf.mxu0
      %v1633 = vadd.f32 0.0, %v1632
      %v1634 = vpop.f32.mrf.mxu0
      %1635 = vdwg.mxu0
      %v1636 = vadd.f32 %v1516, %v1630
      %v1637 = vadd.f32 %v1517, %v1633
      %s1638 = sadd.s32 %s21, 3
      %s1639 = smul.u32 %s1638, 3
      %s1640 = smul.addr %s1639, 4
      %s1641 = scalar_lea.vmem %s223, %s1640
      %v1642 = vld [vmem:[%s1641] sm:$0xf]
      %v1643 = vld [vmem:[%s1641 + $0x4] sm:$0xf]
      %v1644 = vld [vmem:[%s1641 + $0x8] sm:$0x1]
      %s1645 = scalar_lea.vmem %s1, 768
      %v1646 = vld [vmem:[%s1645] sm:$0xf]
      %v1647 = vld [vmem:[%s1645 + $0x4] sm:$0xf]
      %v1648 = vld [vmem:[%s1645 + $0x8] sm:$0xf]
      %v1649 = vld [vmem:[%s1645 + $0xc] sm:$0xf]
      %v1650 = vld [vmem:[%s1645 + $0x10] sm:$0xf]
      %v1651 = vld [vmem:[%s1645 + $0x14] sm:$0xf]
      %v1652 = vld [vmem:[%s1645 + $0x18] sm:$0xf]
      %v1653 = vld [vmem:[%s1645 + $0x1c] sm:$0xf]
      %v1654 = vld [vmem:[%s1645 + $0x20] sm:$0xf]
      %v1655 = vld [vmem:[%s1645 + $0x24] sm:$0xf]
      %v1656 = vld [vmem:[%s1645 + $0x28] sm:$0xf]
      %v1657 = vld [vmem:[%s1645 + $0x2c] sm:$0xf]
      %v1658 = vld [vmem:[%s1645 + $0x30] sm:$0xf]
      %v1659 = vld [vmem:[%s1645 + $0x34] sm:$0xf]
      %v1660 = vld [vmem:[%s1645 + $0x38] sm:$0xf]
      %v1661 = vld [vmem:[%s1645 + $0x3c] sm:$0xf]
      %v1664 = vunpack.c.l.b16 %v1642
      %v1665 = vunpack.c.l.b16 %v1643
      %v1666 = vpack.c.b16 %v1665, %v1664
      %v1684 = vunpack.c.l.b16 %v1646
      %v1685 = vunpack.c.l.b16 %v1647
      %v1686 = vunpack.c.l.b16 %v1648
      %v1687 = vunpack.c.l.b16 %v1649
      %v1688 = vunpack.c.l.b16 %v1650
      %v1689 = vunpack.c.l.b16 %v1651
      %v1690 = vunpack.c.l.b16 %v1652
      %v1691 = vunpack.c.l.b16 %v1653
      %v1692 = vunpack.c.l.b16 %v1654
      %v1693 = vunpack.c.l.b16 %v1655
      %v1694 = vunpack.c.l.b16 %v1656
      %v1695 = vunpack.c.l.b16 %v1657
      %v1696 = vunpack.c.l.b16 %v1658
      %v1697 = vunpack.c.l.b16 %v1659
      %v1698 = vunpack.c.l.b16 %v1660
      %v1699 = vunpack.c.l.b16 %v1661
      %v1700 = vpack.c.b16 %v1685, %v1684
      %v1701 = vpack.c.b16 %v1687, %v1686
      %v1702 = vpack.c.b16 %v1689, %v1688
      %v1703 = vpack.c.b16 %v1691, %v1690
      %v1704 = vpack.c.b16 %v1693, %v1692
      %v1705 = vpack.c.b16 %v1695, %v1694
      %v1706 = vpack.c.b16 %v1697, %v1696
      %v1707 = vpack.c.b16 %v1699, %v1698
      %1716 = vmatprep.subr.bf16.mxu0 0
      %1717 = vmatpush1.bf16.msra.mxu0 %v1707
      %1718 = vmatprep.subr.bf16.mxu0 0
      %1719 = vmatpush1.bf16.msra.mxu0 %v1706
      %1720 = vmatprep.subr.bf16.mxu0 0
      %1721 = vmatpush1.bf16.msra.mxu0 %v1705
      %1722 = vmatprep.subr.bf16.mxu0 0
      %1723 = vmatpush1.bf16.msra.mxu0 %v1704
      %1724 = vmatprep.subr.bf16.mxu0 0
      %1725 = vmatpush1.bf16.msra.mxu0 %v1703
      %1726 = vmatprep.subr.bf16.mxu0 0
      %1727 = vmatpush1.bf16.msra.mxu0 %v1702
      %1728 = vmatprep.subr.bf16.mxu0 0
      %1729 = vmatpush1.bf16.msra.mxu0 %v1701
      %1730 = vmatprep.subr.bf16.mxu0 0
      %1731 = vmatpush1.bf16.msra.mxu0 %v1700
      %1732 = vmatprep.subr.bf16.mxu0 0
      %1733 = vmatpush2.bf16.msra.mxu0 0
      %1734 = vmatprep.subr.bf16.mxu0 0
      %1735 = vmatpush2.bf16.msra.mxu0 0
      %1736 = vmatprep.subr.bf16.mxu0 0
      %1737 = vmatpush2.bf16.msra.mxu0 0
      %1738 = vmatprep.subr.bf16.mxu0 0
      %1739 = vmatpush2.bf16.msra.mxu0 0
      %1740 = vmatprep.subr.bf16.mxu0 0
      %1741 = vmatpush2.bf16.msra.mxu0 0
      %1742 = vmatprep.subr.bf16.mxu0 0
      %1743 = vmatpush2.bf16.msra.mxu0 0
      %1744 = vmatprep.subr.bf16.mxu0 0
      %1745 = vmatpush2.bf16.msra.mxu0 0
      %1746 = vmatprep.subr.bf16.mxu0 0
      %1747 = vmatpush2.bf16.msra.mxu0 0
      %1748 = vmatprep.mubr.bf16.mxu0 0
      %1749 = vmatmul.mubr.bf16.gmra.mxu0 %v1666
      %v1750 = vpop.f32.mrf.mxu0
      %v1751 = vadd.f32 0.0, %v1750
      %v1752 = vpop.f32.mrf.mxu0
      %v1753 = vpop.f32.mrf.mxu0
      %v1754 = vadd.f32 0.0, %v1753
      %v1755 = vpop.f32.mrf.mxu0
      %1756 = vdwg.mxu0
      %v1757 = vadd.f32 %v1636, %v1751
      %v1758 = vadd.f32 %v1637, %v1754
      %s1759 = scalar_lea.vmem %s1, 832
      %v1760 = vld [vmem:[%s1759] sm:$0xf]
      %v1761 = vld [vmem:[%s1759 + $0x4] sm:$0xf]
      %v1762 = vld [vmem:[%s1759 + $0x8] sm:$0xf]
      %v1763 = vld [vmem:[%s1759 + $0xc] sm:$0xf]
      %v1764 = vld [vmem:[%s1759 + $0x10] sm:$0xf]
      %v1765 = vld [vmem:[%s1759 + $0x14] sm:$0xf]
      %v1766 = vld [vmem:[%s1759 + $0x18] sm:$0xf]
      %v1767 = vld [vmem:[%s1759 + $0x1c] sm:$0xf]
      %v1768 = vld [vmem:[%s1759 + $0x20] sm:$0xf]
      %v1769 = vld [vmem:[%s1759 + $0x24] sm:$0xf]
      %v1770 = vld [vmem:[%s1759 + $0x28] sm:$0xf]
      %v1771 = vld [vmem:[%s1759 + $0x2c] sm:$0xf]
      %v1772 = vld [vmem:[%s1759 + $0x30] sm:$0xf]
      %v1773 = vld [vmem:[%s1759 + $0x34] sm:$0xf]
      %v1774 = vld [vmem:[%s1759 + $0x38] sm:$0xf]
      %v1775 = vld [vmem:[%s1759 + $0x3c] sm:$0xf]
      %v1777 = vshrl.u32 %v1666, 16
      %v1779 = vshll.u32 %v1666, 16
      %v1781 = vrot.slane %v1779, 1
      %v1782 = vor.u32 %v1777, %v1781
      %v1800 = vunpack.c.l.b16 %v1760
      %v1801 = vunpack.c.l.b16 %v1761
      %v1802 = vunpack.c.l.b16 %v1762
      %v1803 = vunpack.c.l.b16 %v1763
      %v1804 = vunpack.c.l.b16 %v1764
      %v1805 = vunpack.c.l.b16 %v1765
      %v1806 = vunpack.c.l.b16 %v1766
      %v1807 = vunpack.c.l.b16 %v1767
      %v1808 = vunpack.c.l.b16 %v1768
      %v1809 = vunpack.c.l.b16 %v1769
      %v1810 = vunpack.c.l.b16 %v1770
      %v1811 = vunpack.c.l.b16 %v1771
      %v1812 = vunpack.c.l.b16 %v1772
      %v1813 = vunpack.c.l.b16 %v1773
      %v1814 = vunpack.c.l.b16 %v1774
      %v1815 = vunpack.c.l.b16 %v1775
      %v1816 = vpack.c.b16 %v1801, %v1800
      %v1817 = vpack.c.b16 %v1803, %v1802
      %v1818 = vpack.c.b16 %v1805, %v1804
      %v1819 = vpack.c.b16 %v1807, %v1806
      %v1820 = vpack.c.b16 %v1809, %v1808
      %v1821 = vpack.c.b16 %v1811, %v1810
      %v1822 = vpack.c.b16 %v1813, %v1812
      %v1823 = vpack.c.b16 %v1815, %v1814
      %1832 = vmatprep.subr.bf16.mxu0 0
      %1833 = vmatpush1.bf16.msra.mxu0 %v1823
      %1834 = vmatprep.subr.bf16.mxu0 0
      %1835 = vmatpush1.bf16.msra.mxu0 %v1822
      %1836 = vmatprep.subr.bf16.mxu0 0
      %1837 = vmatpush1.bf16.msra.mxu0 %v1821
      %1838 = vmatprep.subr.bf16.mxu0 0
      %1839 = vmatpush1.bf16.msra.mxu0 %v1820
      %1840 = vmatprep.subr.bf16.mxu0 0
      %1841 = vmatpush1.bf16.msra.mxu0 %v1819
      %1842 = vmatprep.subr.bf16.mxu0 0
      %1843 = vmatpush1.bf16.msra.mxu0 %v1818
      %1844 = vmatprep.subr.bf16.mxu0 0
      %1845 = vmatpush1.bf16.msra.mxu0 %v1817
      %1846 = vmatprep.subr.bf16.mxu0 0
      %1847 = vmatpush1.bf16.msra.mxu0 %v1816
      %1848 = vmatprep.subr.bf16.mxu0 0
      %1849 = vmatpush2.bf16.msra.mxu0 0
      %1850 = vmatprep.subr.bf16.mxu0 0
      %1851 = vmatpush2.bf16.msra.mxu0 0
      %1852 = vmatprep.subr.bf16.mxu0 0
      %1853 = vmatpush2.bf16.msra.mxu0 0
      %1854 = vmatprep.subr.bf16.mxu0 0
      %1855 = vmatpush2.bf16.msra.mxu0 0
      %1856 = vmatprep.subr.bf16.mxu0 0
      %1857 = vmatpush2.bf16.msra.mxu0 0
      %1858 = vmatprep.subr.bf16.mxu0 0
      %1859 = vmatpush2.bf16.msra.mxu0 0
      %1860 = vmatprep.subr.bf16.mxu0 0
      %1861 = vmatpush2.bf16.msra.mxu0 0
      %1862 = vmatprep.subr.bf16.mxu0 0
      %1863 = vmatpush2.bf16.msra.mxu0 0
      %1864 = vmatprep.mubr.bf16.mxu0 0
      %1865 = vmatmul.mubr.bf16.gmra.mxu0 %v1782
      %v1866 = vpop.f32.mrf.mxu0
      %v1867 = vadd.f32 0.0, %v1866
      %v1868 = vpop.f32.mrf.mxu0
      %v1869 = vpop.f32.mrf.mxu0
      %v1870 = vadd.f32 0.0, %v1869
      %v1871 = vpop.f32.mrf.mxu0
      %1872 = vdwg.mxu0
      %v1873 = vadd.f32 %v1757, %v1867
      %v1874 = vadd.f32 %v1758, %v1870
      %s1875 = scalar_lea.vmem %s1, 896
      %v1876 = vld [vmem:[%s1875] sm:$0xf]
      %v1877 = vld [vmem:[%s1875 + $0x4] sm:$0xf]
      %v1878 = vld [vmem:[%s1875 + $0x8] sm:$0xf]
      %v1879 = vld [vmem:[%s1875 + $0xc] sm:$0xf]
      %v1880 = vld [vmem:[%s1875 + $0x10] sm:$0xf]
      %v1881 = vld [vmem:[%s1875 + $0x14] sm:$0xf]
      %v1882 = vld [vmem:[%s1875 + $0x18] sm:$0xf]
      %v1883 = vld [vmem:[%s1875 + $0x1c] sm:$0xf]
      %v1884 = vld [vmem:[%s1875 + $0x20] sm:$0xf]
      %v1885 = vld [vmem:[%s1875 + $0x24] sm:$0xf]
      %v1886 = vld [vmem:[%s1875 + $0x28] sm:$0xf]
      %v1887 = vld [vmem:[%s1875 + $0x2c] sm:$0xf]
      %v1888 = vld [vmem:[%s1875 + $0x30] sm:$0xf]
      %v1889 = vld [vmem:[%s1875 + $0x34] sm:$0xf]
      %v1890 = vld [vmem:[%s1875 + $0x38] sm:$0xf]
      %v1891 = vld [vmem:[%s1875 + $0x3c] sm:$0xf]
      %v1892 = vrot.slane %v1666, 1
      %v1910 = vunpack.c.l.b16 %v1876
      %v1911 = vunpack.c.l.b16 %v1877
      %v1912 = vunpack.c.l.b16 %v1878
      %v1913 = vunpack.c.l.b16 %v1879
      %v1914 = vunpack.c.l.b16 %v1880
      %v1915 = vunpack.c.l.b16 %v1881
      %v1916 = vunpack.c.l.b16 %v1882
      %v1917 = vunpack.c.l.b16 %v1883
      %v1918 = vunpack.c.l.b16 %v1884
      %v1919 = vunpack.c.l.b16 %v1885
      %v1920 = vunpack.c.l.b16 %v1886
      %v1921 = vunpack.c.l.b16 %v1887
      %v1922 = vunpack.c.l.b16 %v1888
      %v1923 = vunpack.c.l.b16 %v1889
      %v1924 = vunpack.c.l.b16 %v1890
      %v1925 = vunpack.c.l.b16 %v1891
      %v1926 = vpack.c.b16 %v1911, %v1910
      %v1927 = vpack.c.b16 %v1913, %v1912
      %v1928 = vpack.c.b16 %v1915, %v1914
      %v1929 = vpack.c.b16 %v1917, %v1916
      %v1930 = vpack.c.b16 %v1919, %v1918
      %v1931 = vpack.c.b16 %v1921, %v1920
      %v1932 = vpack.c.b16 %v1923, %v1922
      %v1933 = vpack.c.b16 %v1925, %v1924
      %1942 = vmatprep.subr.bf16.mxu0 0
      %1943 = vmatpush1.bf16.msra.mxu0 %v1933
      %1944 = vmatprep.subr.bf16.mxu0 0
      %1945 = vmatpush1.bf16.msra.mxu0 %v1932
      %1946 = vmatprep.subr.bf16.mxu0 0
      %1947 = vmatpush1.bf16.msra.mxu0 %v1931
      %1948 = vmatprep.subr.bf16.mxu0 0
      %1949 = vmatpush1.bf16.msra.mxu0 %v1930
      %1950 = vmatprep.subr.bf16.mxu0 0
      %1951 = vmatpush1.bf16.msra.mxu0 %v1929
      %1952 = vmatprep.subr.bf16.mxu0 0
      %1953 = vmatpush1.bf16.msra.mxu0 %v1928
      %1954 = vmatprep.subr.bf16.mxu0 0
      %1955 = vmatpush1.bf16.msra.mxu0 %v1927
      %1956 = vmatprep.subr.bf16.mxu0 0
      %1957 = vmatpush1.bf16.msra.mxu0 %v1926
      %1958 = vmatprep.subr.bf16.mxu0 0
      %1959 = vmatpush2.bf16.msra.mxu0 0
      %1960 = vmatprep.subr.bf16.mxu0 0
      %1961 = vmatpush2.bf16.msra.mxu0 0
      %1962 = vmatprep.subr.bf16.mxu0 0
      %1963 = vmatpush2.bf16.msra.mxu0 0
      %1964 = vmatprep.subr.bf16.mxu0 0
      %1965 = vmatpush2.bf16.msra.mxu0 0
      %1966 = vmatprep.subr.bf16.mxu0 0
      %1967 = vmatpush2.bf16.msra.mxu0 0
      %1968 = vmatprep.subr.bf16.mxu0 0
      %1969 = vmatpush2.bf16.msra.mxu0 0
      %1970 = vmatprep.subr.bf16.mxu0 0
      %1971 = vmatpush2.bf16.msra.mxu0 0
      %1972 = vmatprep.subr.bf16.mxu0 0
      %1973 = vmatpush2.bf16.msra.mxu0 0
      %1974 = vmatprep.mubr.bf16.mxu0 0
      %1975 = vmatmul.mubr.bf16.gmra.mxu0 %v1892
      %v1976 = vpop.f32.mrf.mxu0
      %v1977 = vadd.f32 0.0, %v1976
      %v1978 = vpop.f32.mrf.mxu0
      %v1979 = vpop.f32.mrf.mxu0
      %v1980 = vadd.f32 0.0, %v1979
      %v1981 = vpop.f32.mrf.mxu0
      %1982 = vdwg.mxu0
      %v1983 = vadd.f32 %v1873, %v1977
      %v1984 = vadd.f32 %v1874, %v1980
      %s1985 = scalar_lea.vmem %s1, 960
      %v1986 = vld [vmem:[%s1985] sm:$0xf]
      %v1987 = vld [vmem:[%s1985 + $0x4] sm:$0xf]
      %v1988 = vld [vmem:[%s1985 + $0x8] sm:$0xf]
      %v1989 = vld [vmem:[%s1985 + $0xc] sm:$0xf]
      %v1990 = vld [vmem:[%s1985 + $0x10] sm:$0xf]
      %v1991 = vld [vmem:[%s1985 + $0x14] sm:$0xf]
      %v1992 = vld [vmem:[%s1985 + $0x18] sm:$0xf]
      %v1993 = vld [vmem:[%s1985 + $0x1c] sm:$0xf]
      %v1994 = vld [vmem:[%s1985 + $0x20] sm:$0xf]
      %v1995 = vld [vmem:[%s1985 + $0x24] sm:$0xf]
      %v1996 = vld [vmem:[%s1985 + $0x28] sm:$0xf]
      %v1997 = vld [vmem:[%s1985 + $0x2c] sm:$0xf]
      %v1998 = vld [vmem:[%s1985 + $0x30] sm:$0xf]
      %v1999 = vld [vmem:[%s1985 + $0x34] sm:$0xf]
      %v2000 = vld [vmem:[%s1985 + $0x38] sm:$0xf]
      %v2001 = vld [vmem:[%s1985 + $0x3c] sm:$0xf]
      %v2003 = vunpack.c.l.b16 %v1644
      %v2004 = vpack.c.b16 %v2003, %v2003
      %v2005 = vrot.slane %v1777, 1
      %v2006 = vrot.slane %v1779, 2
      %v2007 = vor.u32 %v2005, %v2006
      %v2009 = vshll.u32 %v2004, 16
      %v2011 = vrot.slane %v2009, 2
      %v2012 = vsel %vm603, %v2007, %v2011
      %v2030 = vunpack.c.l.b16 %v1986
      %v2031 = vunpack.c.l.b16 %v1987
      %v2032 = vunpack.c.l.b16 %v1988
      %v2033 = vunpack.c.l.b16 %v1989
      %v2034 = vunpack.c.l.b16 %v1990
      %v2035 = vunpack.c.l.b16 %v1991
      %v2036 = vunpack.c.l.b16 %v1992
      %v2037 = vunpack.c.l.b16 %v1993
      %v2038 = vunpack.c.l.b16 %v1994
      %v2039 = vunpack.c.l.b16 %v1995
      %v2040 = vunpack.c.l.b16 %v1996
      %v2041 = vunpack.c.l.b16 %v1997
      %v2042 = vunpack.c.l.b16 %v1998
      %v2043 = vunpack.c.l.b16 %v1999
      %v2044 = vunpack.c.l.b16 %v2000
      %v2045 = vunpack.c.l.b16 %v2001
      %v2046 = vpack.c.b16 %v2031, %v2030
      %v2047 = vpack.c.b16 %v2033, %v2032
      %v2048 = vpack.c.b16 %v2035, %v2034
      %v2049 = vpack.c.b16 %v2037, %v2036
      %v2050 = vpack.c.b16 %v2039, %v2038
      %v2051 = vpack.c.b16 %v2041, %v2040
      %v2052 = vpack.c.b16 %v2043, %v2042
      %v2053 = vpack.c.b16 %v2045, %v2044
      %2062 = vmatprep.subr.bf16.mxu0 0
      %2063 = vmatpush1.bf16.msra.mxu0 %v2053
      %2064 = vmatprep.subr.bf16.mxu0 0
      %2065 = vmatpush1.bf16.msra.mxu0 %v2052
      %2066 = vmatprep.subr.bf16.mxu0 0
      %2067 = vmatpush1.bf16.msra.mxu0 %v2051
      %2068 = vmatprep.subr.bf16.mxu0 0
      %2069 = vmatpush1.bf16.msra.mxu0 %v2050
      %2070 = vmatprep.subr.bf16.mxu0 0
      %2071 = vmatpush1.bf16.msra.mxu0 %v2049
      %2072 = vmatprep.subr.bf16.mxu0 0
      %2073 = vmatpush1.bf16.msra.mxu0 %v2048
      %2074 = vmatprep.subr.bf16.mxu0 0
      %2075 = vmatpush1.bf16.msra.mxu0 %v2047
      %2076 = vmatprep.subr.bf16.mxu0 0
      %2077 = vmatpush1.bf16.msra.mxu0 %v2046
      %2078 = vmatprep.subr.bf16.mxu0 0
      %2079 = vmatpush2.bf16.msra.mxu0 0
      %2080 = vmatprep.subr.bf16.mxu0 0
      %2081 = vmatpush2.bf16.msra.mxu0 0
      %2082 = vmatprep.subr.bf16.mxu0 0
      %2083 = vmatpush2.bf16.msra.mxu0 0
      %2084 = vmatprep.subr.bf16.mxu0 0
      %2085 = vmatpush2.bf16.msra.mxu0 0
      %2086 = vmatprep.subr.bf16.mxu0 0
      %2087 = vmatpush2.bf16.msra.mxu0 0
      %2088 = vmatprep.subr.bf16.mxu0 0
      %2089 = vmatpush2.bf16.msra.mxu0 0
      %2090 = vmatprep.subr.bf16.mxu0 0
      %2091 = vmatpush2.bf16.msra.mxu0 0
      %2092 = vmatprep.subr.bf16.mxu0 0
      %2093 = vmatpush2.bf16.msra.mxu0 0
      %2094 = vmatprep.mubr.bf16.mxu0 0
      %2095 = vmatmul.mubr.bf16.gmra.mxu0 %v2012
      %v2096 = vpop.f32.mrf.mxu0
      %v2097 = vadd.f32 0.0, %v2096
      %v2098 = vpop.f32.mrf.mxu0
      %v2099 = vpop.f32.mrf.mxu0
      %v2100 = vadd.f32 0.0, %v2099
      %v2101 = vpop.f32.mrf.mxu0
      %2102 = vdwg.mxu0
      %v2103 = vadd.f32 %v1983, %v2097
      %v2104 = vadd.f32 %v1984, %v2100
      %v2105 = vld [vmem:[%s2] sm:$0x1]
      %v2107 = vlaneseq
      %v2108 = vshrl.u32 %v2107, 7
      %v2109 = vsub.s32 0, %v2108
      %v2110 = vrot.slane %v2105, %v2109
      %v2112 = vadd.f32 %v2103, %v2110
      %v2113 = vadd.f32 %v2104, %v2110
      %vm2114 = vcmask 523264
      %2115 = vst.msk [vmem:[%s232] sm:$0xff] %vm2114, %v2112
      %vm2116 = vcmask 521216
      %2117 = vst.msk [vmem:[%s232 + $0x8] sm:$0x3f] %vm2116, %v2113
      %v2118 = vsel %vm2114, %v2112, 0.0
      %v2119 = vsel %vm2116, %v2113, 0.0
      %v2120 = vadd.f32 %v2118, %v2119
      %v2121 = vrot.slane %v2120, 4
      %v2122 = vadd.f32 %v2120, %v2121
      %v2123 = vrot.slane %v2122, 2
      %v2124 = vadd.f32 %v2122, %v2123
      %v2125 = vrot.slane %v2124, 1
      %v2126 = vadd.f32 %v2124, %v2125
      %v2127 = vmul.f32 %v2112, %v2112
      %v2128 = vmul.f32 %v2113, %v2113
      %v2129 = vsel %vm2114, %v2127, 0.0
      %v2130 = vsel %vm2116, %v2128, 0.0
      %v2131 = vadd.f32 %v2129, %v2130
      %v2132 = vrot.slane %v2131, 4
      %v2133 = vadd.f32 %v2131, %v2132
      %v2134 = vrot.slane %v2133, 2
      %v2135 = vadd.f32 %v2133, %v2134
      %v2136 = vrot.slane %v2135, 1
      %v2137 = vadd.f32 %v2135, %v2136
      %vm2138 = vcmask 1040384
      %v2139 = vsel %vm2138, %v2126, %v2137
      %vm2140 = vcmask 517120
      %2141 = vst.msk [vmem:[%s240] sm:$0x3] %vm2140, %v2139
      %p2142 = scmp.lt.s32.totalorder %s20, 1
      %s2143 = scalar_select %p2142, %s20, 1
      %p2144 = scmp.lt.s32.totalorder %s21, 13
      %s2145 = scalar_select %p2144, %s21, 13
      %s2146 = smul.addr %s2145, 2
      %s2147 = smul.addr %s2143, 28
      %s2148 = sadd.s32 %s2146, %s2147
      %s2149 = smul.addr %s2148, 8
      %s2150 = scalar_lea.vmem %s3, %s2149
      %p2151 = scmp.lt.s32.totalorder %s20, 1
      %s2152 = scalar_select %p2151, %s20, 1
      %p2153 = scmp.lt.s32.totalorder %s21, 13
      %s2154 = scalar_select %p2153, %s21, 13
      %s2155 = smul.addr %s2152, 14
      %s2156 = sadd.s32 %s2154, %s2155
      %s2157 = smul.addr %s2156, 2
      %s2158 = scalar_lea.vmem %s4, %s2157
      // Predicated region
      $region33: #{generator_forward.5} parent=31 // pred_check
        %p2159 = pneg %p116
      $region34: #{generator_forward.5} parent=31 // pred_check_branch
        %2161 = sbr.rel (%p2159) target = $region36
      $region35: #{generator_forward.5} parent=31 // pred_region
        _
      $region36: #{generator_forward.5} parent=31 // pred_fallthru
        _
      // Predicated region
      $region37: #{generator_forward.5} parent=31 // pred_check
        %p2162 = pneg %p144
      $region38: #{generator_forward.5} parent=31 // pred_check_branch
        %2164 = sbr.rel (%p2162) target = $region40
      $region39: #{generator_forward.5} parent=31 // pred_region
        _
      $region40: #{generator_forward.5} parent=31 // pred_fallthru
        _
    $region32: #{generator_forward.5} parent=5 // pred_fallthru
      _
    %p2165 = scmp.le.s32.totalorder 2, %s11
    // Predicated region
    $region41: #{generator_forward.5} parent=5 // pred_check
      %p2166 = pneg %p2165
    $region42: #{generator_forward.5} parent=5 // pred_check_branch
      %2168 = sbr.rel (%p2166) target = $region44
    $region43: #{generator_forward.5} parent=5 // pred_region
      %s2169 = ssub.s32 %s11, 2
      // Predicated region
      $region45: #{generator_forward.5} parent=43 // pred_check
        %p2170 = pneg %p122
      $region46: #{generator_forward.5} parent=43 // pred_check_branch
        %2172 = sbr.rel (%p2170) target = $region48
      $region47: #{generator_forward.5} parent=43 // pred_region
        %p2173 = scmp.lt.s32.totalorder %s22, 1
        %s2174 = scalar_select %p2173, %s22, 1
        %p2175 = scmp.lt.s32.totalorder %s23, 13
        %s2176 = scalar_select %p2175, %s23, 13
        %s2177 = smul.addr %s2176, 2
        %s2178 = smul.addr %s2174, 28
        %s2179 = sadd.s32 %s2177, %s2178
        %s2180 = smul.addr %s2179, 8
        %s2181 = scalar_lea.vmem %s3, %s2180
      $region48: #{generator_forward.5} parent=43 // pred_fallthru
        _
      // Predicated region
      $region49: #{generator_forward.5} parent=43 // pred_check
        %p2182 = pneg %p150
      $region50: #{generator_forward.5} parent=43 // pred_check_branch
        %2184 = sbr.rel (%p2182) target = $region52
      $region51: #{generator_forward.5} parent=43 // pred_region
        %p2185 = scmp.lt.s32.totalorder %s22, 1
        %s2186 = scalar_select %p2185, %s22, 1
        %p2187 = scmp.lt.s32.totalorder %s23, 13
        %s2188 = scalar_select %p2187, %s23, 13
        %s2189 = smul.addr %s2186, 14
        %s2190 = sadd.s32 %s2188, %s2189
        %s2191 = smul.addr %s2190, 2
        %s2192 = scalar_lea.vmem %s4, %s2191
      $region52: #{generator_forward.5} parent=43 // pred_fallthru
        _
    $region44: #{generator_forward.5} parent=5 // pred_fallthru
      _
  $region6: #{generator_forward.5} parent=0 // loop_footer
    %s15 = sadd.s32 1, %s11
  $region7: #{generator_forward.5} parent=0 // loop_footer_branch
    %10 = sbr.rel target = $region3
  $region8: #{generator_forward.5} parent=0 // loop_exit
    _

// kernel: generator_forward.7
$region0: #{generator_forward.7}
  #allocation0 [shape = 'u32[]', space=smem, size = 0x4, offset = 0x4, fixed_abs, tag = 'smem constant byte address 0x4 - core index']
  #allocation1 [shape = 'u32[144,128]{1,0:T(1,128)}', space=vmem, size = 0x12000, scoped, tag = 'internal scratch']
  %s0 = inlined_call_operand.vmem [shape: bf16[2,31,31,64], index: 0, kind: input, shape index: {}]
  %s1 = inlined_call_operand.vmem [shape: bf16[16,64,128], index: 1, kind: input, shape index: {}]
  %s2 = inlined_call_operand.vmem [shape: f32[1,128], index: 2, kind: input, shape index: {}]
  %s3 = inlined_call_operand.vmem [shape: f32[2,28,28,128], index: 3, kind: output, shape index: {}]
  %s4 = sld [smem:[#allocation0]]
  $region45: #{generator_forward.7} parent=0
    _
  %s6 = ssub.s32 1, %s4
  %s7 = scalar_select 0, %s6, %s4
  loop: start=0, step=1, limit=58
  $region2: #{generator_forward.7} parent=0 // loop_pre_header
    _
  $region3: #{generator_forward.7} parent=0 // loop_header
    %s9 = sphi 0, %s13
    %p10 = scmp.ge.s32.totalorder %s9, 58
    %s16 = sphi 0, %s28
    %s17 = sphi 0, %s24
    %s18 = sphi 0, %s16
    %s19 = sphi 0, %s17
    %s20 = sphi 0, %s18
    %s21 = sphi 0, %s19
    %s31 = sphi 0, %s33
    %s34 = sphi 0, %s31
    %s35 = sphi 0, %s34
    %s51 = sphi 0, %s35
    %s55 = sphi 0, %s55
    %s57 = sphi 0, %s55
    %s58 = sphi 0, %s57
    %s72 = sphi 0, %s58
    %s76 = sphi 0, %s76
    %s78 = sphi 0, %s76
    %s79 = sphi 0, %s78
    %s93 = sphi 0, %s79
    %s101 = sphi 0, %s103
    %s104 = sphi 0, %s101
    %s105 = sphi 0, %s104
    %s121 = sphi 0, %s105
  $region4: #{generator_forward.7} parent=0 // loop_header_branch
    %12 = sbr.rel (%p10) target = $region8
  $region5: #{generator_forward.7} parent=0 // loop_body
    %s14 = ssub.s32 %s9, 1
    %s15 = ssub.s32 %s9, 2
    %s22 = sadd.s32 1, %s17
    %p23 = scmp.ge.s32.totalorder %s22, 28
    %s24 = scalar_select %p23, 0, %s22
    %s25 = sadd.s32 1, %s16
    %s26 = scalar_select %p23, %s25, %s16
    %p27 = scmp.ge.s32.totalorder %s26, 2
    %s28 = scalar_select %p27, 0, %s26
    %s29 = ssub.s32 %s16, %s28
    %p30 = scmp.eq.s32.totalorder %s29, 0
    %s32 = sadd.s32 %s31, 1
    %s33 = scalar_select %p30, %s31, %s32
    %p36 = pneg %p30
    %p37 = scmp.eq.s32.totalorder %s9, 55
    %p38 = por %p36, %p37
    %p39 = scmp.ne.s32.totalorder %s31, %s34
    %p40 = scmp.eq.s32.totalorder %s9, 0
    %p41 = por %p39, %p40
    %p42 = scmp.ne.s32.totalorder %s31, %s34
    %p43 = scmp.eq.s32.totalorder %s14, 55
    %p44 = por %p42, %p43
    %p45 = scmp.ne.s32.totalorder %s34, %s35
    %p46 = scmp.eq.s32.totalorder %s14, 0
    %p47 = por %p45, %p46
    %p48 = scmp.ne.s32.totalorder %s34, %s35
    %p49 = scmp.eq.s32.totalorder %s15, 55
    %p50 = por %p48, %p49
    %p52 = scmp.ne.s32.totalorder %s35, %s51
    %p53 = scmp.eq.s32.totalorder %s15, 0
    %p54 = por %p52, %p53
    %s56 = sadd.s32 %s55, 1
    %p59 = scmp.eq.s32.totalorder %s9, 55
    %p60 = scmp.ne.s32.totalorder %s55, %s57
    %p61 = scmp.eq.s32.totalorder %s9, 0
    %p62 = por %p60, %p61
    %p63 = scmp.ne.s32.totalorder %s55, %s57
    %p64 = scmp.eq.s32.totalorder %s14, 55
    %p65 = por %p63, %p64
    %p66 = scmp.ne.s32.totalorder %s57, %s58
    %p67 = scmp.eq.s32.totalorder %s14, 0
    %p68 = por %p66, %p67
    %p69 = scmp.ne.s32.totalorder %s57, %s58
    %p70 = scmp.eq.s32.totalorder %s15, 55
    %p71 = por %p69, %p70
    %p73 = scmp.ne.s32.totalorder %s58, %s72
    %p74 = scmp.eq.s32.totalorder %s15, 0
    %p75 = por %p73, %p74
    %s77 = sadd.s32 %s76, 1
    %p80 = scmp.eq.s32.totalorder %s9, 55
    %p81 = scmp.ne.s32.totalorder %s76, %s78
    %p82 = scmp.eq.s32.totalorder %s9, 0
    %p83 = por %p81, %p82
    %p84 = scmp.ne.s32.totalorder %s76, %s78
    %p85 = scmp.eq.s32.totalorder %s14, 55
    %p86 = por %p84, %p85
    %p87 = scmp.ne.s32.totalorder %s78, %s79
    %p88 = scmp.eq.s32.totalorder %s14, 0
    %p89 = por %p87, %p88
    %p90 = scmp.ne.s32.totalorder %s78, %s79
    %p91 = scmp.eq.s32.totalorder %s15, 55
    %p92 = por %p90, %p91
    %p94 = scmp.ne.s32.totalorder %s79, %s93
    %p95 = scmp.eq.s32.totalorder %s15, 0
    %p96 = por %p94, %p95
    %s97 = ssub.s32 %s16, %s28
    %s98 = ssub.s32 %s17, %s24
    %s99 = sor.u32 %s97, %s98
    %p100 = scmp.eq.s32.totalorder %s99, 0
    %s102 = sadd.s32 %s101, 1
    %s103 = scalar_select %p100, %s101, %s102
    %p106 = pneg %p100
    %p107 = scmp.eq.s32.totalorder %s9, 55
    %p108 = por %p106, %p107
    %p109 = scmp.ne.s32.totalorder %s101, %s104
    %p110 = scmp.eq.s32.totalorder %s9, 0
    %p111 = por %p109, %p110
    %p112 = scmp.ne.s32.totalorder %s101, %s104
    %p113 = scmp.eq.s32.totalorder %s14, 55
    %p114 = por %p112, %p113
    %p115 = scmp.ne.s32.totalorder %s104, %s105
    %p116 = scmp.eq.s32.totalorder %s14, 0
    %p117 = por %p115, %p116
    %p118 = scmp.ne.s32.totalorder %s104, %s105
    %p119 = scmp.eq.s32.totalorder %s15, 55
    %p120 = por %p118, %p119
    %p122 = scmp.ne.s32.totalorder %s105, %s121
    %p123 = scmp.eq.s32.totalorder %s15, 0
    %p124 = por %p122, %p123
    %p125 = scmp.le.s32.totalorder 1, %s9
    %p126 = scmp.lt.s32.totalorder %s9, 57
    %p127 = pnand %p125, %p126
    %p128 = pneg %p127
    // Predicated region
    $region9: #{generator_forward.7} parent=5 // pred_check
      _
    $region10: #{generator_forward.7} parent=5 // pred_check_branch
      %130 = sbr.rel (%p127) target = $region12
    $region11: #{generator_forward.7} parent=5 // pred_region
      %s131 = ssub.s32 %s9, 1
      // Predicated region
      $region13: #{generator_forward.7} parent=11 // pred_check
        %p132 = pneg %p68
      $region14: #{generator_forward.7} parent=11 // pred_check_branch
        %134 = sbr.rel (%p132) target = $region16
      $region15: #{generator_forward.7} parent=11 // pred_region
        _
      $region16: #{generator_forward.7} parent=11 // pred_fallthru
        _
      // Predicated region
      $region17: #{generator_forward.7} parent=11 // pred_check
        %p135 = pneg %p89
      $region18: #{generator_forward.7} parent=11 // pred_check_branch
        %137 = sbr.rel (%p135) target = $region20
      $region19: #{generator_forward.7} parent=11 // pred_region
        _
      $region20: #{generator_forward.7} parent=11 // pred_fallthru
        _
    $region12: #{generator_forward.7} parent=5 // pred_fallthru
      _
    %p138 = scmp.lt.s32.totalorder %s9, 56
    // Predicated region
    $region21: #{generator_forward.7} parent=5 // pred_check
      %p139 = pneg %p138
    $region22: #{generator_forward.7} parent=5 // pred_check_branch
      %141 = sbr.rel (%p139) target = $region24
    $region23: #{generator_forward.7} parent=5 // pred_region
      // Predicated region
      $region25: #{generator_forward.7} parent=23 // pred_check
        %p142 = pneg %p41
      $region26: #{generator_forward.7} parent=23 // pred_check_branch
        %144 = sbr.rel (%p142) target = $region28
      $region27: #{generator_forward.7} parent=23 // pred_region
        %p145 = scmp.lt.s32.totalorder %s16, 1
        %s146 = scalar_select %p145, %s16, 1
        %s147 = smul.addr %s146, 124
        %s148 = smul.addr %s147, 4
        %s149 = scalar_lea.vmem %s0, %s148
      $region28: #{generator_forward.7} parent=23 // pred_fallthru
        _
    $region24: #{generator_forward.7} parent=5 // pred_fallthru
      _
    %p150 = scmp.le.s32.totalorder 1, %s9
    %p151 = scmp.lt.s32.totalorder %s9, 57
    %p152 = pnand %p150, %p151
    %p153 = pneg %p152
    // Predicated region
    $region29: #{generator_forward.7} parent=5 // pred_check
      _
    $region30: #{generator_forward.7} parent=5 // pred_check_branch
      %155 = sbr.rel (%p152) target = $region32
    $region31: #{generator_forward.7} parent=5 // pred_region
      %s156 = ssub.s32 %s9, 1
      %p157 = scmp.lt.s32.totalorder %s18, 1
      %s158 = scalar_select %p157, %s18, 1
      %s159 = smul.addr %s158, 124
      %s160 = smul.addr %s159, 4
      %s161 = scalar_lea.vmem %s0, %s160
      %p162 = pneg %p47
      %p163 = pneg %p44
      %p164 = pneg %p68
      %p165 = pneg %p65
      %p166 = pneg %p89
      %p167 = pneg %p86
      %p168 = pneg %p117
      %p169 = pneg %p114
      %p170 = scmp.lt.s32.totalorder %s18, 1
      %s171 = scalar_select %p170, %s18, 1
      %p172 = scmp.lt.s32.totalorder %s19, 27
      %s173 = scalar_select %p172, %s19, 27
      %s174 = smul.addr %s173, 4
      %s175 = smul.addr %s171, 112
      %s176 = sadd.s32 %s174, %s175
      %s177 = smul.addr %s176, 8
      %s178 = scalar_lea.vmem %s3, %s177
      %p179 = scmp.lt.s32.totalorder %s18, 1
      %s180 = scalar_select %p179, %s18, 1
      %s181 = smul.addr %s180, 124
      %s182 = smul.addr %s181, 4
      %s183 = scalar_lea.vmem %s0, %s182
      %p184 = scmp.lt.s32.totalorder %s18, 1
      %s185 = scalar_select %p184, %s18, 1
      %p186 = scmp.lt.s32.totalorder %s19, 27
      %s187 = scalar_select %p186, %s19, 27
      %s188 = smul.addr %s187, 4
      %s189 = smul.addr %s185, 112
      %s190 = sadd.s32 %s188, %s189
      %s191 = smul.addr %s190, 8
      %s192 = scalar_lea.vmem %s3, %s191
      %s194 = smul.u32 %s19, 4
      %s195 = smul.addr %s194, 4
      %s196 = scalar_lea.vmem %s183, %s195
      %v197 = vld [vmem:[%s196] sm:$0xf]
      %v198 = vld [vmem:[%s196 + $0x4] sm:$0xf]
      %v199 = vld [vmem:[%s196 + $0x8] sm:$0xf]
      %v200 = vld [vmem:[%s196 + $0xc] sm:$0xf]
      %v201 = vld [vmem:[%s1] sm:$0xf]
      %v202 = vld [vmem:[%s1 + $0x4] sm:$0xf]
      %v203 = vld [vmem:[%s1 + $0x8] sm:$0xf]
      %v204 = vld [vmem:[%s1 + $0xc] sm:$0xf]
      %v205 = vld [vmem:[%s1 + $0x10] sm:$0xf]
      %v206 = vld [vmem:[%s1 + $0x14] sm:$0xf]
      %v207 = vld [vmem:[%s1 + $0x18] sm:$0xf]
      %v208 = vld [vmem:[%s1 + $0x1c] sm:$0xf]
      %s209 = scalar_lea.vmem %s1, 32
      %v210 = vld [vmem:[%s209] sm:$0xf]
      %v211 = vld [vmem:[%s209 + $0x4] sm:$0xf]
      %v212 = vld [vmem:[%s209 + $0x8] sm:$0xf]
      %v213 = vld [vmem:[%s209 + $0xc] sm:$0xf]
      %v214 = vld [vmem:[%s209 + $0x10] sm:$0xf]
      %v215 = vld [vmem:[%s209 + $0x14] sm:$0xf]
      %v216 = vld [vmem:[%s209 + $0x18] sm:$0xf]
      %v217 = vld [vmem:[%s209 + $0x1c] sm:$0xf]
      %v222 = vunpack.c.l.b16 %v197
      %v223 = vunpack.c.l.b16 %v198
      %v224 = vunpack.c.l.b16 %v199
      %v225 = vunpack.c.l.b16 %v200
      %v226 = vpack.c.b16 %v223, %v222
      %v227 = vpack.c.b16 %v225, %v224
      %vm228 = vsmask.f32 7424
      %v230 = vshrl.u32 %v226, 16
      %v232 = vshll.u32 %v226, 16
      %v234 = vrot.slane %v232, 1
      %v235 = vor.u32 %v230, %v234
      %v237 = vshll.u32 %v227, 16
      %v239 = vrot.slane %v237, 1
      %v240 = vsel %vm228, %v235, %v239
      %v241 = vshrl.u32 %v227, 16
      %v243 = vor.u32 %v241, %v239
      %v252 = vunpack.c.l.b16 %v210
      %v253 = vunpack.c.l.b16 %v211
      %v254 = vunpack.c.l.b16 %v212
      %v255 = vunpack.c.l.b16 %v213
      %v256 = vunpack.c.l.b16 %v214
      %v257 = vunpack.c.l.b16 %v215
      %v258 = vunpack.c.l.b16 %v216
      %v259 = vunpack.c.l.b16 %v217
      %v260 = vpack.c.b16 %v253, %v252
      %v261 = vpack.c.b16 %v255, %v254
      %v262 = vpack.c.b16 %v257, %v256
      %v263 = vpack.c.b16 %v259, %v258
      %vm268 = vcmask 523264
      %v270 = vsel %vm268, %v240, 0
      %v273 = vsel %vm268, %v243, 0
      %275 = vmatprep.subr.bf16.mxu0 0
      %276 = vmatpush1.bf16.msra.mxu0 0
      %277 = vmatprep.subr.bf16.mxu0 0
      %278 = vmatpush1.bf16.msra.mxu0 0
      %279 = vmatprep.subr.bf16.mxu0 0
      %280 = vmatpush1.bf16.msra.mxu0 0
      %281 = vmatprep.subr.bf16.mxu0 0
      %282 = vmatpush1.bf16.msra.mxu0 0
      %283 = vmatprep.subr.bf16.mxu0 0
      %284 = vmatpush1.bf16.msra.mxu0 %v263
      %285 = vmatprep.subr.bf16.mxu0 0
      %286 = vmatpush1.bf16.msra.mxu0 %v262
      %287 = vmatprep.subr.bf16.mxu0 0
      %288 = vmatpush1.bf16.msra.mxu0 %v261
      %289 = vmatprep.subr.bf16.mxu0 0
      %290 = vmatpush1.bf16.msra.mxu0 %v260
      %291 = vmatprep.subr.bf16.mxu0 0
      %292 = vmatpush2.bf16.msra.mxu0 0
      %293 = vmatprep.subr.bf16.mxu0 0
      %294 = vmatpush2.bf16.msra.mxu0 0
      %295 = vmatprep.subr.bf16.mxu0 0
      %296 = vmatpush2.bf16.msra.mxu0 0
      %297 = vmatprep.subr.bf16.mxu0 0
      %298 = vmatpush2.bf16.msra.mxu0 0
      %299 = vmatprep.subr.bf16.mxu0 0
      %300 = vmatpush2.bf16.msra.mxu0 0
      %301 = vmatprep.subr.bf16.mxu0 0
      %302 = vmatpush2.bf16.msra.mxu0 0
      %303 = vmatprep.subr.bf16.mxu0 0
      %304 = vmatpush2.bf16.msra.mxu0 0
      %305 = vmatprep.subr.bf16.mxu0 0
      %306 = vmatpush2.bf16.msra.mxu0 0
      %307 = vmatprep.mubr.bf16.mxu0 0
      %308 = vmatmul.mubr.bf16.gmra.mxu0 %v270
      %v309 = vpop.f32.mrf.mxu0
      %v310 = vadd.f32 0.0, %v309
      %v311 = vpop.f32.mrf.mxu0
      %v312 = vpop.f32.mrf.mxu0
      %v313 = vadd.f32 0.0, %v312
      %v314 = vpop.f32.mrf.mxu0
      %315 = vmatprep.mubr.bf16.mxu0 0
      %316 = vmatmul.mubr.bf16.gmra.mxu0 %v273
      %v317 = vpop.f32.mrf.mxu0
      %v318 = vadd.f32 0.0, %v317
      %v319 = vpop.f32.mrf.mxu0
      %v320 = vpop.f32.mrf.mxu0
      %v321 = vadd.f32 0.0, %v320
      %v322 = vpop.f32.mrf.mxu0
      %323 = vdwg.mxu0
      %v332 = vunpack.c.l.b16 %v201
      %v333 = vunpack.c.l.b16 %v202
      %v334 = vunpack.c.l.b16 %v203
      %v335 = vunpack.c.l.b16 %v204
      %v336 = vunpack.c.l.b16 %v205
      %v337 = vunpack.c.l.b16 %v206
      %v338 = vunpack.c.l.b16 %v207
      %v339 = vunpack.c.l.b16 %v208
      %v340 = vpack.c.b16 %v333, %v332
      %v341 = vpack.c.b16 %v335, %v334
      %v342 = vpack.c.b16 %v337, %v336
      %v343 = vpack.c.b16 %v339, %v338
      %v348 = vsel %vm268, %v226, 0
      %v350 = vsel %vm268, %v227, 0
      %352 = vmatprep.subr.bf16.mxu0 0
      %353 = vmatpush1.bf16.msra.mxu0 0
      %354 = vmatprep.subr.bf16.mxu0 0
      %355 = vmatpush1.bf16.msra.mxu0 0
      %356 = vmatprep.subr.bf16.mxu0 0
      %357 = vmatpush1.bf16.msra.mxu0 0
      %358 = vmatprep.subr.bf16.mxu0 0
      %359 = vmatpush1.bf16.msra.mxu0 0
      %360 = vmatprep.subr.bf16.mxu0 0
      %361 = vmatpush1.bf16.msra.mxu0 %v343
      %362 = vmatprep.subr.bf16.mxu0 0
      %363 = vmatpush1.bf16.msra.mxu0 %v342
      %364 = vmatprep.subr.bf16.mxu0 0
      %365 = vmatpush1.bf16.msra.mxu0 %v341
      %366 = vmatprep.subr.bf16.mxu0 0
      %367 = vmatpush1.bf16.msra.mxu0 %v340
      %368 = vmatprep.subr.bf16.mxu0 0
      %369 = vmatpush2.bf16.msra.mxu0 0
      %370 = vmatprep.subr.bf16.mxu0 0
      %371 = vmatpush2.bf16.msra.mxu0 0
      %372 = vmatprep.subr.bf16.mxu0 0
      %373 = vmatpush2.bf16.msra.mxu0 0
      %374 = vmatprep.subr.bf16.mxu0 0
      %375 = vmatpush2.bf16.msra.mxu0 0
      %376 = vmatprep.subr.bf16.mxu0 0
      %377 = vmatpush2.bf16.msra.mxu0 0
      %378 = vmatprep.subr.bf16.mxu0 0
      %379 = vmatpush2.bf16.msra.mxu0 0
      %380 = vmatprep.subr.bf16.mxu0 0
      %381 = vmatpush2.bf16.msra.mxu0 0
      %382 = vmatprep.subr.bf16.mxu0 0
      %383 = vmatpush2.bf16.msra.mxu0 0
      %384 = vmatprep.mubr.bf16.mxu0 0
      %385 = vmatmul.mubr.bf16.gmra.mxu0 %v348
      %v386 = vpop.f32.mrf.mxu0
      %v387 = vadd.f32 %v310, %v386
      %v388 = vpop.f32.mrf.mxu0
      %v389 = vpop.f32.mrf.mxu0
      %v390 = vadd.f32 %v313, %v389
      %v391 = vpop.f32.mrf.mxu0
      %392 = vmatprep.mubr.bf16.mxu0 0
      %393 = vmatmul.mubr.bf16.gmra.mxu0 %v350
      %v394 = vpop.f32.mrf.mxu0
      %v395 = vadd.f32 %v318, %v394
      %v396 = vpop.f32.mrf.mxu0
      %v397 = vpop.f32.mrf.mxu0
      %v398 = vadd.f32 %v321, %v397
      %v399 = vpop.f32.mrf.mxu0
      %400 = vdwg.mxu0
      %s401 = scalar_lea.vmem %s1, 64
      %v402 = vld [vmem:[%s401] sm:$0xf]
      %v403 = vld [vmem:[%s401 + $0x4] sm:$0xf]
      %v404 = vld [vmem:[%s401 + $0x8] sm:$0xf]
      %v405 = vld [vmem:[%s401 + $0xc] sm:$0xf]
      %v406 = vld [vmem:[%s401 + $0x10] sm:$0xf]
      %v407 = vld [vmem:[%s401 + $0x14] sm:$0xf]
      %v408 = vld [vmem:[%s401 + $0x18] sm:$0xf]
      %v409 = vld [vmem:[%s401 + $0x1c] sm:$0xf]
      %vm410 = vcmask 1046528
      %v411 = vrot.slane %v226, 1
      %v412 = vrot.slane %v227, 1
      %v413 = vsel %vm410, %v411, %v412
      %v422 = vunpack.c.l.b16 %v402
      %v423 = vunpack.c.l.b16 %v403
      %v424 = vunpack.c.l.b16 %v404
      %v425 = vunpack.c.l.b16 %v405
      %v426 = vunpack.c.l.b16 %v406
      %v427 = vunpack.c.l.b16 %v407
      %v428 = vunpack.c.l.b16 %v408
      %v429 = vunpack.c.l.b16 %v409
      %v430 = vpack.c.b16 %v423, %v422
      %v431 = vpack.c.b16 %v425, %v424
      %v432 = vpack.c.b16 %v427, %v426
      %v433 = vpack.c.b16 %v429, %v428
      %v439 = vsel %vm268, %v413, 0
      %v442 = vsel %vm268, %v412, 0
      %444 = vmatprep.subr.bf16.mxu0 0
      %445 = vmatpush1.bf16.msra.mxu0 0
      %446 = vmatprep.subr.bf16.mxu0 0
      %447 = vmatpush1.bf16.msra.mxu0 0
      %448 = vmatprep.subr.bf16.mxu0 0
      %449 = vmatpush1.bf16.msra.mxu0 0
      %450 = vmatprep.subr.bf16.mxu0 0
      %451 = vmatpush1.bf16.msra.mxu0 0
      %452 = vmatprep.subr.bf16.mxu0 0
      %453 = vmatpush1.bf16.msra.mxu0 %v433
      %454 = vmatprep.subr.bf16.mxu0 0
      %455 = vmatpush1.bf16.msra.mxu0 %v432
      %456 = vmatprep.subr.bf16.mxu0 0
      %457 = vmatpush1.bf16.msra.mxu0 %v431
      %458 = vmatprep.subr.bf16.mxu0 0
      %459 = vmatpush1.bf16.msra.mxu0 %v430
      %460 = vmatprep.subr.bf16.mxu0 0
      %461 = vmatpush2.bf16.msra.mxu0 0
      %462 = vmatprep.subr.bf16.mxu0 0
      %463 = vmatpush2.bf16.msra.mxu0 0
      %464 = vmatprep.subr.bf16.mxu0 0
      %465 = vmatpush2.bf16.msra.mxu0 0
      %466 = vmatprep.subr.bf16.mxu0 0
      %467 = vmatpush2.bf16.msra.mxu0 0
      %468 = vmatprep.subr.bf16.mxu0 0
      %469 = vmatpush2.bf16.msra.mxu0 0
      %470 = vmatprep.subr.bf16.mxu0 0
      %471 = vmatpush2.bf16.msra.mxu0 0
      %472 = vmatprep.subr.bf16.mxu0 0
      %473 = vmatpush2.bf16.msra.mxu0 0
      %474 = vmatprep.subr.bf16.mxu0 0
      %475 = vmatpush2.bf16.msra.mxu0 0
      %476 = vmatprep.mubr.bf16.mxu0 0
      %477 = vmatmul.mubr.bf16.gmra.mxu0 %v439
      %v478 = vpop.f32.mrf.mxu0
      %v479 = vadd.f32 0.0, %v478
      %v480 = vpop.f32.mrf.mxu0
      %v481 = vpop.f32.mrf.mxu0
      %v482 = vadd.f32 0.0, %v481
      %v483 = vpop.f32.mrf.mxu0
      %484 = vmatprep.mubr.bf16.mxu0 0
      %485 = vmatmul.mubr.bf16.gmra.mxu0 %v442
      %v486 = vpop.f32.mrf.mxu0
      %v487 = vadd.f32 0.0, %v486
      %v488 = vpop.f32.mrf.mxu0
      %v489 = vpop.f32.mrf.mxu0
      %v490 = vadd.f32 0.0, %v489
      %v491 = vpop.f32.mrf.mxu0
      %492 = vdwg.mxu0
      %v493 = vadd.f32 %v387, %v479
      %v494 = vadd.f32 %v390, %v482
      %v495 = vadd.f32 %v395, %v487
      %v496 = vadd.f32 %v398, %v490
      %s497 = scalar_lea.vmem %s1, 96
      %v498 = vld [vmem:[%s497] sm:$0xf]
      %v499 = vld [vmem:[%s497 + $0x4] sm:$0xf]
      %v500 = vld [vmem:[%s497 + $0x8] sm:$0xf]
      %v501 = vld [vmem:[%s497 + $0xc] sm:$0xf]
      %v502 = vld [vmem:[%s497 + $0x10] sm:$0xf]
      %v503 = vld [vmem:[%s497 + $0x14] sm:$0xf]
      %v504 = vld [vmem:[%s497 + $0x18] sm:$0xf]
      %v505 = vld [vmem:[%s497 + $0x1c] sm:$0xf]
      %vm506 = vsmask.f32 6400
      %v507 = vrot.slane %v230, 1
      %v508 = vrot.slane %v232, 2
      %v509 = vor.u32 %v507, %v508
      %v510 = vrot.slane %v241, 1
      %v511 = vrot.slane %v237, 2
      %v512 = vor.u32 %v510, %v511
      %v513 = vsel %vm506, %v509, %v512
      %v522 = vunpack.c.l.b16 %v498
      %v523 = vunpack.c.l.b16 %v499
      %v524 = vunpack.c.l.b16 %v500
      %v525 = vunpack.c.l.b16 %v501
      %v526 = vunpack.c.l.b16 %v502
      %v527 = vunpack.c.l.b16 %v503
      %v528 = vunpack.c.l.b16 %v504
      %v529 = vunpack.c.l.b16 %v505
      %v530 = vpack.c.b16 %v523, %v522
      %v531 = vpack.c.b16 %v525, %v524
      %v532 = vpack.c.b16 %v527, %v526
      %v533 = vpack.c.b16 %v529, %v528
      %v539 = vsel %vm268, %v513, 0
      %v542 = vsel %vm268, %v512, 0
      %544 = vmatprep.subr.bf16.mxu0 0
      %545 = vmatpush1.bf16.msra.mxu0 0
      %546 = vmatprep.subr.bf16.mxu0 0
      %547 = vmatpush1.bf16.msra.mxu0 0
      %548 = vmatprep.subr.bf16.mxu0 0
      %549 = vmatpush1.bf16.msra.mxu0 0
      %550 = vmatprep.subr.bf16.mxu0 0
      %551 = vmatpush1.bf16.msra.mxu0 0
      %552 = vmatprep.subr.bf16.mxu0 0
      %553 = vmatpush1.bf16.msra.mxu0 %v533
      %554 = vmatprep.subr.bf16.mxu0 0
      %555 = vmatpush1.bf16.msra.mxu0 %v532
      %556 = vmatprep.subr.bf16.mxu0 0
      %557 = vmatpush1.bf16.msra.mxu0 %v531
      %558 = vmatprep.subr.bf16.mxu0 0
      %559 = vmatpush1.bf16.msra.mxu0 %v530
      %560 = vmatprep.subr.bf16.mxu0 0
      %561 = vmatpush2.bf16.msra.mxu0 0
      %562 = vmatprep.subr.bf16.mxu0 0
      %563 = vmatpush2.bf16.msra.mxu0 0
      %564 = vmatprep.subr.bf16.mxu0 0
      %565 = vmatpush2.bf16.msra.mxu0 0
      %566 = vmatprep.subr.bf16.mxu0 0
      %567 = vmatpush2.bf16.msra.mxu0 0
      %568 = vmatprep.subr.bf16.mxu0 0
      %569 = vmatpush2.bf16.msra.mxu0 0
      %570 = vmatprep.subr.bf16.mxu0 0
      %571 = vmatpush2.bf16.msra.mxu0 0
      %572 = vmatprep.subr.bf16.mxu0 0
      %573 = vmatpush2.bf16.msra.mxu0 0
      %574 = vmatprep.subr.bf16.mxu0 0
      %575 = vmatpush2.bf16.msra.mxu0 0
      %576 = vmatprep.mubr.bf16.mxu0 0
      %577 = vmatmul.mubr.bf16.gmra.mxu0 %v539
      %v578 = vpop.f32.mrf.mxu0
      %v579 = vadd.f32 0.0, %v578
      %v580 = vpop.f32.mrf.mxu0
      %v581 = vpop.f32.mrf.mxu0
      %v582 = vadd.f32 0.0, %v581
      %v583 = vpop.f32.mrf.mxu0
      %584 = vmatprep.mubr.bf16.mxu0 0
      %585 = vmatmul.mubr.bf16.gmra.mxu0 %v542
      %v586 = vpop.f32.mrf.mxu0
      %v587 = vadd.f32 0.0, %v586
      %v588 = vpop.f32.mrf.mxu0
      %v589 = vpop.f32.mrf.mxu0
      %v590 = vadd.f32 0.0, %v589
      %v591 = vpop.f32.mrf.mxu0
      %592 = vdwg.mxu0
      %v593 = vadd.f32 %v493, %v579
      %v594 = vadd.f32 %v494, %v582
      %v595 = vadd.f32 %v495, %v587
      %v596 = vadd.f32 %v496, %v590
      %s597 = sadd.s32 %s19, 1
      %s598 = smul.u32 %s597, 4
      %s599 = smul.addr %s598, 4
      %s600 = scalar_lea.vmem %s183, %s599
      %v601 = vld [vmem:[%s600] sm:$0xf]
      %v602 = vld [vmem:[%s600 + $0x4] sm:$0xf]
      %v603 = vld [vmem:[%s600 + $0x8] sm:$0xf]
      %v604 = vld [vmem:[%s600 + $0xc] sm:$0xf]
      %s605 = scalar_lea.vmem %s1, 128
      %v606 = vld [vmem:[%s605] sm:$0xf]
      %v607 = vld [vmem:[%s605 + $0x4] sm:$0xf]
      %v608 = vld [vmem:[%s605 + $0x8] sm:$0xf]
      %v609 = vld [vmem:[%s605 + $0xc] sm:$0xf]
      %v610 = vld [vmem:[%s605 + $0x10] sm:$0xf]
      %v611 = vld [vmem:[%s605 + $0x14] sm:$0xf]
      %v612 = vld [vmem:[%s605 + $0x18] sm:$0xf]
      %v613 = vld [vmem:[%s605 + $0x1c] sm:$0xf]
      %v618 = vunpack.c.l.b16 %v601
      %v619 = vunpack.c.l.b16 %v602
      %v620 = vunpack.c.l.b16 %v603
      %v621 = vunpack.c.l.b16 %v604
      %v622 = vpack.c.b16 %v619, %v618
      %v623 = vpack.c.b16 %v621, %v620
      %v632 = vunpack.c.l.b16 %v606
      %v633 = vunpack.c.l.b16 %v607
      %v634 = vunpack.c.l.b16 %v608
      %v635 = vunpack.c.l.b16 %v609
      %v636 = vunpack.c.l.b16 %v610
      %v637 = vunpack.c.l.b16 %v611
      %v638 = vunpack.c.l.b16 %v612
      %v639 = vunpack.c.l.b16 %v613
      %v640 = vpack.c.b16 %v633, %v632
      %v641 = vpack.c.b16 %v635, %v634
      %v642 = vpack.c.b16 %v637, %v636
      %v643 = vpack.c.b16 %v639, %v638
      %v649 = vsel %vm268, %v622, 0
      %v652 = vsel %vm268, %v623, 0
      %654 = vmatprep.subr.bf16.mxu0 0
      %655 = vmatpush1.bf16.msra.mxu0 0
      %656 = vmatprep.subr.bf16.mxu0 0
      %657 = vmatpush1.bf16.msra.mxu0 0
      %658 = vmatprep.subr.bf16.mxu0 0
      %659 = vmatpush1.bf16.msra.mxu0 0
      %660 = vmatprep.subr.bf16.mxu0 0
      %661 = vmatpush1.bf16.msra.mxu0 0
      %662 = vmatprep.subr.bf16.mxu0 0
      %663 = vmatpush1.bf16.msra.mxu0 %v643
      %664 = vmatprep.subr.bf16.mxu0 0
      %665 = vmatpush1.bf16.msra.mxu0 %v642
      %666 = vmatprep.subr.bf16.mxu0 0
      %667 = vmatpush1.bf16.msra.mxu0 %v641
      %668 = vmatprep.subr.bf16.mxu0 0
      %669 = vmatpush1.bf16.msra.mxu0 %v640
      %670 = vmatprep.subr.bf16.mxu0 0
      %671 = vmatpush2.bf16.msra.mxu0 0
      %672 = vmatprep.subr.bf16.mxu0 0
      %673 = vmatpush2.bf16.msra.mxu0 0
      %674 = vmatprep.subr.bf16.mxu0 0
      %675 = vmatpush2.bf16.msra.mxu0 0
      %676 = vmatprep.subr.bf16.mxu0 0
      %677 = vmatpush2.bf16.msra.mxu0 0
      %678 = vmatprep.subr.bf16.mxu0 0
      %679 = vmatpush2.bf16.msra.mxu0 0
      %680 = vmatprep.subr.bf16.mxu0 0
      %681 = vmatpush2.bf16.msra.mxu0 0
      %682 = vmatprep.subr.bf16.mxu0 0
      %683 = vmatpush2.bf16.msra.mxu0 0
      %684 = vmatprep.subr.bf16.mxu0 0
      %685 = vmatpush2.bf16.msra.mxu0 0
      %686 = vmatprep.mubr.bf16.mxu0 0
      %687 = vmatmul.mubr.bf16.gmra.mxu0 %v649
      %v688 = vpop.f32.mrf.mxu0
      %v689 = vadd.f32 0.0, %v688
      %v690 = vpop.f32.mrf.mxu0
      %v691 = vpop.f32.mrf.mxu0
      %v692 = vadd.f32 0.0, %v691
      %v693 = vpop.f32.mrf.mxu0
      %694 = vmatprep.mubr.bf16.mxu0 0
      %695 = vmatmul.mubr.bf16.gmra.mxu0 %v652
      %v696 = vpop.f32.mrf.mxu0
      %v697 = vadd.f32 0.0, %v696
      %v698 = vpop.f32.mrf.mxu0
      %v699 = vpop.f32.mrf.mxu0
      %v700 = vadd.f32 0.0, %v699
      %v701 = vpop.f32.mrf.mxu0
      %702 = vdwg.mxu0
      %v703 = vadd.f32 %v593, %v689
      %v704 = vadd.f32 %v594, %v692
      %v705 = vadd.f32 %v595, %v697
      %v706 = vadd.f32 %v596, %v700
      %s707 = scalar_lea.vmem %s1, 160
      %v708 = vld [vmem:[%s707] sm:$0xf]
      %v709 = vld [vmem:[%s707 + $0x4] sm:$0xf]
      %v710 = vld [vmem:[%s707 + $0x8] sm:$0xf]
      %v711 = vld [vmem:[%s707 + $0xc] sm:$0xf]
      %v712 = vld [vmem:[%s707 + $0x10] sm:$0xf]
      %v713 = vld [vmem:[%s707 + $0x14] sm:$0xf]
      %v714 = vld [vmem:[%s707 + $0x18] sm:$0xf]
      %v715 = vld [vmem:[%s707 + $0x1c] sm:$0xf]
      %v716 = vshrl.u32 %v622, 16
      %v718 = vshll.u32 %v622, 16
      %v720 = vrot.slane %v718, 1
      %v721 = vor.u32 %v716, %v720
      %v722 = vshll.u32 %v623, 16
      %v724 = vrot.slane %v722, 1
      %v725 = vsel %vm228, %v721, %v724
      %v726 = vshrl.u32 %v623, 16
      %v728 = vor.u32 %v726, %v724
      %v737 = vunpack.c.l.b16 %v708
      %v738 = vunpack.c.l.b16 %v709
      %v739 = vunpack.c.l.b16 %v710
      %v740 = vunpack.c.l.b16 %v711
      %v741 = vunpack.c.l.b16 %v712
      %v742 = vunpack.c.l.b16 %v713
      %v743 = vunpack.c.l.b16 %v714
      %v744 = vunpack.c.l.b16 %v715
      %v745 = vpack.c.b16 %v738, %v737
      %v746 = vpack.c.b16 %v740, %v739
      %v747 = vpack.c.b16 %v742, %v741
      %v748 = vpack.c.b16 %v744, %v743
      %v754 = vsel %vm268, %v725, 0
      %v757 = vsel %vm268, %v728, 0
      %759 = vmatprep.subr.bf16.mxu0 0
      %760 = vmatpush1.bf16.msra.mxu0 0
      %761 = vmatprep.subr.bf16.mxu0 0
      %762 = vmatpush1.bf16.msra.mxu0 0
      %763 = vmatprep.subr.bf16.mxu0 0
      %764 = vmatpush1.bf16.msra.mxu0 0
      %765 = vmatprep.subr.bf16.mxu0 0
      %766 = vmatpush1.bf16.msra.mxu0 0
      %767 = vmatprep.subr.bf16.mxu0 0
      %768 = vmatpush1.bf16.msra.mxu0 %v748
      %769 = vmatprep.subr.bf16.mxu0 0
      %770 = vmatpush1.bf16.msra.mxu0 %v747
      %771 = vmatprep.subr.bf16.mxu0 0
      %772 = vmatpush1.bf16.msra.mxu0 %v746
      %773 = vmatprep.subr.bf16.mxu0 0
      %774 = vmatpush1.bf16.msra.mxu0 %v745
      %775 = vmatprep.subr.bf16.mxu0 0
      %776 = vmatpush2.bf16.msra.mxu0 0
      %777 = vmatprep.subr.bf16.mxu0 0
      %778 = vmatpush2.bf16.msra.mxu0 0
      %779 = vmatprep.subr.bf16.mxu0 0
      %780 = vmatpush2.bf16.msra.mxu0 0
      %781 = vmatprep.subr.bf16.mxu0 0
      %782 = vmatpush2.bf16.msra.mxu0 0
      %783 = vmatprep.subr.bf16.mxu0 0
      %784 = vmatpush2.bf16.msra.mxu0 0
      %785 = vmatprep.subr.bf16.mxu0 0
      %786 = vmatpush2.bf16.msra.mxu0 0
      %787 = vmatprep.subr.bf16.mxu0 0
      %788 = vmatpush2.bf16.msra.mxu0 0
      %789 = vmatprep.subr.bf16.mxu0 0
      %790 = vmatpush2.bf16.msra.mxu0 0
      %791 = vmatprep.mubr.bf16.mxu0 0
      %792 = vmatmul.mubr.bf16.gmra.mxu0 %v754
      %v793 = vpop.f32.mrf.mxu0
      %v794 = vadd.f32 0.0, %v793
      %v795 = vpop.f32.mrf.mxu0
      %v796 = vpop.f32.mrf.mxu0
      %v797 = vadd.f32 0.0, %v796
      %v798 = vpop.f32.mrf.mxu0
      %799 = vmatprep.mubr.bf16.mxu0 0
      %800 = vmatmul.mubr.bf16.gmra.mxu0 %v757
      %v801 = vpop.f32.mrf.mxu0
      %v802 = vadd.f32 0.0, %v801
      %v803 = vpop.f32.mrf.mxu0
      %v804 = vpop.f32.mrf.mxu0
      %v805 = vadd.f32 0.0, %v804
      %v806 = vpop.f32.mrf.mxu0
      %807 = vdwg.mxu0
      %v808 = vadd.f32 %v703, %v794
      %v809 = vadd.f32 %v704, %v797
      %v810 = vadd.f32 %v705, %v802
      %v811 = vadd.f32 %v706, %v805
      %s812 = scalar_lea.vmem %s1, 192
      %v813 = vld [vmem:[%s812] sm:$0xf]
      %v814 = vld [vmem:[%s812 + $0x4] sm:$0xf]
      %v815 = vld [vmem:[%s812 + $0x8] sm:$0xf]
      %v816 = vld [vmem:[%s812 + $0xc] sm:$0xf]
      %v817 = vld [vmem:[%s812 + $0x10] sm:$0xf]
      %v818 = vld [vmem:[%s812 + $0x14] sm:$0xf]
      %v819 = vld [vmem:[%s812 + $0x18] sm:$0xf]
      %v820 = vld [vmem:[%s812 + $0x1c] sm:$0xf]
      %v821 = vrot.slane %v622, 1
      %v822 = vrot.slane %v623, 1
      %v823 = vsel %vm410, %v821, %v822
      %v832 = vunpack.c.l.b16 %v813
      %v833 = vunpack.c.l.b16 %v814
      %v834 = vunpack.c.l.b16 %v815
      %v835 = vunpack.c.l.b16 %v816
      %v836 = vunpack.c.l.b16 %v817
      %v837 = vunpack.c.l.b16 %v818
      %v838 = vunpack.c.l.b16 %v819
      %v839 = vunpack.c.l.b16 %v820
      %v840 = vpack.c.b16 %v833, %v832
      %v841 = vpack.c.b16 %v835, %v834
      %v842 = vpack.c.b16 %v837, %v836
      %v843 = vpack.c.b16 %v839, %v838
      %v849 = vsel %vm268, %v823, 0
      %v852 = vsel %vm268, %v822, 0
      %854 = vmatprep.subr.bf16.mxu0 0
      %855 = vmatpush1.bf16.msra.mxu0 0
      %856 = vmatprep.subr.bf16.mxu0 0
      %857 = vmatpush1.bf16.msra.mxu0 0
      %858 = vmatprep.subr.bf16.mxu0 0
      %859 = vmatpush1.bf16.msra.mxu0 0
      %860 = vmatprep.subr.bf16.mxu0 0
      %861 = vmatpush1.bf16.msra.mxu0 0
      %862 = vmatprep.subr.bf16.mxu0 0
      %863 = vmatpush1.bf16.msra.mxu0 %v843
      %864 = vmatprep.subr.bf16.mxu0 0
      %865 = vmatpush1.bf16.msra.mxu0 %v842
      %866 = vmatprep.subr.bf16.mxu0 0
      %867 = vmatpush1.bf16.msra.mxu0 %v841
      %868 = vmatprep.subr.bf16.mxu0 0
      %869 = vmatpush1.bf16.msra.mxu0 %v840
      %870 = vmatprep.subr.bf16.mxu0 0
      %871 = vmatpush2.bf16.msra.mxu0 0
      %872 = vmatprep.subr.bf16.mxu0 0
      %873 = vmatpush2.bf16.msra.mxu0 0
      %874 = vmatprep.subr.bf16.mxu0 0
      %875 = vmatpush2.bf16.msra.mxu0 0
      %876 = vmatprep.subr.bf16.mxu0 0
      %877 = vmatpush2.bf16.msra.mxu0 0
      %878 = vmatprep.subr.bf16.mxu0 0
      %879 = vmatpush2.bf16.msra.mxu0 0
      %880 = vmatprep.subr.bf16.mxu0 0
      %881 = vmatpush2.bf16.msra.mxu0 0
      %882 = vmatprep.subr.bf16.mxu0 0
      %883 = vmatpush2.bf16.msra.mxu0 0
      %884 = vmatprep.subr.bf16.mxu0 0
      %885 = vmatpush2.bf16.msra.mxu0 0
      %886 = vmatprep.mubr.bf16.mxu0 0
      %887 = vmatmul.mubr.bf16.gmra.mxu0 %v849
      %v888 = vpop.f32.mrf.mxu0
      %v889 = vadd.f32 0.0, %v888
      %v890 = vpop.f32.mrf.mxu0
      %v891 = vpop.f32.mrf.mxu0
      %v892 = vadd.f32 0.0, %v891
      %v893 = vpop.f32.mrf.mxu0
      %894 = vmatprep.mubr.bf16.mxu0 0
      %895 = vmatmul.mubr.bf16.gmra.mxu0 %v852
      %v896 = vpop.f32.mrf.mxu0
      %v897 = vadd.f32 0.0, %v896
      %v898 = vpop.f32.mrf.mxu0
      %v899 = vpop.f32.mrf.mxu0
      %v900 = vadd.f32 0.0, %v899
      %v901 = vpop.f32.mrf.mxu0
      %902 = vdwg.mxu0
      %v903 = vadd.f32 %v808, %v889
      %v904 = vadd.f32 %v809, %v892
      %v905 = vadd.f32 %v810, %v897
      %v906 = vadd.f32 %v811, %v900
      %s907 = scalar_lea.vmem %s1, 224
      %v908 = vld [vmem:[%s907] sm:$0xf]
      %v909 = vld [vmem:[%s907 + $0x4] sm:$0xf]
      %v910 = vld [vmem:[%s907 + $0x8] sm:$0xf]
      %v911 = vld [vmem:[%s907 + $0xc] sm:$0xf]
      %v912 = vld [vmem:[%s907 + $0x10] sm:$0xf]
      %v913 = vld [vmem:[%s907 + $0x14] sm:$0xf]
      %v914 = vld [vmem:[%s907 + $0x18] sm:$0xf]
      %v915 = vld [vmem:[%s907 + $0x1c] sm:$0xf]
      %v916 = vrot.slane %v716, 1
      %v917 = vrot.slane %v718, 2
      %v918 = vor.u32 %v916, %v917
      %v919 = vrot.slane %v726, 1
      %v920 = vrot.slane %v722, 2
      %v921 = vor.u32 %v919, %v920
      %v922 = vsel %vm506, %v918, %v921
      %v931 = vunpack.c.l.b16 %v908
      %v932 = vunpack.c.l.b16 %v909
      %v933 = vunpack.c.l.b16 %v910
      %v934 = vunpack.c.l.b16 %v911
      %v935 = vunpack.c.l.b16 %v912
      %v936 = vunpack.c.l.b16 %v913
      %v937 = vunpack.c.l.b16 %v914
      %v938 = vunpack.c.l.b16 %v915
      %v939 = vpack.c.b16 %v932, %v931
      %v940 = vpack.c.b16 %v934, %v933
      %v941 = vpack.c.b16 %v936, %v935
      %v942 = vpack.c.b16 %v938, %v937
      %v948 = vsel %vm268, %v922, 0
      %v951 = vsel %vm268, %v921, 0
      %953 = vmatprep.subr.bf16.mxu0 0
      %954 = vmatpush1.bf16.msra.mxu0 0
      %955 = vmatprep.subr.bf16.mxu0 0
      %956 = vmatpush1.bf16.msra.mxu0 0
      %957 = vmatprep.subr.bf16.mxu0 0
      %958 = vmatpush1.bf16.msra.mxu0 0
      %959 = vmatprep.subr.bf16.mxu0 0
      %960 = vmatpush1.bf16.msra.mxu0 0
      %961 = vmatprep.subr.bf16.mxu0 0
      %962 = vmatpush1.bf16.msra.mxu0 %v942
      %963 = vmatprep.subr.bf16.mxu0 0
      %964 = vmatpush1.bf16.msra.mxu0 %v941
      %965 = vmatprep.subr.bf16.mxu0 0
      %966 = vmatpush1.bf16.msra.mxu0 %v940
      %967 = vmatprep.subr.bf16.mxu0 0
      %968 = vmatpush1.bf16.msra.mxu0 %v939
      %969 = vmatprep.subr.bf16.mxu0 0
      %970 = vmatpush2.bf16.msra.mxu0 0
      %971 = vmatprep.subr.bf16.mxu0 0
      %972 = vmatpush2.bf16.msra.mxu0 0
      %973 = vmatprep.subr.bf16.mxu0 0
      %974 = vmatpush2.bf16.msra.mxu0 0
      %975 = vmatprep.subr.bf16.mxu0 0
      %976 = vmatpush2.bf16.msra.mxu0 0
      %977 = vmatprep.subr.bf16.mxu0 0
      %978 = vmatpush2.bf16.msra.mxu0 0
      %979 = vmatprep.subr.bf16.mxu0 0
      %980 = vmatpush2.bf16.msra.mxu0 0
      %981 = vmatprep.subr.bf16.mxu0 0
      %982 = vmatpush2.bf16.msra.mxu0 0
      %983 = vmatprep.subr.bf16.mxu0 0
      %984 = vmatpush2.bf16.msra.mxu0 0
      %985 = vmatprep.mubr.bf16.mxu0 0
      %986 = vmatmul.mubr.bf16.gmra.mxu0 %v948
      %v987 = vpop.f32.mrf.mxu0
      %v988 = vadd.f32 0.0, %v987
      %v989 = vpop.f32.mrf.mxu0
      %v990 = vpop.f32.mrf.mxu0
      %v991 = vadd.f32 0.0, %v990
      %v992 = vpop.f32.mrf.mxu0
      %993 = vmatprep.mubr.bf16.mxu0 0
      %994 = vmatmul.mubr.bf16.gmra.mxu0 %v951
      %v995 = vpop.f32.mrf.mxu0
      %v996 = vadd.f32 0.0, %v995
      %v997 = vpop.f32.mrf.mxu0
      %v998 = vpop.f32.mrf.mxu0
      %v999 = vadd.f32 0.0, %v998
      %v1000 = vpop.f32.mrf.mxu0
      %1001 = vdwg.mxu0
      %v1002 = vadd.f32 %v903, %v988
      %v1003 = vadd.f32 %v904, %v991
      %v1004 = vadd.f32 %v905, %v996
      %v1005 = vadd.f32 %v906, %v999
      %s1006 = sadd.s32 %s19, 2
      %s1007 = smul.u32 %s1006, 4
      %s1008 = smul.addr %s1007, 4
      %s1009 = scalar_lea.vmem %s183, %s1008
      %v1010 = vld [vmem:[%s1009] sm:$0xf]
      %v1011 = vld [vmem:[%s1009 + $0x4] sm:$0xf]
      %v1012 = vld [vmem:[%s1009 + $0x8] sm:$0xf]
      %v1013 = vld [vmem:[%s1009 + $0xc] sm:$0xf]
      %s1014 = scalar_lea.vmem %s1, 256
      %v1015 = vld [vmem:[%s1014] sm:$0xf]
      %v1016 = vld [vmem:[%s1014 + $0x4] sm:$0xf]
      %v1017 = vld [vmem:[%s1014 + $0x8] sm:$0xf]
      %v1018 = vld [vmem:[%s1014 + $0xc] sm:$0xf]
      %v1019 = vld [vmem:[%s1014 + $0x10] sm:$0xf]
      %v1020 = vld [vmem:[%s1014 + $0x14] sm:$0xf]
      %v1021 = vld [vmem:[%s1014 + $0x18] sm:$0xf]
      %v1022 = vld [vmem:[%s1014 + $0x1c] sm:$0xf]
      %v1027 = vunpack.c.l.b16 %v1010
      %v1028 = vunpack.c.l.b16 %v1011
      %v1029 = vunpack.c.l.b16 %v1012
      %v1030 = vunpack.c.l.b16 %v1013
      %v1031 = vpack.c.b16 %v1028, %v1027
      %v1032 = vpack.c.b16 %v1030, %v1029
      %v1041 = vunpack.c.l.b16 %v1015
      %v1042 = vunpack.c.l.b16 %v1016
      %v1043 = vunpack.c.l.b16 %v1017
      %v1044 = vunpack.c.l.b16 %v1018
      %v1045 = vunpack.c.l.b16 %v1019
      %v1046 = vunpack.c.l.b16 %v1020
      %v1047 = vunpack.c.l.b16 %v1021
      %v1048 = vunpack.c.l.b16 %v1022
      %v1049 = vpack.c.b16 %v1042, %v1041
      %v1050 = vpack.c.b16 %v1044, %v1043
      %v1051 = vpack.c.b16 %v1046, %v1045
      %v1052 = vpack.c.b16 %v1048, %v1047
      %v1058 = vsel %vm268, %v1031, 0
      %v1061 = vsel %vm268, %v1032, 0
      %1063 = vmatprep.subr.bf16.mxu0 0
      %1064 = vmatpush1.bf16.msra.mxu0 0
      %1065 = vmatprep.subr.bf16.mxu0 0
      %1066 = vmatpush1.bf16.msra.mxu0 0
      %1067 = vmatprep.subr.bf16.mxu0 0
      %1068 = vmatpush1.bf16.msra.mxu0 0
      %1069 = vmatprep.subr.bf16.mxu0 0
      %1070 = vmatpush1.bf16.msra.mxu0 0
      %1071 = vmatprep.subr.bf16.mxu0 0
      %1072 = vmatpush1.bf16.msra.mxu0 %v1052
      %1073 = vmatprep.subr.bf16.mxu0 0
      %1074 = vmatpush1.bf16.msra.mxu0 %v1051
      %1075 = vmatprep.subr.bf16.mxu0 0
      %1076 = vmatpush1.bf16.msra.mxu0 %v1050
      %1077 = vmatprep.subr.bf16.mxu0 0
      %1078 = vmatpush1.bf16.msra.mxu0 %v1049
      %1079 = vmatprep.subr.bf16.mxu0 0
      %1080 = vmatpush2.bf16.msra.mxu0 0
      %1081 = vmatprep.subr.bf16.mxu0 0
      %1082 = vmatpush2.bf16.msra.mxu0 0
      %1083 = vmatprep.subr.bf16.mxu0 0
      %1084 = vmatpush2.bf16.msra.mxu0 0
      %1085 = vmatprep.subr.bf16.mxu0 0
      %1086 = vmatpush2.bf16.msra.mxu0 0
      %1087 = vmatprep.subr.bf16.mxu0 0
      %1088 = vmatpush2.bf16.msra.mxu0 0
      %1089 = vmatprep.subr.bf16.mxu0 0
      %1090 = vmatpush2.bf16.msra.mxu0 0
      %1091 = vmatprep.subr.bf16.mxu0 0
      %1092 = vmatpush2.bf16.msra.mxu0 0
      %1093 = vmatprep.subr.bf16.mxu0 0
      %1094 = vmatpush2.bf16.msra.mxu0 0
      %1095 = vmatprep.mubr.bf16.mxu0 0
      %1096 = vmatmul.mubr.bf16.gmra.mxu0 %v1058
      %v1097 = vpop.f32.mrf.mxu0
      %v1098 = vadd.f32 0.0, %v1097
      %v1099 = vpop.f32.mrf.mxu0
      %v1100 = vpop.f32.mrf.mxu0
      %v1101 = vadd.f32 0.0, %v1100
      %v1102 = vpop.f32.mrf.mxu0
      %1103 = vmatprep.mubr.bf16.mxu0 0
      %1104 = vmatmul.mubr.bf16.gmra.mxu0 %v1061
      %v1105 = vpop.f32.mrf.mxu0
      %v1106 = vadd.f32 0.0, %v1105
      %v1107 = vpop.f32.mrf.mxu0
      %v1108 = vpop.f32.mrf.mxu0
      %v1109 = vadd.f32 0.0, %v1108
      %v1110 = vpop.f32.mrf.mxu0
      %1111 = vdwg.mxu0
      %v1112 = vadd.f32 %v1002, %v1098
      %v1113 = vadd.f32 %v1003, %v1101
      %v1114 = vadd.f32 %v1004, %v1106
      %v1115 = vadd.f32 %v1005, %v1109
      %s1116 = scalar_lea.vmem %s1, 288
      %v1117 = vld [vmem:[%s1116] sm:$0xf]
      %v1118 = vld [vmem:[%s1116 + $0x4] sm:$0xf]
      %v1119 = vld [vmem:[%s1116 + $0x8] sm:$0xf]
      %v1120 = vld [vmem:[%s1116 + $0xc] sm:$0xf]
      %v1121 = vld [vmem:[%s1116 + $0x10] sm:$0xf]
      %v1122 = vld [vmem:[%s1116 + $0x14] sm:$0xf]
      %v1123 = vld [vmem:[%s1116 + $0x18] sm:$0xf]
      %v1124 = vld [vmem:[%s1116 + $0x1c] sm:$0xf]
      %v1125 = vshrl.u32 %v1031, 16
      %v1127 = vshll.u32 %v1031, 16
      %v1129 = vrot.slane %v1127, 1
      %v1130 = vor.u32 %v1125, %v1129
      %v1131 = vshll.u32 %v1032, 16
      %v1133 = vrot.slane %v1131, 1
      %v1134 = vsel %vm228, %v1130, %v1133
      %v1135 = vshrl.u32 %v1032, 16
      %v1137 = vor.u32 %v1135, %v1133
      %v1146 = vunpack.c.l.b16 %v1117
      %v1147 = vunpack.c.l.b16 %v1118
      %v1148 = vunpack.c.l.b16 %v1119
      %v1149 = vunpack.c.l.b16 %v1120
      %v1150 = vunpack.c.l.b16 %v1121
      %v1151 = vunpack.c.l.b16 %v1122
      %v1152 = vunpack.c.l.b16 %v1123
      %v1153 = vunpack.c.l.b16 %v1124
      %v1154 = vpack.c.b16 %v1147, %v1146
      %v1155 = vpack.c.b16 %v1149, %v1148
      %v1156 = vpack.c.b16 %v1151, %v1150
      %v1157 = vpack.c.b16 %v1153, %v1152
      %v1163 = vsel %vm268, %v1134, 0
      %v1166 = vsel %vm268, %v1137, 0
      %1168 = vmatprep.subr.bf16.mxu0 0
      %1169 = vmatpush1.bf16.msra.mxu0 0
      %1170 = vmatprep.subr.bf16.mxu0 0
      %1171 = vmatpush1.bf16.msra.mxu0 0
      %1172 = vmatprep.subr.bf16.mxu0 0
      %1173 = vmatpush1.bf16.msra.mxu0 0
      %1174 = vmatprep.subr.bf16.mxu0 0
      %1175 = vmatpush1.bf16.msra.mxu0 0
      %1176 = vmatprep.subr.bf16.mxu0 0
      %1177 = vmatpush1.bf16.msra.mxu0 %v1157
      %1178 = vmatprep.subr.bf16.mxu0 0
      %1179 = vmatpush1.bf16.msra.mxu0 %v1156
      %1180 = vmatprep.subr.bf16.mxu0 0
      %1181 = vmatpush1.bf16.msra.mxu0 %v1155
      %1182 = vmatprep.subr.bf16.mxu0 0
      %1183 = vmatpush1.bf16.msra.mxu0 %v1154
      %1184 = vmatprep.subr.bf16.mxu0 0
      %1185 = vmatpush2.bf16.msra.mxu0 0
      %1186 = vmatprep.subr.bf16.mxu0 0
      %1187 = vmatpush2.bf16.msra.mxu0 0
      %1188 = vmatprep.subr.bf16.mxu0 0
      %1189 = vmatpush2.bf16.msra.mxu0 0
      %1190 = vmatprep.subr.bf16.mxu0 0
      %1191 = vmatpush2.bf16.msra.mxu0 0
      %1192 = vmatprep.subr.bf16.mxu0 0
      %1193 = vmatpush2.bf16.msra.mxu0 0
      %1194 = vmatprep.subr.bf16.mxu0 0
      %1195 = vmatpush2.bf16.msra.mxu0 0
      %1196 = vmatprep.subr.bf16.mxu0 0
      %1197 = vmatpush2.bf16.msra.mxu0 0
      %1198 = vmatprep.subr.bf16.mxu0 0
      %1199 = vmatpush2.bf16.msra.mxu0 0
      %1200 = vmatprep.mubr.bf16.mxu0 0
      %1201 = vmatmul.mubr.bf16.gmra.mxu0 %v1163
      %v1202 = vpop.f32.mrf.mxu0
      %v1203 = vadd.f32 0.0, %v1202
      %v1204 = vpop.f32.mrf.mxu0
      %v1205 = vpop.f32.mrf.mxu0
      %v1206 = vadd.f32 0.0, %v1205
      %v1207 = vpop.f32.mrf.mxu0
      %1208 = vmatprep.mubr.bf16.mxu0 0
      %1209 = vmatmul.mubr.bf16.gmra.mxu0 %v1166
      %v1210 = vpop.f32.mrf.mxu0
      %v1211 = vadd.f32 0.0, %v1210
      %v1212 = vpop.f32.mrf.mxu0
      %v1213 = vpop.f32.mrf.mxu0
      %v1214 = vadd.f32 0.0, %v1213
      %v1215 = vpop.f32.mrf.mxu0
      %1216 = vdwg.mxu0
      %v1217 = vadd.f32 %v1112, %v1203
      %v1218 = vadd.f32 %v1113, %v1206
      %v1219 = vadd.f32 %v1114, %v1211
      %v1220 = vadd.f32 %v1115, %v1214
      %s1221 = scalar_lea.vmem %s1, 320
      %v1222 = vld [vmem:[%s1221] sm:$0xf]
      %v1223 = vld [vmem:[%s1221 + $0x4] sm:$0xf]
      %v1224 = vld [vmem:[%s1221 + $0x8] sm:$0xf]
      %v1225 = vld [vmem:[%s1221 + $0xc] sm:$0xf]
      %v1226 = vld [vmem:[%s1221 + $0x10] sm:$0xf]
      %v1227 = vld [vmem:[%s1221 + $0x14] sm:$0xf]
      %v1228 = vld [vmem:[%s1221 + $0x18] sm:$0xf]
      %v1229 = vld [vmem:[%s1221 + $0x1c] sm:$0xf]
      %v1230 = vrot.slane %v1031, 1
      %v1231 = vrot.slane %v1032, 1
      %v1232 = vsel %vm410, %v1230, %v1231
      %v1241 = vunpack.c.l.b16 %v1222
      %v1242 = vunpack.c.l.b16 %v1223
      %v1243 = vunpack.c.l.b16 %v1224
      %v1244 = vunpack.c.l.b16 %v1225
      %v1245 = vunpack.c.l.b16 %v1226
      %v1246 = vunpack.c.l.b16 %v1227
      %v1247 = vunpack.c.l.b16 %v1228
      %v1248 = vunpack.c.l.b16 %v1229
      %v1249 = vpack.c.b16 %v1242, %v1241
      %v1250 = vpack.c.b16 %v1244, %v1243
      %v1251 = vpack.c.b16 %v1246, %v1245
      %v1252 = vpack.c.b16 %v1248, %v1247
      %v1258 = vsel %vm268, %v1232, 0
      %v1261 = vsel %vm268, %v1231, 0
      %1263 = vmatprep.subr.bf16.mxu0 0
      %1264 = vmatpush1.bf16.msra.mxu0 0
      %1265 = vmatprep.subr.bf16.mxu0 0
      %1266 = vmatpush1.bf16.msra.mxu0 0
      %1267 = vmatprep.subr.bf16.mxu0 0
      %1268 = vmatpush1.bf16.msra.mxu0 0
      %1269 = vmatprep.subr.bf16.mxu0 0
      %1270 = vmatpush1.bf16.msra.mxu0 0
      %1271 = vmatprep.subr.bf16.mxu0 0
      %1272 = vmatpush1.bf16.msra.mxu0 %v1252
      %1273 = vmatprep.subr.bf16.mxu0 0
      %1274 = vmatpush1.bf16.msra.mxu0 %v1251
      %1275 = vmatprep.subr.bf16.mxu0 0
      %1276 = vmatpush1.bf16.msra.mxu0 %v1250
      %1277 = vmatprep.subr.bf16.mxu0 0
      %1278 = vmatpush1.bf16.msra.mxu0 %v1249
      %1279 = vmatprep.subr.bf16.mxu0 0
      %1280 = vmatpush2.bf16.msra.mxu0 0
      %1281 = vmatprep.subr.bf16.mxu0 0
      %1282 = vmatpush2.bf16.msra.mxu0 0
      %1283 = vmatprep.subr.bf16.mxu0 0
      %1284 = vmatpush2.bf16.msra.mxu0 0
      %1285 = vmatprep.subr.bf16.mxu0 0
      %1286 = vmatpush2.bf16.msra.mxu0 0
      %1287 = vmatprep.subr.bf16.mxu0 0
      %1288 = vmatpush2.bf16.msra.mxu0 0
      %1289 = vmatprep.subr.bf16.mxu0 0
      %1290 = vmatpush2.bf16.msra.mxu0 0
      %1291 = vmatprep.subr.bf16.mxu0 0
      %1292 = vmatpush2.bf16.msra.mxu0 0
      %1293 = vmatprep.subr.bf16.mxu0 0
      %1294 = vmatpush2.bf16.msra.mxu0 0
      %1295 = vmatprep.mubr.bf16.mxu0 0
      %1296 = vmatmul.mubr.bf16.gmra.mxu0 %v1258
      %v1297 = vpop.f32.mrf.mxu0
      %v1298 = vadd.f32 0.0, %v1297
      %v1299 = vpop.f32.mrf.mxu0
      %v1300 = vpop.f32.mrf.mxu0
      %v1301 = vadd.f32 0.0, %v1300
      %v1302 = vpop.f32.mrf.mxu0
      %1303 = vmatprep.mubr.bf16.mxu0 0
      %1304 = vmatmul.mubr.bf16.gmra.mxu0 %v1261
      %v1305 = vpop.f32.mrf.mxu0
      %v1306 = vadd.f32 0.0, %v1305
      %v1307 = vpop.f32.mrf.mxu0
      %v1308 = vpop.f32.mrf.mxu0
      %v1309 = vadd.f32 0.0, %v1308
      %v1310 = vpop.f32.mrf.mxu0
      %1311 = vdwg.mxu0
      %v1312 = vadd.f32 %v1217, %v1298
      %v1313 = vadd.f32 %v1218, %v1301
      %v1314 = vadd.f32 %v1219, %v1306
      %v1315 = vadd.f32 %v1220, %v1309
      %s1316 = scalar_lea.vmem %s1, 352
      %v1317 = vld [vmem:[%s1316] sm:$0xf]
      %v1318 = vld [vmem:[%s1316 + $0x4] sm:$0xf]
      %v1319 = vld [vmem:[%s1316 + $0x8] sm:$0xf]
      %v1320 = vld [vmem:[%s1316 + $0xc] sm:$0xf]
      %v1321 = vld [vmem:[%s1316 + $0x10] sm:$0xf]
      %v1322 = vld [vmem:[%s1316 + $0x14] sm:$0xf]
      %v1323 = vld [vmem:[%s1316 + $0x18] sm:$0xf]
      %v1324 = vld [vmem:[%s1316 + $0x1c] sm:$0xf]
      %v1325 = vrot.slane %v1125, 1
      %v1326 = vrot.slane %v1127, 2
      %v1327 = vor.u32 %v1325, %v1326
      %v1328 = vrot.slane %v1135, 1
      %v1329 = vrot.slane %v1131, 2
      %v1330 = vor.u32 %v1328, %v1329
      %v1331 = vsel %vm506, %v1327, %v1330
      %v1340 = vunpack.c.l.b16 %v1317
      %v1341 = vunpack.c.l.b16 %v1318
      %v1342 = vunpack.c.l.b16 %v1319
      %v1343 = vunpack.c.l.b16 %v1320
      %v1344 = vunpack.c.l.b16 %v1321
      %v1345 = vunpack.c.l.b16 %v1322
      %v1346 = vunpack.c.l.b16 %v1323
      %v1347 = vunpack.c.l.b16 %v1324
      %v1348 = vpack.c.b16 %v1341, %v1340
      %v1349 = vpack.c.b16 %v1343, %v1342
      %v1350 = vpack.c.b16 %v1345, %v1344
      %v1351 = vpack.c.b16 %v1347, %v1346
      %v1357 = vsel %vm268, %v1331, 0
      %v1360 = vsel %vm268, %v1330, 0
      %1362 = vmatprep.subr.bf16.mxu0 0
      %1363 = vmatpush1.bf16.msra.mxu0 0
      %1364 = vmatprep.subr.bf16.mxu0 0
      %1365 = vmatpush1.bf16.msra.mxu0 0
      %1366 = vmatprep.subr.bf16.mxu0 0
      %1367 = vmatpush1.bf16.msra.mxu0 0
      %1368 = vmatprep.subr.bf16.mxu0 0
      %1369 = vmatpush1.bf16.msra.mxu0 0
      %1370 = vmatprep.subr.bf16.mxu0 0
      %1371 = vmatpush1.bf16.msra.mxu0 %v1351
      %1372 = vmatprep.subr.bf16.mxu0 0
      %1373 = vmatpush1.bf16.msra.mxu0 %v1350
      %1374 = vmatprep.subr.bf16.mxu0 0
      %1375 = vmatpush1.bf16.msra.mxu0 %v1349
      %1376 = vmatprep.subr.bf16.mxu0 0
      %1377 = vmatpush1.bf16.msra.mxu0 %v1348
      %1378 = vmatprep.subr.bf16.mxu0 0
      %1379 = vmatpush2.bf16.msra.mxu0 0
      %1380 = vmatprep.subr.bf16.mxu0 0
      %1381 = vmatpush2.bf16.msra.mxu0 0
      %1382 = vmatprep.subr.bf16.mxu0 0
      %1383 = vmatpush2.bf16.msra.mxu0 0
      %1384 = vmatprep.subr.bf16.mxu0 0
      %1385 = vmatpush2.bf16.msra.mxu0 0
      %1386 = vmatprep.subr.bf16.mxu0 0
      %1387 = vmatpush2.bf16.msra.mxu0 0
      %1388 = vmatprep.subr.bf16.mxu0 0
      %1389 = vmatpush2.bf16.msra.mxu0 0
      %1390 = vmatprep.subr.bf16.mxu0 0
      %1391 = vmatpush2.bf16.msra.mxu0 0
      %1392 = vmatprep.subr.bf16.mxu0 0
      %1393 = vmatpush2.bf16.msra.mxu0 0
      %1394 = vmatprep.mubr.bf16.mxu0 0
      %1395 = vmatmul.mubr.bf16.gmra.mxu0 %v1357
      %v1396 = vpop.f32.mrf.mxu0
      %v1397 = vadd.f32 0.0, %v1396
      %v1398 = vpop.f32.mrf.mxu0
      %v1399 = vpop.f32.mrf.mxu0
      %v1400 = vadd.f32 0.0, %v1399
      %v1401 = vpop.f32.mrf.mxu0
      %1402 = vmatprep.mubr.bf16.mxu0 0
      %1403 = vmatmul.mubr.bf16.gmra.mxu0 %v1360
      %v1404 = vpop.f32.mrf.mxu0
      %v1405 = vadd.f32 0.0, %v1404
      %v1406 = vpop.f32.mrf.mxu0
      %v1407 = vpop.f32.mrf.mxu0
      %v1408 = vadd.f32 0.0, %v1407
      %v1409 = vpop.f32.mrf.mxu0
      %1410 = vdwg.mxu0
      %v1411 = vadd.f32 %v1312, %v1397
      %v1412 = vadd.f32 %v1313, %v1400
      %v1413 = vadd.f32 %v1314, %v1405
      %v1414 = vadd.f32 %v1315, %v1408
      %s1415 = sadd.s32 %s19, 3
      %s1416 = smul.u32 %s1415, 4
      %s1417 = smul.addr %s1416, 4
      %s1418 = scalar_lea.vmem %s183, %s1417
      %v1419 = vld [vmem:[%s1418] sm:$0xf]
      %v1420 = vld [vmem:[%s1418 + $0x4] sm:$0xf]
      %v1421 = vld [vmem:[%s1418 + $0x8] sm:$0xf]
      %v1422 = vld [vmem:[%s1418 + $0xc] sm:$0xf]
      %s1423 = scalar_lea.vmem %s1, 384
      %v1424 = vld [vmem:[%s1423] sm:$0xf]
      %v1425 = vld [vmem:[%s1423 + $0x4] sm:$0xf]
      %v1426 = vld [vmem:[%s1423 + $0x8] sm:$0xf]
      %v1427 = vld [vmem:[%s1423 + $0xc] sm:$0xf]
      %v1428 = vld [vmem:[%s1423 + $0x10] sm:$0xf]
      %v1429 = vld [vmem:[%s1423 + $0x14] sm:$0xf]
      %v1430 = vld [vmem:[%s1423 + $0x18] sm:$0xf]
      %v1431 = vld [vmem:[%s1423 + $0x1c] sm:$0xf]
      %v1436 = vunpack.c.l.b16 %v1419
      %v1437 = vunpack.c.l.b16 %v1420
      %v1438 = vunpack.c.l.b16 %v1421
      %v1439 = vunpack.c.l.b16 %v1422
      %v1440 = vpack.c.b16 %v1437, %v1436
      %v1441 = vpack.c.b16 %v1439, %v1438
      %v1450 = vunpack.c.l.b16 %v1424
      %v1451 = vunpack.c.l.b16 %v1425
      %v1452 = vunpack.c.l.b16 %v1426
      %v1453 = vunpack.c.l.b16 %v1427
      %v1454 = vunpack.c.l.b16 %v1428
      %v1455 = vunpack.c.l.b16 %v1429
      %v1456 = vunpack.c.l.b16 %v1430
      %v1457 = vunpack.c.l.b16 %v1431
      %v1458 = vpack.c.b16 %v1451, %v1450
      %v1459 = vpack.c.b16 %v1453, %v1452
      %v1460 = vpack.c.b16 %v1455, %v1454
      %v1461 = vpack.c.b16 %v1457, %v1456
      %v1467 = vsel %vm268, %v1440, 0
      %v1470 = vsel %vm268, %v1441, 0
      %1472 = vmatprep.subr.bf16.mxu0 0
      %1473 = vmatpush1.bf16.msra.mxu0 0
      %1474 = vmatprep.subr.bf16.mxu0 0
      %1475 = vmatpush1.bf16.msra.mxu0 0
      %1476 = vmatprep.subr.bf16.mxu0 0
      %1477 = vmatpush1.bf16.msra.mxu0 0
      %1478 = vmatprep.subr.bf16.mxu0 0
      %1479 = vmatpush1.bf16.msra.mxu0 0
      %1480 = vmatprep.subr.bf16.mxu0 0
      %1481 = vmatpush1.bf16.msra.mxu0 %v1461
      %1482 = vmatprep.subr.bf16.mxu0 0
      %1483 = vmatpush1.bf16.msra.mxu0 %v1460
      %1484 = vmatprep.subr.bf16.mxu0 0
      %1485 = vmatpush1.bf16.msra.mxu0 %v1459
      %1486 = vmatprep.subr.bf16.mxu0 0
      %1487 = vmatpush1.bf16.msra.mxu0 %v1458
      %1488 = vmatprep.subr.bf16.mxu0 0
      %1489 = vmatpush2.bf16.msra.mxu0 0
      %1490 = vmatprep.subr.bf16.mxu0 0
      %1491 = vmatpush2.bf16.msra.mxu0 0
      %1492 = vmatprep.subr.bf16.mxu0 0
      %1493 = vmatpush2.bf16.msra.mxu0 0
      %1494 = vmatprep.subr.bf16.mxu0 0
      %1495 = vmatpush2.bf16.msra.mxu0 0
      %1496 = vmatprep.subr.bf16.mxu0 0
      %1497 = vmatpush2.bf16.msra.mxu0 0
      %1498 = vmatprep.subr.bf16.mxu0 0
      %1499 = vmatpush2.bf16.msra.mxu0 0
      %1500 = vmatprep.subr.bf16.mxu0 0
      %1501 = vmatpush2.bf16.msra.mxu0 0
      %1502 = vmatprep.subr.bf16.mxu0 0
      %1503 = vmatpush2.bf16.msra.mxu0 0
      %1504 = vmatprep.mubr.bf16.mxu0 0
      %1505 = vmatmul.mubr.bf16.gmra.mxu0 %v1467
      %v1506 = vpop.f32.mrf.mxu0
      %v1507 = vadd.f32 0.0, %v1506
      %v1508 = vpop.f32.mrf.mxu0
      %v1509 = vpop.f32.mrf.mxu0
      %v1510 = vadd.f32 0.0, %v1509
      %v1511 = vpop.f32.mrf.mxu0
      %1512 = vmatprep.mubr.bf16.mxu0 0
      %1513 = vmatmul.mubr.bf16.gmra.mxu0 %v1470
      %v1514 = vpop.f32.mrf.mxu0
      %v1515 = vadd.f32 0.0, %v1514
      %v1516 = vpop.f32.mrf.mxu0
      %v1517 = vpop.f32.mrf.mxu0
      %v1518 = vadd.f32 0.0, %v1517
      %v1519 = vpop.f32.mrf.mxu0
      %1520 = vdwg.mxu0
      %v1521 = vadd.f32 %v1411, %v1507
      %v1522 = vadd.f32 %v1412, %v1510
      %v1523 = vadd.f32 %v1413, %v1515
      %v1524 = vadd.f32 %v1414, %v1518
      %s1525 = scalar_lea.vmem %s1, 416
      %v1526 = vld [vmem:[%s1525] sm:$0xf]
      %v1527 = vld [vmem:[%s1525 + $0x4] sm:$0xf]
      %v1528 = vld [vmem:[%s1525 + $0x8] sm:$0xf]
      %v1529 = vld [vmem:[%s1525 + $0xc] sm:$0xf]
      %v1530 = vld [vmem:[%s1525 + $0x10] sm:$0xf]
      %v1531 = vld [vmem:[%s1525 + $0x14] sm:$0xf]
      %v1532 = vld [vmem:[%s1525 + $0x18] sm:$0xf]
      %v1533 = vld [vmem:[%s1525 + $0x1c] sm:$0xf]
      %v1534 = vshrl.u32 %v1440, 16
      %v1536 = vshll.u32 %v1440, 16
      %v1538 = vrot.slane %v1536, 1
      %v1539 = vor.u32 %v1534, %v1538
      %v1540 = vshll.u32 %v1441, 16
      %v1542 = vrot.slane %v1540, 1
      %v1543 = vsel %vm228, %v1539, %v1542
      %v1544 = vshrl.u32 %v1441, 16
      %v1546 = vor.u32 %v1544, %v1542
      %v1555 = vunpack.c.l.b16 %v1526
      %v1556 = vunpack.c.l.b16 %v1527
      %v1557 = vunpack.c.l.b16 %v1528
      %v1558 = vunpack.c.l.b16 %v1529
      %v1559 = vunpack.c.l.b16 %v1530
      %v1560 = vunpack.c.l.b16 %v1531
      %v1561 = vunpack.c.l.b16 %v1532
      %v1562 = vunpack.c.l.b16 %v1533
      %v1563 = vpack.c.b16 %v1556, %v1555
      %v1564 = vpack.c.b16 %v1558, %v1557
      %v1565 = vpack.c.b16 %v1560, %v1559
      %v1566 = vpack.c.b16 %v1562, %v1561
      %v1572 = vsel %vm268, %v1543, 0
      %v1575 = vsel %vm268, %v1546, 0
      %1577 = vmatprep.subr.bf16.mxu0 0
      %1578 = vmatpush1.bf16.msra.mxu0 0
      %1579 = vmatprep.subr.bf16.mxu0 0
      %1580 = vmatpush1.bf16.msra.mxu0 0
      %1581 = vmatprep.subr.bf16.mxu0 0
      %1582 = vmatpush1.bf16.msra.mxu0 0
      %1583 = vmatprep.subr.bf16.mxu0 0
      %1584 = vmatpush1.bf16.msra.mxu0 0
      %1585 = vmatprep.subr.bf16.mxu0 0
      %1586 = vmatpush1.bf16.msra.mxu0 %v1566
      %1587 = vmatprep.subr.bf16.mxu0 0
      %1588 = vmatpush1.bf16.msra.mxu0 %v1565
      %1589 = vmatprep.subr.bf16.mxu0 0
      %1590 = vmatpush1.bf16.msra.mxu0 %v1564
      %1591 = vmatprep.subr.bf16.mxu0 0
      %1592 = vmatpush1.bf16.msra.mxu0 %v1563
      %1593 = vmatprep.subr.bf16.mxu0 0
      %1594 = vmatpush2.bf16.msra.mxu0 0
      %1595 = vmatprep.subr.bf16.mxu0 0
      %1596 = vmatpush2.bf16.msra.mxu0 0
      %1597 = vmatprep.subr.bf16.mxu0 0
      %1598 = vmatpush2.bf16.msra.mxu0 0
      %1599 = vmatprep.subr.bf16.mxu0 0
      %1600 = vmatpush2.bf16.msra.mxu0 0
      %1601 = vmatprep.subr.bf16.mxu0 0
      %1602 = vmatpush2.bf16.msra.mxu0 0
      %1603 = vmatprep.subr.bf16.mxu0 0
      %1604 = vmatpush2.bf16.msra.mxu0 0
      %1605 = vmatprep.subr.bf16.mxu0 0
      %1606 = vmatpush2.bf16.msra.mxu0 0
      %1607 = vmatprep.subr.bf16.mxu0 0
      %1608 = vmatpush2.bf16.msra.mxu0 0
      %1609 = vmatprep.mubr.bf16.mxu0 0
      %1610 = vmatmul.mubr.bf16.gmra.mxu0 %v1572
      %v1611 = vpop.f32.mrf.mxu0
      %v1612 = vadd.f32 0.0, %v1611
      %v1613 = vpop.f32.mrf.mxu0
      %v1614 = vpop.f32.mrf.mxu0
      %v1615 = vadd.f32 0.0, %v1614
      %v1616 = vpop.f32.mrf.mxu0
      %1617 = vmatprep.mubr.bf16.mxu0 0
      %1618 = vmatmul.mubr.bf16.gmra.mxu0 %v1575
      %v1619 = vpop.f32.mrf.mxu0
      %v1620 = vadd.f32 0.0, %v1619
      %v1621 = vpop.f32.mrf.mxu0
      %v1622 = vpop.f32.mrf.mxu0
      %v1623 = vadd.f32 0.0, %v1622
      %v1624 = vpop.f32.mrf.mxu0
      %1625 = vdwg.mxu0
      %v1626 = vadd.f32 %v1521, %v1612
      %v1627 = vadd.f32 %v1522, %v1615
      %v1628 = vadd.f32 %v1523, %v1620
      %v1629 = vadd.f32 %v1524, %v1623
      %s1630 = scalar_lea.vmem %s1, 448
      %v1631 = vld [vmem:[%s1630] sm:$0xf]
      %v1632 = vld [vmem:[%s1630 + $0x4] sm:$0xf]
      %v1633 = vld [vmem:[%s1630 + $0x8] sm:$0xf]
      %v1634 = vld [vmem:[%s1630 + $0xc] sm:$0xf]
      %v1635 = vld [vmem:[%s1630 + $0x10] sm:$0xf]
      %v1636 = vld [vmem:[%s1630 + $0x14] sm:$0xf]
      %v1637 = vld [vmem:[%s1630 + $0x18] sm:$0xf]
      %v1638 = vld [vmem:[%s1630 + $0x1c] sm:$0xf]
      %v1639 = vrot.slane %v1440, 1
      %v1640 = vrot.slane %v1441, 1
      %v1641 = vsel %vm410, %v1639, %v1640
      %v1650 = vunpack.c.l.b16 %v1631
      %v1651 = vunpack.c.l.b16 %v1632
      %v1652 = vunpack.c.l.b16 %v1633
      %v1653 = vunpack.c.l.b16 %v1634
      %v1654 = vunpack.c.l.b16 %v1635
      %v1655 = vunpack.c.l.b16 %v1636
      %v1656 = vunpack.c.l.b16 %v1637
      %v1657 = vunpack.c.l.b16 %v1638
      %v1658 = vpack.c.b16 %v1651, %v1650
      %v1659 = vpack.c.b16 %v1653, %v1652
      %v1660 = vpack.c.b16 %v1655, %v1654
      %v1661 = vpack.c.b16 %v1657, %v1656
      %v1667 = vsel %vm268, %v1641, 0
      %v1670 = vsel %vm268, %v1640, 0
      %1672 = vmatprep.subr.bf16.mxu0 0
      %1673 = vmatpush1.bf16.msra.mxu0 0
      %1674 = vmatprep.subr.bf16.mxu0 0
      %1675 = vmatpush1.bf16.msra.mxu0 0
      %1676 = vmatprep.subr.bf16.mxu0 0
      %1677 = vmatpush1.bf16.msra.mxu0 0
      %1678 = vmatprep.subr.bf16.mxu0 0
      %1679 = vmatpush1.bf16.msra.mxu0 0
      %1680 = vmatprep.subr.bf16.mxu0 0
      %1681 = vmatpush1.bf16.msra.mxu0 %v1661
      %1682 = vmatprep.subr.bf16.mxu0 0
      %1683 = vmatpush1.bf16.msra.mxu0 %v1660
      %1684 = vmatprep.subr.bf16.mxu0 0
      %1685 = vmatpush1.bf16.msra.mxu0 %v1659
      %1686 = vmatprep.subr.bf16.mxu0 0
      %1687 = vmatpush1.bf16.msra.mxu0 %v1658
      %1688 = vmatprep.subr.bf16.mxu0 0
      %1689 = vmatpush2.bf16.msra.mxu0 0
      %1690 = vmatprep.subr.bf16.mxu0 0
      %1691 = vmatpush2.bf16.msra.mxu0 0
      %1692 = vmatprep.subr.bf16.mxu0 0
      %1693 = vmatpush2.bf16.msra.mxu0 0
      %1694 = vmatprep.subr.bf16.mxu0 0
      %1695 = vmatpush2.bf16.msra.mxu0 0
      %1696 = vmatprep.subr.bf16.mxu0 0
      %1697 = vmatpush2.bf16.msra.mxu0 0
      %1698 = vmatprep.subr.bf16.mxu0 0
      %1699 = vmatpush2.bf16.msra.mxu0 0
      %1700 = vmatprep.subr.bf16.mxu0 0
      %1701 = vmatpush2.bf16.msra.mxu0 0
      %1702 = vmatprep.subr.bf16.mxu0 0
      %1703 = vmatpush2.bf16.msra.mxu0 0
      %1704 = vmatprep.mubr.bf16.mxu0 0
      %1705 = vmatmul.mubr.bf16.gmra.mxu0 %v1667
      %v1706 = vpop.f32.mrf.mxu0
      %v1707 = vadd.f32 0.0, %v1706
      %v1708 = vpop.f32.mrf.mxu0
      %v1709 = vpop.f32.mrf.mxu0
      %v1710 = vadd.f32 0.0, %v1709
      %v1711 = vpop.f32.mrf.mxu0
      %1712 = vmatprep.mubr.bf16.mxu0 0
      %1713 = vmatmul.mubr.bf16.gmra.mxu0 %v1670
      %v1714 = vpop.f32.mrf.mxu0
      %v1715 = vadd.f32 0.0, %v1714
      %v1716 = vpop.f32.mrf.mxu0
      %v1717 = vpop.f32.mrf.mxu0
      %v1718 = vadd.f32 0.0, %v1717
      %v1719 = vpop.f32.mrf.mxu0
      %1720 = vdwg.mxu0
      %v1721 = vadd.f32 %v1626, %v1707
      %v1722 = vadd.f32 %v1627, %v1710
      %v1723 = vadd.f32 %v1628, %v1715
      %v1724 = vadd.f32 %v1629, %v1718
      %s1725 = scalar_lea.vmem %s1, 480
      %v1726 = vld [vmem:[%s1725] sm:$0xf]
      %v1727 = vld [vmem:[%s1725 + $0x4] sm:$0xf]
      %v1728 = vld [vmem:[%s1725 + $0x8] sm:$0xf]
      %v1729 = vld [vmem:[%s1725 + $0xc] sm:$0xf]
      %v1730 = vld [vmem:[%s1725 + $0x10] sm:$0xf]
      %v1731 = vld [vmem:[%s1725 + $0x14] sm:$0xf]
      %v1732 = vld [vmem:[%s1725 + $0x18] sm:$0xf]
      %v1733 = vld [vmem:[%s1725 + $0x1c] sm:$0xf]
      %v1734 = vrot.slane %v1534, 1
      %v1735 = vrot.slane %v1536, 2
      %v1736 = vor.u32 %v1734, %v1735
      %v1737 = vrot.slane %v1544, 1
      %v1738 = vrot.slane %v1540, 2
      %v1739 = vor.u32 %v1737, %v1738
      %v1740 = vsel %vm506, %v1736, %v1739
      %v1749 = vunpack.c.l.b16 %v1726
      %v1750 = vunpack.c.l.b16 %v1727
      %v1751 = vunpack.c.l.b16 %v1728
      %v1752 = vunpack.c.l.b16 %v1729
      %v1753 = vunpack.c.l.b16 %v1730
      %v1754 = vunpack.c.l.b16 %v1731
      %v1755 = vunpack.c.l.b16 %v1732
      %v1756 = vunpack.c.l.b16 %v1733
      %v1757 = vpack.c.b16 %v1750, %v1749
      %v1758 = vpack.c.b16 %v1752, %v1751
      %v1759 = vpack.c.b16 %v1754, %v1753
      %v1760 = vpack.c.b16 %v1756, %v1755
      %v1766 = vsel %vm268, %v1740, 0
      %v1769 = vsel %vm268, %v1739, 0
      %1771 = vmatprep.subr.bf16.mxu0 0
      %1772 = vmatpush1.bf16.msra.mxu0 0
      %1773 = vmatprep.subr.bf16.mxu0 0
      %1774 = vmatpush1.bf16.msra.mxu0 0
      %1775 = vmatprep.subr.bf16.mxu0 0
      %1776 = vmatpush1.bf16.msra.mxu0 0
      %1777 = vmatprep.subr.bf16.mxu0 0
      %1778 = vmatpush1.bf16.msra.mxu0 0
      %1779 = vmatprep.subr.bf16.mxu0 0
      %1780 = vmatpush1.bf16.msra.mxu0 %v1760
      %1781 = vmatprep.subr.bf16.mxu0 0
      %1782 = vmatpush1.bf16.msra.mxu0 %v1759
      %1783 = vmatprep.subr.bf16.mxu0 0
      %1784 = vmatpush1.bf16.msra.mxu0 %v1758
      %1785 = vmatprep.subr.bf16.mxu0 0
      %1786 = vmatpush1.bf16.msra.mxu0 %v1757
      %1787 = vmatprep.subr.bf16.mxu0 0
      %1788 = vmatpush2.bf16.msra.mxu0 0
      %1789 = vmatprep.subr.bf16.mxu0 0
      %1790 = vmatpush2.bf16.msra.mxu0 0
      %1791 = vmatprep.subr.bf16.mxu0 0
      %1792 = vmatpush2.bf16.msra.mxu0 0
      %1793 = vmatprep.subr.bf16.mxu0 0
      %1794 = vmatpush2.bf16.msra.mxu0 0
      %1795 = vmatprep.subr.bf16.mxu0 0
      %1796 = vmatpush2.bf16.msra.mxu0 0
      %1797 = vmatprep.subr.bf16.mxu0 0
      %1798 = vmatpush2.bf16.msra.mxu0 0
      %1799 = vmatprep.subr.bf16.mxu0 0
      %1800 = vmatpush2.bf16.msra.mxu0 0
      %1801 = vmatprep.subr.bf16.mxu0 0
      %1802 = vmatpush2.bf16.msra.mxu0 0
      %1803 = vmatprep.mubr.bf16.mxu0 0
      %1804 = vmatmul.mubr.bf16.gmra.mxu0 %v1766
      %v1805 = vpop.f32.mrf.mxu0
      %v1806 = vadd.f32 0.0, %v1805
      %v1807 = vpop.f32.mrf.mxu0
      %v1808 = vpop.f32.mrf.mxu0
      %v1809 = vadd.f32 0.0, %v1808
      %v1810 = vpop.f32.mrf.mxu0
      %1811 = vmatprep.mubr.bf16.mxu0 0
      %1812 = vmatmul.mubr.bf16.gmra.mxu0 %v1769
      %v1813 = vpop.f32.mrf.mxu0
      %v1814 = vadd.f32 0.0, %v1813
      %v1815 = vpop.f32.mrf.mxu0
      %v1816 = vpop.f32.mrf.mxu0
      %v1817 = vadd.f32 0.0, %v1816
      %v1818 = vpop.f32.mrf.mxu0
      %1819 = vdwg.mxu0
      %v1820 = vadd.f32 %v1721, %v1806
      %v1821 = vadd.f32 %v1722, %v1809
      %v1822 = vadd.f32 %v1723, %v1814
      %v1823 = vadd.f32 %v1724, %v1817
      %v1824 = vld [vmem:[%s2] sm:$0x1]
      %v1826 = vlaneseq
      %v1827 = vshrl.u32 %v1826, 7
      %v1828 = vsub.s32 0, %v1827
      %v1829 = vrot.slane %v1824, %v1828
      %v1831 = vadd.f32 %v1820, %v1829
      %v1832 = vadd.f32 %v1821, %v1829
      %v1833 = vadd.f32 %v1822, %v1829
      %v1834 = vadd.f32 %v1823, %v1829
      %v1835 = vtanh.pop %v1831
      %v1836 = vtanh.pop %v1832
      %v1837 = vtanh.pop %v1833
      %v1838 = vtanh.pop %v1834
      %1839 = vst [vmem:[%s192] sm:$0xff] %v1835
      %1840 = vst [vmem:[%s192 + $0x8] sm:$0xff] %v1836
      %1841 = vst [vmem:[%s192 + $0x10] sm:$0xff] %v1837
      %1842 = vst [vmem:[%s192 + $0x18] sm:$0xf] %v1838
      %p1843 = scmp.lt.s32.totalorder %s18, 1
      %s1844 = scalar_select %p1843, %s18, 1
      %p1845 = scmp.lt.s32.totalorder %s19, 27
      %s1846 = scalar_select %p1845, %s19, 27
      %s1847 = smul.addr %s1846, 4
      %s1848 = smul.addr %s1844, 112
      %s1849 = sadd.s32 %s1847, %s1848
      %s1850 = smul.addr %s1849, 8
      %s1851 = scalar_lea.vmem %s3, %s1850
      // Predicated region
      $region33: #{generator_forward.7} parent=31 // pred_check
        %p1852 = pneg %p114
      $region34: #{generator_forward.7} parent=31 // pred_check_branch
        %1854 = sbr.rel (%p1852) target = $region36
      $region35: #{generator_forward.7} parent=31 // pred_region
        _
      $region36: #{generator_forward.7} parent=31 // pred_fallthru
        _
    $region32: #{generator_forward.7} parent=5 // pred_fallthru
      _
    %p1855 = scmp.le.s32.totalorder 2, %s9
    // Predicated region
    $region37: #{generator_forward.7} parent=5 // pred_check
      %p1856 = pneg %p1855
    $region38: #{generator_forward.7} parent=5 // pred_check_branch
      %1858 = sbr.rel (%p1856) target = $region40
    $region39: #{generator_forward.7} parent=5 // pred_region
      %s1859 = ssub.s32 %s9, 2
      // Predicated region
      $region41: #{generator_forward.7} parent=39 // pred_check
        %p1860 = pneg %p120
      $region42: #{generator_forward.7} parent=39 // pred_check_branch
        %1862 = sbr.rel (%p1860) target = $region44
      $region43: #{generator_forward.7} parent=39 // pred_region
        %p1863 = scmp.lt.s32.totalorder %s20, 1
        %s1864 = scalar_select %p1863, %s20, 1
        %p1865 = scmp.lt.s32.totalorder %s21, 27
        %s1866 = scalar_select %p1865, %s21, 27
        %s1867 = smul.addr %s1866, 4
        %s1868 = smul.addr %s1864, 112
        %s1869 = sadd.s32 %s1867, %s1868
        %s1870 = smul.addr %s1869, 8
        %s1871 = scalar_lea.vmem %s3, %s1870
      $region44: #{generator_forward.7} parent=39 // pred_fallthru
        _
    $region40: #{generator_forward.7} parent=5 // pred_fallthru
      _
  $region6: #{generator_forward.7} parent=0 // loop_footer
    %s13 = sadd.s32 1, %s9
  $region7: #{generator_forward.7} parent=0 // loop_footer_branch
    %8 = sbr.rel target = $region3
  $region8: #{generator_forward.7} parent=0 // loop_exit
    _

</llo_original>
